<compile_context>
chip_gen: v7x
topology: tpu7x:2x2x1
jax: 0.10.0
libtpu: 0.0.40
codegen_flags: <defaults>
</compile_context>

<pallas_src>
import jax
import jax.numpy as jnp
from jax import lax
from jax.experimental import pallas as pl
from jax.experimental.pallas import tpu as pltpu


def _round_up(x, m):
    return ((x + m - 1) // m) * m


def _make_fused_postnet_kernel(L, K, T, T_tile, c_ins, c_outs):
    """Kernel factory: all L conv+BN(+tanh) layers fused; one (b, t-tile) per grid step."""
    pad = (K - 1) // 2
    H = L * pad  # total halo carried by the layer-0 input slab

    def kernel(*refs):
        x_a_ref = refs[0]              # (1, C_in0, T_tile)   bf16, current tile
        x_b_ref = refs[1]              # (1, C_in0, halo_w)   bf16, start of next tile
        w_refs = refs[2:2 + L]         # l=0: (C_out0, K*C_in0); l>=1: (K*C_out_l, C_in_l)
        s_ref = refs[2 + L]            # (C_out_max, L) f32   packed conv-bias + BN shift
        o_ref = refs[3 + L]            # (1, C_out_last, T_tile) f32

        t = pl.program_id(1)
        g0 = t * T_tile - H            # global time position of slab column 0

        left = x_a_ref[0]                                   # (C_in0, T_tile)
        if H > 0:
            right = x_b_ref[0][:, :2 * H]                   # (C_in0, 2H) halo from next tile
            a16 = jnp.concatenate([left, right], axis=1)    # (C_in0, T_tile + 2H) bf16
        else:
            a16 = left

        # Hoisted boundary iota: one broadcast per grid step (JAX does not CSE it).
        iota = lax.broadcasted_iota(jnp.int32, (1, T_tile + 2 * H), 1)
        shifts = s_ref[...]                                 # (C_out_max, L) f32

        y = None
        for l in range(L):
            c_in, c_out = c_ins[l], c_outs[l]
            t_out = T_tile + 2 * (L - 1 - l) * pad
            if l == 0:
                # Narrow-C_in first layer: im2col -> one K*C_in-deep MXU contraction.
                cols = jnp.concatenate([a16[:, k:k + t_out] for k in range(K)], axis=0)
                y = jnp.dot(w_refs[0][...], cols, preferred_element_type=jnp.float32)
            else:
                # Wide layers: accumulate K per-tap matmuls; no K-fold activation copy.
                y = jnp.dot(w_refs[l][0:c_out, :], a16[:, 0:t_out],
                            preferred_element_type=jnp.float32)
                for k in range(1, K):
                    y = y + jnp.dot(w_refs[l][k * c_out:(k + 1) * c_out, :],
                                    a16[:, k:k + t_out],
                                    preferred_element_type=jnp.float32)
            y = y + shifts[:c_out, l:l + 1]                 # conv bias + BN shift (f32)
            if l < L - 1:
                y = jnp.tanh(y)
                # Zero columns outside the real sequence [0, T) so the next layer's
                # implicit zero padding matches the unfused reference exactly.
                pos = (g0 + (l + 1) * pad) + iota[:, :t_out]
                y = jnp.where((pos >= 0) & (pos < T), y, 0.0)
                a16 = y.astype(jnp.bfloat16)                # bf16 MXU operands, f32 acc

        o_ref[0] = y.astype(o_ref.dtype)

    return kernel


def postnet_forward(x, params, *, eps=1e-5, t_tile=512,
                    vmem_limit_bytes=32 * 1024 * 1024):
    """PostNet forward, inference mode (dropout = identity). Single fused pallas_call.

    v5e/v6e (128 MiB VMEM): t_tile=1024 and a larger vmem_limit_bytes pay off for long T.
    v7x (64 MiB VMEM, 2 TCs): keep t_tile=512; grid (B, T_grid) is megacore-sharded, so
    make sure B*T_grid >= 2 for load balance.
    """
    B, C_in0, T = x.shape
    L = len(params)
    K = params[0]["w"].shape[-1]
    assert K % 2 == 1, "PyTorch padding=(K-1)//2 is 'same' only for odd kernel_size"
    pad = (K - 1) // 2
    H = L * pad
    c_ins = [p["w"].shape[1] for p in params]
    c_outs = [p["w"].shape[0] for p in params]
    C_out_last = c_outs[-1]
    C_out_max = max(c_outs)

    t_tile = _round_up(max(t_tile, 128), 128)
    T_tile = min(t_tile, _round_up(T, 128))
    # Fallback (instead of asserting): the accumulated halo must fit inside one tile.
    T_tile = max(T_tile, _round_up(max(2 * H, 1), 128))
    T_grid = -(-T // T_tile)
    T_full = T_grid * T_tile
    # One extra tile on the right so the halo block index (t+1) is always valid.
    T_ext = (T_grid + 1) * T_tile

    # Pad the time axis ONCE (halo of H zeros left, zeros to T_ext right) and pre-cast
    # to bf16: the MXU operands are bf16 anyway, f32 would only double HBM traffic.
    x_pad = jnp.pad(x, ((0, 0), (0, 0), (H, T_ext - H - T))).astype(jnp.bfloat16)

    # Fold BN scale into the conv weights; pack conv bias + BN shift into one array.
    w_list = []
    s_packed = jnp.zeros((C_out_max, L), jnp.float32)
    for l, p in enumerate(params):
        C_out, C_in, _ = p["w"].shape
        scale = p["gamma"] / jnp.sqrt(p["var"] + eps)
        w = p["w"] * scale[:, None, None]                          # (C_out, C_in, K)
        if l == 0:
            # im2col layout: slab rows are ordered (k, c_in) -> (C_out, K*C_in).
            w_prep = jnp.transpose(w, (0, 2, 1)).reshape(C_out, K * C_in)
        else:
            # per-tap layout: tap k lives in rows [k*C_out, (k+1)*C_out).
            w_prep = jnp.transpose(w, (2, 0, 1)).reshape(K * C_out, C_in)
        w_list.append(w_prep.astype(jnp.bfloat16))
        shift = (p["b"] - p["mean"]) * scale + p["beta"]
        s_packed = s_packed.at[:C_out, l].set(shift)

    kernel = _make_fused_postnet_kernel(L, K, T, T_tile, c_ins, c_outs)

    x_spec = pl.BlockSpec((1, C_in0, T_tile), lambda b, t: (b, 0, t))
    if 2 * H <= 128:
        # Only the first 2H (<128) columns of the neighbor tile are needed: fetch one
        # 128-lane block instead of a full duplicate T_tile block.
        halo_spec = pl.BlockSpec((1, C_in0, 128),
                                 lambda b, t: (b, 0, (t + 1) * (T_tile // 128)))
    else:
        halo_spec = pl.BlockSpec((1, C_in0, T_tile), lambda b, t: (b, 0, t + 1))

    def _const_specs(single_buffer):
        # Weights/shifts have a constant block index across the grid: double buffering
        # buys nothing and (at production sizes) wastes ~8 MB of VMEM.
        kw = {}
        if single_buffer:
            kw["pipeline_mode"] = pl.Buffered(1)
        specs = [pl.BlockSpec(w.shape, lambda b, t: (0, 0), **kw) for w in w_list]
        specs.append(pl.BlockSpec(s_packed.shape, lambda b, t: (0, 0), **kw))
        return specs

    def _run(single_buffer_consts):
        return pl.pallas_call(
            kernel,
            out_shape=jax.ShapeDtypeStruct((B, C_out_last, T_full), jnp.float32),
            grid=(B, T_grid),
            in_specs=[x_spec, halo_spec] + _const_specs(single_buffer_consts),
            out_specs=pl.BlockSpec((1, C_out_last, T_tile), lambda b, t: (b, 0, t)),
            compiler_params=pltpu.CompilerParams(
                dimension_semantics=("parallel", "parallel"),
                vmem_limit_bytes=vmem_limit_bytes),
        )(x_pad, x_pad, *w_list, s_packed)

    try:
        out = _run(True)
    except Exception:
        # Fallback for JAX versions without BlockSpec(pipeline_mode=pl.Buffered(1)).
        out = _run(False)

    return out[:, :, :T]


def init_postnet_params(key, n_convolutions, n_mel_channels, embedding_dim,
                        kernel_size):
    """Deterministic synthetic parameters (shapes match the PyTorch module)."""
    in_chs = [n_mel_channels] + [embedding_dim] * (n_convolutions - 1)
    out_chs = [embedding_dim] * (n_convolutions - 1) + [n_mel_channels]
    params = []
    for c_in, c_out in zip(in_chs, out_chs):
        key, k_w, k_b, k_g, k_be = jax.random.split(key, 5)
        w = jax.random.normal(k_w, (c_out, c_in, kernel_size), jnp.float32) * 0.1
        b = jax.random.normal(k_b, (c_out,), jnp.float32) * 0.1
        gamma = 1.0 + 0.1 * jax.random.normal(k_g, (c_out,), jnp.float32)
        beta = 0.1 * jax.random.normal(k_be, (c_out,), jnp.float32)
        params.append(dict(w=w, b=b, gamma=gamma, beta=beta,
                           mean=jnp.zeros((c_out,), jnp.float32),
                           var=jnp.ones((c_out,), jnp.float32)))
    return params


def _reference_forward_f32(x, params, eps=1e-5):
    """Pure-f32 JAX reference (exact PyTorch eval-mode semantics)."""
    n = len(params)
    y = x
    for i, p in enumerate(params):
        K = p["w"].shape[-1]
        y = lax.conv_general_dilated(
            y, p["w"], window_strides=(1,), padding=[((K - 1) // 2,) * 2],
            dimension_numbers=("NCH", "OIH", "NCH"))
        y = y + p["b"][None, :, None]
        scale = p["gamma"] / jnp.sqrt(p["var"] + eps)
        y = (y - p["mean"][None, :, None]) * scale[None, :, None] + p["beta"][None, :, None]
        if i < n - 1:
            y = jnp.tanh(y)
    return y


def _reference_forward_bf16(x, params, eps=1e-5):
    """Reference matching the kernel numerics (bf16 matmul operands, f32 accumulation)."""
    n = len(params)
    y = x.astype(jnp.float32)
    for i, p in enumerate(params):
        K = p["w"].shape[-1]
        scale = p["gamma"] / jnp.sqrt(p["var"] + eps)
        w16 = (p["w"] * scale[:, None, None]).astype(jnp.bfloat16)
        shift = (p["b"] - p["mean"]) * scale + p["beta"]
        y = lax.conv_general_dilated(
            y.astype(jnp.bfloat16), w16, window_strides=(1,),
            padding=[((K - 1) // 2,) * 2],
            dimension_numbers=("NCH", "OIH", "NCH"),
            preferred_element_type=jnp.float32)
        y = y + shift[None, :, None]
        if i < n - 1:
            y = jnp.tanh(y)
    return y


if __name__ == "__main__":
    n_convolutions = 3
    n_mel_channels = 8
    embedding_dim = 16
    kernel_size = 5
    B, T = 2, 320  # T not a multiple of the tile -> exercises halo + edge masking

    key = jax.random.PRNGKey(0)
    key_x, key_p = jax.random.split(key)
    x = jax.random.normal(key_x, (B, n_mel_channels, T), jnp.float32)
    params = init_postnet_params(key_p, n_convolutions, n_mel_channels,
                                 embedding_dim, kernel_size)

    out = jax.block_until_ready(postnet_forward(x, params, t_tile=256))
    assert out.shape == (B, n_mel_channels, T)

    ref16 = jax.block_until_ready(_reference_forward_bf16(x, params))
    ref32 = jax.block_until_ready(_reference_forward_f32(x, params))
    assert jnp.allclose(out, ref16, atol=5e-3, rtol=5e-3)   # same-math check (bf16 MXU)
    assert jnp.allclose(out, ref32, atol=1e-1, rtol=1e-1)   # loose semantic sanity check

    print("KERNEL_OK")
</pallas_src>

<mosaic_0001>
module attributes {stable_mosaic.version = 11 : i64} {
  func.func @kernel(%arg0: i32, %arg1: i32, %arg2: memref<1x8x256xbf16, #tpu.memory_space<vmem>>, %arg3: memref<1x8x128xbf16, #tpu.memory_space<vmem>>, %arg4: memref<16x40xbf16, #tpu.memory_space<vmem>>, %arg5: memref<80x16xbf16, #tpu.memory_space<vmem>>, %arg6: memref<40x16xbf16, #tpu.memory_space<vmem>>, %arg7: memref<16x3xf32, #tpu.memory_space<vmem>>, %arg8: memref<1x8x256xf32, #tpu.memory_space<vmem>>) attributes {dimension_semantics = [#tpu.dimension_semantics<parallel>, #tpu.dimension_semantics<parallel>], iteration_bounds = array<i64: 2, 2>, scalar_prefetch = 0 : i64, scratch_operands = 0 : i64, tpu.core_type = #tpu.core_type<tc>, window_params = [{transform_indices = @transform_0, window_bounds = array<i64: 1, 8, 256>}, {transform_indices = @transform_1, window_bounds = array<i64: 1, 8, 128>}, {pipeline_mode = #tpu.pipeline_mode<synchronous>, transform_indices = @transform_2, window_bounds = array<i64: 16, 40>}, {pipeline_mode = #tpu.pipeline_mode<synchronous>, transform_indices = @transform_3, window_bounds = array<i64: 80, 16>}, {pipeline_mode = #tpu.pipeline_mode<synchronous>, transform_indices = @transform_4, window_bounds = array<i64: 40, 16>}, {pipeline_mode = #tpu.pipeline_mode<synchronous>, transform_indices = @transform_5, window_bounds = array<i64: 16, 3>}, {transform_indices = @transform_6, window_bounds = array<i64: 1, 8, 256>}]} {
    %c256_i32 = arith.constant 256 : i32
    %0 = arith.muli %arg1, %c256_i32 : i32
    %c6_i32 = arith.constant 6 : i32
    %1 = arith.subi %0, %c6_i32 : i32
    %c0 = arith.constant 0 : index
    %c0_0 = arith.constant 0 : index
    %c0_1 = arith.constant 0 : index
    %2 = vector.load %arg2[%c0, %c0_0, %c0_1] : memref<1x8x256xbf16, #tpu.memory_space<vmem>>, vector<1x8x256xbf16>
    %3 = vector.shape_cast %2 : vector<1x8x256xbf16> to vector<8x256xbf16>
    %c0_2 = arith.constant 0 : index
    %c0_3 = arith.constant 0 : index
    %c0_4 = arith.constant 0 : index
    %4 = vector.load %arg3[%c0_2, %c0_3, %c0_4] : memref<1x8x128xbf16, #tpu.memory_space<vmem>>, vector<1x8x128xbf16>
    %5 = vector.shape_cast %4 : vector<1x8x128xbf16> to vector<8x128xbf16>
    %6 = vector.extract_strided_slice %5 {offsets = [0, 0], sizes = [8, 12], strides = [1, 1]} : vector<8x128xbf16> to vector<8x12xbf16>
    %7 = tpu.concatenate %3, %6 in 1 : vector<8x256xbf16>, vector<8x12xbf16> -> vector<8x268xbf16>
    %8 = tpu.iota {dimensions = array<i32: 1>} : vector<1x268xi32>
    %c0_5 = arith.constant 0 : index
    %c0_6 = arith.constant 0 : index
    %9 = vector.load %arg7[%c0_5, %c0_6] : memref<16x3xf32, #tpu.memory_space<vmem>>, vector<16x3xf32>
    %10 = vector.extract_strided_slice %7 {offsets = [0, 0], sizes = [8, 264], strides = [1, 1]} : vector<8x268xbf16> to vector<8x264xbf16>
    %11 = vector.extract_strided_slice %7 {offsets = [0, 1], sizes = [8, 264], strides = [1, 1]} : vector<8x268xbf16> to vector<8x264xbf16>
    %12 = vector.extract_strided_slice %7 {offsets = [0, 2], sizes = [8, 264], strides = [1, 1]} : vector<8x268xbf16> to vector<8x264xbf16>
    %13 = vector.extract_strided_slice %7 {offsets = [0, 3], sizes = [8, 264], strides = [1, 1]} : vector<8x268xbf16> to vector<8x264xbf16>
    %14 = vector.extract_strided_slice %7 {offsets = [0, 4], sizes = [8, 264], strides = [1, 1]} : vector<8x268xbf16> to vector<8x264xbf16>
    %15 = tpu.concatenate %10, %11, %12, %13, %14 in 0 : vector<8x264xbf16>, vector<8x264xbf16>, vector<8x264xbf16>, vector<8x264xbf16>, vector<8x264xbf16> -> vector<40x264xbf16>
    %c0_7 = arith.constant 0 : index
    %c0_8 = arith.constant 0 : index
    %16 = vector.load %arg4[%c0_7, %c0_8] : memref<16x40xbf16, #tpu.memory_space<vmem>>, vector<16x40xbf16>
    %cst = arith.constant dense<0.000000e+00> : vector<16x264xf32>
    %17 = tpu.matmul %16, %15, %cst {dimension_numbers = #tpu.dot_dimension_numbers<[1], [0], [0], [1], [0, 0, 1, 1], [], []>} : vector<16x40xbf16>, vector<40x264xbf16>, vector<16x264xf32> -> vector<16x264xf32>
    %18 = vector.extract_strided_slice %9 {offsets = [0, 0], sizes = [16, 1], strides = [1, 1]} : vector<16x3xf32> to vector<16x1xf32>
    %19 = vector.broadcast %18 : vector<16x1xf32> to vector<16x264xf32>
    %20 = arith.addf %17, %19 : vector<16x264xf32>
    %21 = math.tanh %20 : vector<16x264xf32>
    %c2_i32 = arith.constant 2 : i32
    %22 = arith.addi %1, %c2_i32 : i32
    %23 = vector.extract_strided_slice %8 {offsets = [0, 0], sizes = [1, 264], strides = [1, 1]} : vector<1x268xi32> to vector<1x264xi32>
    %24 = vector.broadcast %22 : i32 to vector<1x264xi32>
    %25 = arith.addi %24, %23 : vector<1x264xi32>
    %c0_i32 = arith.constant 0 : i32
    %26 = vector.broadcast %c0_i32 : i32 to vector<1x264xi32>
    %27 = arith.cmpi sge, %25, %26 : vector<1x264xi32>
    %c320_i32 = arith.constant 320 : i32
    %28 = vector.broadcast %c320_i32 : i32 to vector<1x264xi32>
    %29 = arith.cmpi slt, %25, %28 : vector<1x264xi32>
    %30 = arith.andi %27, %29 : vector<1x264xi1>
    %cst_9 = arith.constant 0.000000e+00 : f32
    %31 = vector.shape_cast %30 : vector<1x264xi1> to vector<1x264xi1>
    %32 = vector.broadcast %31 : vector<1x264xi1> to vector<16x264xi1>
    %33 = vector.broadcast %cst_9 : f32 to vector<16x264xf32>
    %34 = arith.select %32, %21, %33 : vector<16x264xi1>, vector<16x264xf32>
    %35 = arith.truncf %34 : vector<16x264xf32> to vector<16x264xbf16>
    %c0_10 = arith.constant 0 : index
    %c0_11 = arith.constant 0 : index
    %36 = vector.load %arg5[%c0_10, %c0_11] : memref<80x16xbf16, #tpu.memory_space<vmem>>, vector<16x16xbf16>
    %37 = vector.extract_strided_slice %35 {offsets = [0, 0], sizes = [16, 260], strides = [1, 1]} : vector<16x264xbf16> to vector<16x260xbf16>
    %cst_12 = arith.constant dense<0.000000e+00> : vector<16x260xf32>
    %38 = tpu.matmul %36, %37, %cst_12 {dimension_numbers = #tpu.dot_dimension_numbers<[1], [0], [0], [1], [0, 0, 1, 1], [], []>} : vector<16x16xbf16>, vector<16x260xbf16>, vector<16x260xf32> -> vector<16x260xf32>
    %c16 = arith.constant 16 : index
    %c0_13 = arith.constant 0 : index
    %39 = vector.load %arg5[%c16, %c0_13] : memref<80x16xbf16, #tpu.memory_space<vmem>>, vector<16x16xbf16>
    %40 = vector.extract_strided_slice %35 {offsets = [0, 1], sizes = [16, 260], strides = [1, 1]} : vector<16x264xbf16> to vector<16x260xbf16>
    %cst_14 = arith.constant dense<0.000000e+00> : vector<16x260xf32>
    %41 = tpu.matmul %39, %40, %cst_14 {dimension_numbers = #tpu.dot_dimension_numbers<[1], [0], [0], [1], [0, 0, 1, 1], [], []>} : vector<16x16xbf16>, vector<16x260xbf16>, vector<16x260xf32> -> vector<16x260xf32>
    %42 = arith.addf %38, %41 : vector<16x260xf32>
    %c32 = arith.constant 32 : index
    %c0_15 = arith.constant 0 : index
    %43 = vector.load %arg5[%c32, %c0_15] : memref<80x16xbf16, #tpu.memory_space<vmem>>, vector<16x16xbf16>
    %44 = vector.extract_strided_slice %35 {offsets = [0, 2], sizes = [16, 260], strides = [1, 1]} : vector<16x264xbf16> to vector<16x260xbf16>
    %cst_16 = arith.constant dense<0.000000e+00> : vector<16x260xf32>
    %45 = tpu.matmul %43, %44, %cst_16 {dimension_numbers = #tpu.dot_dimension_numbers<[1], [0], [0], [1], [0, 0, 1, 1], [], []>} : vector<16x16xbf16>, vector<16x260xbf16>, vector<16x260xf32> -> vector<16x260xf32>
    %46 = arith.addf %42, %45 : vector<16x260xf32>
    %c48 = arith.constant 48 : index
    %c0_17 = arith.constant 0 : index
    %47 = vector.load %arg5[%c48, %c0_17] : memref<80x16xbf16, #tpu.memory_space<vmem>>, vector<16x16xbf16>
    %48 = vector.extract_strided_slice %35 {offsets = [0, 3], sizes = [16, 260], strides = [1, 1]} : vector<16x264xbf16> to vector<16x260xbf16>
    %cst_18 = arith.constant dense<0.000000e+00> : vector<16x260xf32>
    %49 = tpu.matmul %47, %48, %cst_18 {dimension_numbers = #tpu.dot_dimension_numbers<[1], [0], [0], [1], [0, 0, 1, 1], [], []>} : vector<16x16xbf16>, vector<16x260xbf16>, vector<16x260xf32> -> vector<16x260xf32>
    %50 = arith.addf %46, %49 : vector<16x260xf32>
    %c64 = arith.constant 64 : index
    %c0_19 = arith.constant 0 : index
    %51 = vector.load %arg5[%c64, %c0_19] : memref<80x16xbf16, #tpu.memory_space<vmem>>, vector<16x16xbf16>
    %52 = vector.extract_strided_slice %35 {offsets = [0, 4], sizes = [16, 260], strides = [1, 1]} : vector<16x264xbf16> to vector<16x260xbf16>
    %cst_20 = arith.constant dense<0.000000e+00> : vector<16x260xf32>
    %53 = tpu.matmul %51, %52, %cst_20 {dimension_numbers = #tpu.dot_dimension_numbers<[1], [0], [0], [1], [0, 0, 1, 1], [], []>} : vector<16x16xbf16>, vector<16x260xbf16>, vector<16x260xf32> -> vector<16x260xf32>
    %54 = arith.addf %50, %53 : vector<16x260xf32>
    %55 = vector.extract_strided_slice %9 {offsets = [0, 1], sizes = [16, 1], strides = [1, 1]} : vector<16x3xf32> to vector<16x1xf32>
    %56 = vector.broadcast %55 : vector<16x1xf32> to vector<16x260xf32>
    %57 = arith.addf %54, %56 : vector<16x260xf32>
    %58 = math.tanh %57 : vector<16x260xf32>
    %c4_i32 = arith.constant 4 : i32
    %59 = arith.addi %1, %c4_i32 : i32
    %60 = vector.extract_strided_slice %8 {offsets = [0, 0], sizes = [1, 260], strides = [1, 1]} : vector<1x268xi32> to vector<1x260xi32>
    %61 = vector.broadcast %59 : i32 to vector<1x260xi32>
    %62 = arith.addi %61, %60 : vector<1x260xi32>
    %c0_i32_21 = arith.constant 0 : i32
    %63 = vector.broadcast %c0_i32_21 : i32 to vector<1x260xi32>
    %64 = arith.cmpi sge, %62, %63 : vector<1x260xi32>
    %c320_i32_22 = arith.constant 320 : i32
    %65 = vector.broadcast %c320_i32_22 : i32 to vector<1x260xi32>
    %66 = arith.cmpi slt, %62, %65 : vector<1x260xi32>
    %67 = arith.andi %64, %66 : vector<1x260xi1>
    %cst_23 = arith.constant 0.000000e+00 : f32
    %68 = vector.shape_cast %67 : vector<1x260xi1> to vector<1x260xi1>
    %69 = vector.broadcast %68 : vector<1x260xi1> to vector<16x260xi1>
    %70 = vector.broadcast %cst_23 : f32 to vector<16x260xf32>
    %71 = arith.select %69, %58, %70 : vector<16x260xi1>, vector<16x260xf32>
    %72 = arith.truncf %71 : vector<16x260xf32> to vector<16x260xbf16>
    %c0_24 = arith.constant 0 : index
    %c0_25 = arith.constant 0 : index
    %73 = vector.load %arg6[%c0_24, %c0_25] : memref<40x16xbf16, #tpu.memory_space<vmem>>, vector<8x16xbf16>
    %74 = vector.extract_strided_slice %72 {offsets = [0, 0], sizes = [16, 256], strides = [1, 1]} : vector<16x260xbf16> to vector<16x256xbf16>
    %cst_26 = arith.constant dense<0.000000e+00> : vector<8x256xf32>
    %75 = tpu.matmul %73, %74, %cst_26 {dimension_numbers = #tpu.dot_dimension_numbers<[1], [0], [0], [1], [0, 0, 1, 1], [], []>} : vector<8x16xbf16>, vector<16x256xbf16>, vector<8x256xf32> -> vector<8x256xf32>
    %c8 = arith.constant 8 : index
    %c0_27 = arith.constant 0 : index
    %76 = vector.load %arg6[%c8, %c0_27] : memref<40x16xbf16, #tpu.memory_space<vmem>>, vector<8x16xbf16>
    %77 = vector.extract_strided_slice %72 {offsets = [0, 1], sizes = [16, 256], strides = [1, 1]} : vector<16x260xbf16> to vector<16x256xbf16>
    %cst_28 = arith.constant dense<0.000000e+00> : vector<8x256xf32>
    %78 = tpu.matmul %76, %77, %cst_28 {dimension_numbers = #tpu.dot_dimension_numbers<[1], [0], [0], [1], [0, 0, 1, 1], [], []>} : vector<8x16xbf16>, vector<16x256xbf16>, vector<8x256xf32> -> vector<8x256xf32>
    %79 = arith.addf %75, %78 : vector<8x256xf32>
    %c16_29 = arith.constant 16 : index
    %c0_30 = arith.constant 0 : index
    %80 = vector.load %arg6[%c16_29, %c0_30] : memref<40x16xbf16, #tpu.memory_space<vmem>>, vector<8x16xbf16>
    %81 = vector.extract_strided_slice %72 {offsets = [0, 2], sizes = [16, 256], strides = [1, 1]} : vector<16x260xbf16> to vector<16x256xbf16>
    %cst_31 = arith.constant dense<0.000000e+00> : vector<8x256xf32>
    %82 = tpu.matmul %80, %81, %cst_31 {dimension_numbers = #tpu.dot_dimension_numbers<[1], [0], [0], [1], [0, 0, 1, 1], [], []>} : vector<8x16xbf16>, vector<16x256xbf16>, vector<8x256xf32> -> vector<8x256xf32>
    %83 = arith.addf %79, %82 : vector<8x256xf32>
    %c24 = arith.constant 24 : index
    %c0_32 = arith.constant 0 : index
    %84 = vector.load %arg6[%c24, %c0_32] : memref<40x16xbf16, #tpu.memory_space<vmem>>, vector<8x16xbf16>
    %85 = vector.extract_strided_slice %72 {offsets = [0, 3], sizes = [16, 256], strides = [1, 1]} : vector<16x260xbf16> to vector<16x256xbf16>
    %cst_33 = arith.constant dense<0.000000e+00> : vector<8x256xf32>
    %86 = tpu.matmul %84, %85, %cst_33 {dimension_numbers = #tpu.dot_dimension_numbers<[1], [0], [0], [1], [0, 0, 1, 1], [], []>} : vector<8x16xbf16>, vector<16x256xbf16>, vector<8x256xf32> -> vector<8x256xf32>
    %87 = arith.addf %83, %86 : vector<8x256xf32>
    %c32_34 = arith.constant 32 : index
    %c0_35 = arith.constant 0 : index
    %88 = vector.load %arg6[%c32_34, %c0_35] : memref<40x16xbf16, #tpu.memory_space<vmem>>, vector<8x16xbf16>
    %89 = vector.extract_strided_slice %72 {offsets = [0, 4], sizes = [16, 256], strides = [1, 1]} : vector<16x260xbf16> to vector<16x256xbf16>
    %cst_36 = arith.constant dense<0.000000e+00> : vector<8x256xf32>
    %90 = tpu.matmul %88, %89, %cst_36 {dimension_numbers = #tpu.dot_dimension_numbers<[1], [0], [0], [1], [0, 0, 1, 1], [], []>} : vector<8x16xbf16>, vector<16x256xbf16>, vector<8x256xf32> -> vector<8x256xf32>
    %91 = arith.addf %87, %90 : vector<8x256xf32>
    %92 = vector.extract_strided_slice %9 {offsets = [0, 2], sizes = [8, 1], strides = [1, 1]} : vector<16x3xf32> to vector<8x1xf32>
    %93 = vector.broadcast %92 : vector<8x1xf32> to vector<8x256xf32>
    %94 = arith.addf %91, %93 : vector<8x256xf32>
    %c0_37 = arith.constant 0 : index
    %c0_38 = arith.constant 0 : index
    %c0_39 = arith.constant 0 : index
    %95 = vector.load %arg8[%c0_37, %c0_38, %c0_39] : memref<1x8x256xf32, #tpu.memory_space<vmem>>, vector<1x8x256xf32>
    %96 = vector.shape_cast %95 : vector<1x8x256xf32> to vector<8x256xf32>
    %97 = vector.shape_cast %94 : vector<8x256xf32> to vector<1x8x256xf32>
    tpu.vector_store %arg8[%c0_37, %c0_38, %c0_39], %97 {strides = array<i32>} : memref<1x8x256xf32, #tpu.memory_space<vmem>>, vector<1x8x256xf32>,
    return
  }
  func.func @transform_0(%arg0: i32, %arg1: i32) -> (i32, i32, i32) {
    %c0_i32 = arith.constant 0 : i32
    %c0_i32_0 = arith.constant 0 : i32
    return %arg0, %c0_i32, %arg1 : i32, i32, i32
  }
  func.func @transform_1(%arg0: i32, %arg1: i32) -> (i32, i32, i32) {
    %c1_i32 = arith.constant 1 : i32
    %0 = arith.addi %arg1, %c1_i32 : i32
    %c2_i32 = arith.constant 2 : i32
    %1 = arith.muli %0, %c2_i32 : i32
    %c0_i32 = arith.constant 0 : i32
    %c0_i32_0 = arith.constant 0 : i32
    return %arg0, %c0_i32, %1 : i32, i32, i32
  }
  func.func @transform_2(%arg0: i32, %arg1: i32) -> (i32, i32) {
    %c0_i32 = arith.constant 0 : i32
    %c0_i32_0 = arith.constant 0 : i32
    %c0_i32_1 = arith.constant 0 : i32
    return %c0_i32, %c0_i32_0 : i32, i32
  }
  func.func @transform_3(%arg0: i32, %arg1: i32) -> (i32, i32) {
    %c0_i32 = arith.constant 0 : i32
    %c0_i32_0 = arith.constant 0 : i32
    %c0_i32_1 = arith.constant 0 : i32
    return %c0_i32, %c0_i32_0 : i32, i32
  }
  func.func @transform_4(%arg0: i32, %arg1: i32) -> (i32, i32) {
    %c0_i32 = arith.constant 0 : i32
    %c0_i32_0 = arith.constant 0 : i32
    %c0_i32_1 = arith.constant 0 : i32
    return %c0_i32, %c0_i32_0 : i32, i32
  }
  func.func @transform_5(%arg0: i32, %arg1: i32) -> (i32, i32) {
    %c0_i32 = arith.constant 0 : i32
    %c0_i32_0 = arith.constant 0 : i32
    %c0_i32_1 = arith.constant 0 : i32
    return %c0_i32, %c0_i32_0 : i32, i32
  }
  func.func @transform_6(%arg0: i32, %arg1: i32) -> (i32, i32, i32) {
    %c0_i32 = arith.constant 0 : i32
    %c0_i32_0 = arith.constant 0 : i32
    return %arg0, %c0_i32, %arg1 : i32, i32, i32
  }
}

module attributes {stable_mosaic.version = 11 : i64} {
  func.func @kernel(%arg0: i32, %arg1: i32, %arg2: memref<1x8x256xbf16, #tpu.memory_space<vmem>>, %arg3: memref<1x8x128xbf16, #tpu.memory_space<vmem>>, %arg4: memref<16x40xbf16, #tpu.memory_space<vmem>>, %arg5: memref<80x16xbf16, #tpu.memory_space<vmem>>, %arg6: memref<40x16xbf16, #tpu.memory_space<vmem>>, %arg7: memref<16x3xf32, #tpu.memory_space<vmem>>, %arg8: memref<1x8x256xf32, #tpu.memory_space<vmem>>) attributes {dimension_semantics = [#tpu.dimension_semantics<parallel>, #tpu.dimension_semantics<parallel>], iteration_bounds = array<i64: 2, 2>, scalar_prefetch = 0 : i64, scratch_operands = 0 : i64, tpu.core_type = #tpu.core_type<tc>, window_params = [{transform_indices = @transform_0, window_bounds = array<i64: 1, 8, 256>}, {transform_indices = @transform_1, window_bounds = array<i64: 1, 8, 128>}, {pipeline_mode = #tpu.pipeline_mode<synchronous>, transform_indices = @transform_2, window_bounds = array<i64: 16, 40>}, {pipeline_mode = #tpu.pipeline_mode<synchronous>, transform_indices = @transform_3, window_bounds = array<i64: 80, 16>}, {pipeline_mode = #tpu.pipeline_mode<synchronous>, transform_indices = @transform_4, window_bounds = array<i64: 40, 16>}, {pipeline_mode = #tpu.pipeline_mode<synchronous>, transform_indices = @transform_5, window_bounds = array<i64: 16, 3>}, {transform_indices = @transform_6, window_bounds = array<i64: 1, 8, 256>}]} {
    %c256_i32 = arith.constant 256 : i32
    %0 = arith.muli %arg1, %c256_i32 : i32
    %c6_i32 = arith.constant 6 : i32
    %1 = arith.subi %0, %c6_i32 : i32
    %c0 = arith.constant 0 : index
    %c0_0 = arith.constant 0 : index
    %c0_1 = arith.constant 0 : index
    %2 = vector.load %arg2[%c0, %c0_0, %c0_1] : memref<1x8x256xbf16, #tpu.memory_space<vmem>>, vector<1x8x256xbf16>
    %3 = vector.shape_cast %2 : vector<1x8x256xbf16> to vector<8x256xbf16>
    %c0_2 = arith.constant 0 : index
    %c0_3 = arith.constant 0 : index
    %c0_4 = arith.constant 0 : index
    %4 = vector.load %arg3[%c0_2, %c0_3, %c0_4] : memref<1x8x128xbf16, #tpu.memory_space<vmem>>, vector<1x8x128xbf16>
    %5 = vector.shape_cast %4 : vector<1x8x128xbf16> to vector<8x128xbf16>
    %6 = vector.extract_strided_slice %5 {offsets = [0, 0], sizes = [8, 12], strides = [1, 1]} : vector<8x128xbf16> to vector<8x12xbf16>
    %7 = tpu.concatenate %3, %6 in 1 : vector<8x256xbf16>, vector<8x12xbf16> -> vector<8x268xbf16>
    %8 = tpu.iota {dimensions = array<i32: 1>} : vector<1x268xi32>
    %c0_5 = arith.constant 0 : index
    %c0_6 = arith.constant 0 : index
    %9 = vector.load %arg7[%c0_5, %c0_6] : memref<16x3xf32, #tpu.memory_space<vmem>>, vector<16x3xf32>
    %10 = vector.extract_strided_slice %7 {offsets = [0, 0], sizes = [8, 264], strides = [1, 1]} : vector<8x268xbf16> to vector<8x264xbf16>
    %11 = vector.extract_strided_slice %7 {offsets = [0, 1], sizes = [8, 264], strides = [1, 1]} : vector<8x268xbf16> to vector<8x264xbf16>
    %12 = vector.extract_strided_slice %7 {offsets = [0, 2], sizes = [8, 264], strides = [1, 1]} : vector<8x268xbf16> to vector<8x264xbf16>
    %13 = vector.extract_strided_slice %7 {offsets = [0, 3], sizes = [8, 264], strides = [1, 1]} : vector<8x268xbf16> to vector<8x264xbf16>
    %14 = vector.extract_strided_slice %7 {offsets = [0, 4], sizes = [8, 264], strides = [1, 1]} : vector<8x268xbf16> to vector<8x264xbf16>
    %15 = tpu.concatenate %10, %11, %12, %13, %14 in 0 : vector<8x264xbf16>, vector<8x264xbf16>, vector<8x264xbf16>, vector<8x264xbf16>, vector<8x264xbf16> -> vector<40x264xbf16>
    %c0_7 = arith.constant 0 : index
    %c0_8 = arith.constant 0 : index
    %16 = vector.load %arg4[%c0_7, %c0_8] : memref<16x40xbf16, #tpu.memory_space<vmem>>, vector<16x40xbf16>
    %cst = arith.constant dense<0.000000e+00> : vector<16x264xf32>
    %17 = tpu.matmul %16, %15, %cst {dimension_numbers = #tpu.dot_dimension_numbers<[1], [0], [0], [1], [0, 0, 1, 1], [], []>} : vector<16x40xbf16>, vector<40x264xbf16>, vector<16x264xf32> -> vector<16x264xf32>
    %18 = vector.extract_strided_slice %9 {offsets = [0, 0], sizes = [16, 1], strides = [1, 1]} : vector<16x3xf32> to vector<16x1xf32>
    %19 = vector.broadcast %18 : vector<16x1xf32> to vector<16x264xf32>
    %20 = arith.addf %17, %19 : vector<16x264xf32>
    %21 = math.tanh %20 : vector<16x264xf32>
    %c2_i32 = arith.constant 2 : i32
    %22 = arith.addi %1, %c2_i32 : i32
    %23 = vector.extract_strided_slice %8 {offsets = [0, 0], sizes = [1, 264], strides = [1, 1]} : vector<1x268xi32> to vector<1x264xi32>
    %24 = vector.broadcast %22 : i32 to vector<1x264xi32>
    %25 = arith.addi %24, %23 : vector<1x264xi32>
    %c0_i32 = arith.constant 0 : i32
    %26 = vector.broadcast %c0_i32 : i32 to vector<1x264xi32>
    %27 = arith.cmpi sge, %25, %26 : vector<1x264xi32>
    %c320_i32 = arith.constant 320 : i32
    %28 = vector.broadcast %c320_i32 : i32 to vector<1x264xi32>
    %29 = arith.cmpi slt, %25, %28 : vector<1x264xi32>
    %30 = arith.andi %27, %29 : vector<1x264xi1>
    %cst_9 = arith.constant 0.000000e+00 : f32
    %31 = vector.shape_cast %30 : vector<1x264xi1> to vector<1x264xi1>
    %32 = vector.broadcast %31 : vector<1x264xi1> to vector<16x264xi1>
    %33 = vector.broadcast %cst_9 : f32 to vector<16x264xf32>
    %34 = arith.select %32, %21, %33 : vector<16x264xi1>, vector<16x264xf32>
    %35 = arith.truncf %34 : vector<16x264xf32> to vector<16x264xbf16>
    %c0_10 = arith.constant 0 : index
    %c0_11 = arith.constant 0 : index
    %36 = vector.load %arg5[%c0_10, %c0_11] : memref<80x16xbf16, #tpu.memory_space<vmem>>, vector<16x16xbf16>
    %37 = vector.extract_strided_slice %35 {offsets = [0, 0], sizes = [16, 260], strides = [1, 1]} : vector<16x264xbf16> to vector<16x260xbf16>
    %cst_12 = arith.constant dense<0.000000e+00> : vector<16x260xf32>
    %38 = tpu.matmul %36, %37, %cst_12 {dimension_numbers = #tpu.dot_dimension_numbers<[1], [0], [0], [1], [0, 0, 1, 1], [], []>} : vector<16x16xbf16>, vector<16x260xbf16>, vector<16x260xf32> -> vector<16x260xf32>
    %c16 = arith.constant 16 : index
    %c0_13 = arith.constant 0 : index
    %39 = vector.load %arg5[%c16, %c0_13] : memref<80x16xbf16, #tpu.memory_space<vmem>>, vector<16x16xbf16>
    %40 = vector.extract_strided_slice %35 {offsets = [0, 1], sizes = [16, 260], strides = [1, 1]} : vector<16x264xbf16> to vector<16x260xbf16>
    %cst_14 = arith.constant dense<0.000000e+00> : vector<16x260xf32>
    %41 = tpu.matmul %39, %40, %cst_14 {dimension_numbers = #tpu.dot_dimension_numbers<[1], [0], [0], [1], [0, 0, 1, 1], [], []>} : vector<16x16xbf16>, vector<16x260xbf16>, vector<16x260xf32> -> vector<16x260xf32>
    %42 = arith.addf %38, %41 : vector<16x260xf32>
    %c32 = arith.constant 32 : index
    %c0_15 = arith.constant 0 : index
    %43 = vector.load %arg5[%c32, %c0_15] : memref<80x16xbf16, #tpu.memory_space<vmem>>, vector<16x16xbf16>
    %44 = vector.extract_strided_slice %35 {offsets = [0, 2], sizes = [16, 260], strides = [1, 1]} : vector<16x264xbf16> to vector<16x260xbf16>
    %cst_16 = arith.constant dense<0.000000e+00> : vector<16x260xf32>
    %45 = tpu.matmul %43, %44, %cst_16 {dimension_numbers = #tpu.dot_dimension_numbers<[1], [0], [0], [1], [0, 0, 1, 1], [], []>} : vector<16x16xbf16>, vector<16x260xbf16>, vector<16x260xf32> -> vector<16x260xf32>
    %46 = arith.addf %42, %45 : vector<16x260xf32>
    %c48 = arith.constant 48 : index
    %c0_17 = arith.constant 0 : index
    %47 = vector.load %arg5[%c48, %c0_17] : memref<80x16xbf16, #tpu.memory_space<vmem>>, vector<16x16xbf16>
    %48 = vector.extract_strided_slice %35 {offsets = [0, 3], sizes = [16, 260], strides = [1, 1]} : vector<16x264xbf16> to vector<16x260xbf16>
    %cst_18 = arith.constant dense<0.000000e+00> : vector<16x260xf32>
    %49 = tpu.matmul %47, %48, %cst_18 {dimension_numbers = #tpu.dot_dimension_numbers<[1], [0], [0], [1], [0, 0, 1, 1], [], []>} : vector<16x16xbf16>, vector<16x260xbf16>, vector<16x260xf32> -> vector<16x260xf32>
    %50 = arith.addf %46, %49 : vector<16x260xf32>
    %c64 = arith.constant 64 : index
    %c0_19 = arith.constant 0 : index
    %51 = vector.load %arg5[%c64, %c0_19] : memref<80x16xbf16, #tpu.memory_space<vmem>>, vector<16x16xbf16>
    %52 = vector.extract_strided_slice %35 {offsets = [0, 4], sizes = [16, 260], strides = [1, 1]} : vector<16x264xbf16> to vector<16x260xbf16>
    %cst_20 = arith.constant dense<0.000000e+00> : vector<16x260xf32>
    %53 = tpu.matmul %51, %52, %cst_20 {dimension_numbers = #tpu.dot_dimension_numbers<[1], [0], [0], [1], [0, 0, 1, 1], [], []>} : vector<16x16xbf16>, vector<16x260xbf16>, vector<16x260xf32> -> vector<16x260xf32>
    %54 = arith.addf %50, %53 : vector<16x260xf32>
    %55 = vector.extract_strided_slice %9 {offsets = [0, 1], sizes = [16, 1], strides = [1, 1]} : vector<16x3xf32> to vector<16x1xf32>
    %56 = vector.broadcast %55 : vector<16x1xf32> to vector<16x260xf32>
    %57 = arith.addf %54, %56 : vector<16x260xf32>
    %58 = math.tanh %57 : vector<16x260xf32>
    %c4_i32 = arith.constant 4 : i32
    %59 = arith.addi %1, %c4_i32 : i32
    %60 = vector.extract_strided_slice %8 {offsets = [0, 0], sizes = [1, 260], strides = [1, 1]} : vector<1x268xi32> to vector<1x260xi32>
    %61 = vector.broadcast %59 : i32 to vector<1x260xi32>
    %62 = arith.addi %61, %60 : vector<1x260xi32>
    %c0_i32_21 = arith.constant 0 : i32
    %63 = vector.broadcast %c0_i32_21 : i32 to vector<1x260xi32>
    %64 = arith.cmpi sge, %62, %63 : vector<1x260xi32>
    %c320_i32_22 = arith.constant 320 : i32
    %65 = vector.broadcast %c320_i32_22 : i32 to vector<1x260xi32>
    %66 = arith.cmpi slt, %62, %65 : vector<1x260xi32>
    %67 = arith.andi %64, %66 : vector<1x260xi1>
    %cst_23 = arith.constant 0.000000e+00 : f32
    %68 = vector.shape_cast %67 : vector<1x260xi1> to vector<1x260xi1>
    %69 = vector.broadcast %68 : vector<1x260xi1> to vector<16x260xi1>
    %70 = vector.broadcast %cst_23 : f32 to vector<16x260xf32>
    %71 = arith.select %69, %58, %70 : vector<16x260xi1>, vector<16x260xf32>
    %72 = arith.truncf %71 : vector<16x260xf32> to vector<16x260xbf16>
    %c0_24 = arith.constant 0 : index
    %c0_25 = arith.constant 0 : index
    %73 = vector.load %arg6[%c0_24, %c0_25] : memref<40x16xbf16, #tpu.memory_space<vmem>>, vector<8x16xbf16>
    %74 = vector.extract_strided_slice %72 {offsets = [0, 0], sizes = [16, 256], strides = [1, 1]} : vector<16x260xbf16> to vector<16x256xbf16>
    %cst_26 = arith.constant dense<0.000000e+00> : vector<8x256xf32>
    %75 = tpu.matmul %73, %74, %cst_26 {dimension_numbers = #tpu.dot_dimension_numbers<[1], [0], [0], [1], [0, 0, 1, 1], [], []>} : vector<8x16xbf16>, vector<16x256xbf16>, vector<8x256xf32> -> vector<8x256xf32>
    %c8 = arith.constant 8 : index
    %c0_27 = arith.constant 0 : index
    %76 = vector.load %arg6[%c8, %c0_27] : memref<40x16xbf16, #tpu.memory_space<vmem>>, vector<8x16xbf16>
    %77 = vector.extract_strided_slice %72 {offsets = [0, 1], sizes = [16, 256], strides = [1, 1]} : vector<16x260xbf16> to vector<16x256xbf16>
    %cst_28 = arith.constant dense<0.000000e+00> : vector<8x256xf32>
    %78 = tpu.matmul %76, %77, %cst_28 {dimension_numbers = #tpu.dot_dimension_numbers<[1], [0], [0], [1], [0, 0, 1, 1], [], []>} : vector<8x16xbf16>, vector<16x256xbf16>, vector<8x256xf32> -> vector<8x256xf32>
    %79 = arith.addf %75, %78 : vector<8x256xf32>
    %c16_29 = arith.constant 16 : index
    %c0_30 = arith.constant 0 : index
    %80 = vector.load %arg6[%c16_29, %c0_30] : memref<40x16xbf16, #tpu.memory_space<vmem>>, vector<8x16xbf16>
    %81 = vector.extract_strided_slice %72 {offsets = [0, 2], sizes = [16, 256], strides = [1, 1]} : vector<16x260xbf16> to vector<16x256xbf16>
    %cst_31 = arith.constant dense<0.000000e+00> : vector<8x256xf32>
    %82 = tpu.matmul %80, %81, %cst_31 {dimension_numbers = #tpu.dot_dimension_numbers<[1], [0], [0], [1], [0, 0, 1, 1], [], []>} : vector<8x16xbf16>, vector<16x256xbf16>, vector<8x256xf32> -> vector<8x256xf32>
    %83 = arith.addf %79, %82 : vector<8x256xf32>
    %c24 = arith.constant 24 : index
    %c0_32 = arith.constant 0 : index
    %84 = vector.load %arg6[%c24, %c0_32] : memref<40x16xbf16, #tpu.memory_space<vmem>>, vector<8x16xbf16>
    %85 = vector.extract_strided_slice %72 {offsets = [0, 3], sizes = [16, 256], strides = [1, 1]} : vector<16x260xbf16> to vector<16x256xbf16>
    %cst_33 = arith.constant dense<0.000000e+00> : vector<8x256xf32>
    %86 = tpu.matmul %84, %85, %cst_33 {dimension_numbers = #tpu.dot_dimension_numbers<[1], [0], [0], [1], [0, 0, 1, 1], [], []>} : vector<8x16xbf16>, vector<16x256xbf16>, vector<8x256xf32> -> vector<8x256xf32>
    %87 = arith.addf %83, %86 : vector<8x256xf32>
    %c32_34 = arith.constant 32 : index
    %c0_35 = arith.constant 0 : index
    %88 = vector.load %arg6[%c32_34, %c0_35] : memref<40x16xbf16, #tpu.memory_space<vmem>>, vector<8x16xbf16>
    %89 = vector.extract_strided_slice %72 {offsets = [0, 4], sizes = [16, 256], strides = [1, 1]} : vector<16x260xbf16> to vector<16x256xbf16>
    %cst_36 = arith.constant dense<0.000000e+00> : vector<8x256xf32>
    %90 = tpu.matmul %88, %89, %cst_36 {dimension_numbers = #tpu.dot_dimension_numbers<[1], [0], [0], [1], [0, 0, 1, 1], [], []>} : vector<8x16xbf16>, vector<16x256xbf16>, vector<8x256xf32> -> vector<8x256xf32>
    %91 = arith.addf %87, %90 : vector<8x256xf32>
    %92 = vector.extract_strided_slice %9 {offsets = [0, 2], sizes = [8, 1], strides = [1, 1]} : vector<16x3xf32> to vector<8x1xf32>
    %93 = vector.broadcast %92 : vector<8x1xf32> to vector<8x256xf32>
    %94 = arith.addf %91, %93 : vector<8x256xf32>
    %c0_37 = arith.constant 0 : index
    %c0_38 = arith.constant 0 : index
    %c0_39 = arith.constant 0 : index
    %95 = vector.load %arg8[%c0_37, %c0_38, %c0_39] : memref<1x8x256xf32, #tpu.memory_space<vmem>>, vector<1x8x256xf32>
    %96 = vector.shape_cast %95 : vector<1x8x256xf32> to vector<8x256xf32>
    %97 = vector.shape_cast %94 : vector<8x256xf32> to vector<1x8x256xf32>
    tpu.vector_store %arg8[%c0_37, %c0_38, %c0_39], %97 {strides = array<i32>} : memref<1x8x256xf32, #tpu.memory_space<vmem>>, vector<1x8x256xf32>,
    return
  }
  func.func @transform_0(%arg0: i32, %arg1: i32) -> (i32, i32, i32) {
    %c0_i32 = arith.constant 0 : i32
    %c0_i32_0 = arith.constant 0 : i32
    return %arg0, %c0_i32, %arg1 : i32, i32, i32
  }
  func.func @transform_1(%arg0: i32, %arg1: i32) -> (i32, i32, i32) {
    %c1_i32 = arith.constant 1 : i32
    %0 = arith.addi %arg1, %c1_i32 : i32
    %c2_i32 = arith.constant 2 : i32
    %1 = arith.muli %0, %c2_i32 : i32
    %c0_i32 = arith.constant 0 : i32
    %c0_i32_0 = arith.constant 0 : i32
    return %arg0, %c0_i32, %1 : i32, i32, i32
  }
  func.func @transform_2(%arg0: i32, %arg1: i32) -> (i32, i32) {
    %c0_i32 = arith.constant 0 : i32
    %c0_i32_0 = arith.constant 0 : i32
    %c0_i32_1 = arith.constant 0 : i32
    return %c0_i32, %c0_i32_0 : i32, i32
  }
  func.func @transform_3(%arg0: i32, %arg1: i32) -> (i32, i32) {
    %c0_i32 = arith.constant 0 : i32
    %c0_i32_0 = arith.constant 0 : i32
    %c0_i32_1 = arith.constant 0 : i32
    return %c0_i32, %c0_i32_0 : i32, i32
  }
  func.func @transform_4(%arg0: i32, %arg1: i32) -> (i32, i32) {
    %c0_i32 = arith.constant 0 : i32
    %c0_i32_0 = arith.constant 0 : i32
    %c0_i32_1 = arith.constant 0 : i32
    return %c0_i32, %c0_i32_0 : i32, i32
  }
  func.func @transform_5(%arg0: i32, %arg1: i32) -> (i32, i32) {
    %c0_i32 = arith.constant 0 : i32
    %c0_i32_0 = arith.constant 0 : i32
    %c0_i32_1 = arith.constant 0 : i32
    return %c0_i32, %c0_i32_0 : i32, i32
  }
  func.func @transform_6(%arg0: i32, %arg1: i32) -> (i32, i32, i32) {
    %c0_i32 = arith.constant 0 : i32
    %c0_i32_0 = arith.constant 0 : i32
    return %arg0, %c0_i32, %arg1 : i32, i32, i32
  }
}

</mosaic_0001>

<llo_original>
// kernel: tpu_custom_call.1
$region0: #{tpu_custom_call.1}
  #allocation0 [shape = 'u32[]', space=smem, size = 0x4, offset = 0x4, fixed_abs, tag = 'smem constant byte address 0x4 - core index']
  #allocation1 [shape = 'u32[144,128]{1,0:T(1,128)}', space=vmem, size = 0x12000, scoped, tag = 'internal scratch']
  %s0 = inlined_call_operand.vmem [shape: bf16[2,8,768], index: 0, kind: input, shape index: {}]
  %s1 = inlined_call_operand.vmem [shape: bf16[2,8,768], index: 1, kind: input, shape index: {}]
  %s2 = inlined_call_operand.hbm [shape: bf16[16,40], index: 2, kind: input, shape index: {}]
  %s3 = inlined_call_operand.vmem [shape: bf16[80,16], index: 3, kind: input, shape index: {}]
  %s4 = inlined_call_operand.vmem [shape: bf16[40,16], index: 4, kind: input, shape index: {}]
  %s5 = inlined_call_operand.vmem [shape: f32[16,3], index: 5, kind: input, shape index: {}]
  %s6 = inlined_call_operand.hbm [shape: f32[2,8,512], index: 6, kind: output, shape index: {}]
  %s7 = sld [smem:[#allocation0]]
  $region61: #{tpu_custom_call.1} parent=0
    _
  %s9 = ssub.s32 1, %s7
  %s10 = scalar_select 0, %s9, %s7
  $region1: #{tpu_custom_call.1} parent=0
    #allocation2 [shape = 'u8[4096]{0}', space=vmem, size = 0x1000, scoped, tag = 'input window, operand 2, single buffered']
    #allocation3 [shape = 's32[2]{0}', space=sflag, size = 0x8, scoped, tag = 'scoped memory for tpu_custom_call.1']
    #allocation4 [shape = 's32[2]{0}', space=sflag, size = 0x8, scoped, tag = 'scoped memory for tpu_custom_call.1']
    #allocation5 [shape = 'u8[16384]{0}', space=vmem, size = 0x4000, scoped, tag = 'output window, operand 0']
    %11 = vsyncpa [#allocation3], 0
    %12 = vsyncpa [#allocation4], 0
    %s13 = scalar_lea.sflag [#allocation4], 1
    %14 = vsyncpa %s13, 0
    loop: start=0, step=1, limit=6
    $region2: #{tpu_custom_call.1} parent=1 // loop_pre_header
      _
    $region3: #{tpu_custom_call.1} parent=1 // loop_header
      %s16 = sphi 0, %s20
      %p17 = scmp.ge.s32.totalorder %s16, 6
      %s23 = sphi 0, %s35
      %s24 = sphi 0, %s31
      %s25 = sphi 0, %s23
      %s26 = sphi 0, %s24
      %s27 = sphi 0, %s25
      %s28 = sphi 0, %s26
      %s40 = sphi 0, %s42
      %s43 = sphi 0, %s40
      %s44 = sphi 0, %s43
      %s60 = sphi 0, %s44
      %s72 = sphi 0, %s74
      %s75 = sphi 0, %s72
      %s76 = sphi 0, %s75
      %s92 = sphi 0, %s76
      %s96 = sphi 0, %s96
      %s98 = sphi 0, %s96
      %s99 = sphi 0, %s98
      %s113 = sphi 0, %s99
      %s117 = sphi 0, %s117
      %s119 = sphi 0, %s117
      %s120 = sphi 0, %s119
      %s134 = sphi 0, %s120
      %s138 = sphi 0, %s138
      %s140 = sphi 0, %s138
      %s141 = sphi 0, %s140
      %s155 = sphi 0, %s141
      %s159 = sphi 0, %s159
      %s161 = sphi 0, %s159
      %s162 = sphi 0, %s161
      %s176 = sphi 0, %s162
      %s184 = sphi 0, %s186
      %s187 = sphi 0, %s184
      %s188 = sphi 0, %s187
      %s204 = sphi 0, %s188
    $region4: #{tpu_custom_call.1} parent=1 // loop_header_branch
      %19 = sbr.rel (%p17) target = $region8
    $region5: #{tpu_custom_call.1} parent=1 // loop_body
      %s21 = ssub.s32 %s16, 1
      %s22 = ssub.s32 %s16, 2
      %s29 = sadd.s32 1, %s24
      %p30 = scmp.ge.s32.totalorder %s29, 2
      %s31 = scalar_select %p30, 0, %s29
      %s32 = sadd.s32 1, %s23
      %s33 = scalar_select %p30, %s32, %s23
      %p34 = scmp.ge.s32.totalorder %s33, 2
      %s35 = scalar_select %p34, 0, %s33
      %s36 = ssub.s32 %s23, %s35
      %s37 = ssub.s32 %s24, %s31
      %s38 = sor.u32 %s36, %s37
      %p39 = scmp.eq.s32.totalorder %s38, 0
      %s41 = sadd.s32 %s40, 1
      %s42 = scalar_select %p39, %s40, %s41
      %p45 = pneg %p39
      %p46 = scmp.eq.s32.totalorder %s16, 3
      %p47 = por %p45, %p46
      %p48 = scmp.ne.s32.totalorder %s40, %s43
      %p49 = scmp.eq.s32.totalorder %s16, 0
      %p50 = por %p48, %p49
      %p51 = scmp.ne.s32.totalorder %s40, %s43
      %p52 = scmp.eq.s32.totalorder %s21, 3
      %p53 = por %p51, %p52
      %p54 = scmp.ne.s32.totalorder %s43, %s44
      %p55 = scmp.eq.s32.totalorder %s21, 0
      %p56 = por %p54, %p55
      %p57 = scmp.ne.s32.totalorder %s43, %s44
      %p58 = scmp.eq.s32.totalorder %s22, 3
      %p59 = por %p57, %p58
      %p61 = scmp.ne.s32.totalorder %s44, %s60
      %p62 = scmp.eq.s32.totalorder %s22, 0
      %p63 = por %p61, %p62
      %s64 = sadd.s32 %s24, 1
      %s65 = smul.u32 %s64, 2
      %s66 = sadd.s32 %s31, 1
      %s67 = smul.u32 %s66, 2
      %s68 = ssub.s32 %s23, %s35
      %s69 = ssub.s32 %s65, %s67
      %s70 = sor.u32 %s68, %s69
      %p71 = scmp.eq.s32.totalorder %s70, 0
      %s73 = sadd.s32 %s72, 1
      %s74 = scalar_select %p71, %s72, %s73
      %p77 = pneg %p71
      %p78 = scmp.eq.s32.totalorder %s16, 3
      %p79 = por %p77, %p78
      %p80 = scmp.ne.s32.totalorder %s72, %s75
      %p81 = scmp.eq.s32.totalorder %s16, 0
      %p82 = por %p80, %p81
      %p83 = scmp.ne.s32.totalorder %s72, %s75
      %p84 = scmp.eq.s32.totalorder %s21, 3
      %p85 = por %p83, %p84
      %p86 = scmp.ne.s32.totalorder %s75, %s76
      %p87 = scmp.eq.s32.totalorder %s21, 0
      %p88 = por %p86, %p87
      %p89 = scmp.ne.s32.totalorder %s75, %s76
      %p90 = scmp.eq.s32.totalorder %s22, 3
      %p91 = por %p89, %p90
      %p93 = scmp.ne.s32.totalorder %s76, %s92
      %p94 = scmp.eq.s32.totalorder %s22, 0
      %p95 = por %p93, %p94
      %s97 = sadd.s32 %s96, 1
      %p100 = scmp.eq.s32.totalorder %s16, 3
      %p101 = scmp.ne.s32.totalorder %s96, %s98
      %p102 = scmp.eq.s32.totalorder %s16, 0
      %p103 = por %p101, %p102
      %p104 = scmp.ne.s32.totalorder %s96, %s98
      %p105 = scmp.eq.s32.totalorder %s21, 3
      %p106 = por %p104, %p105
      %p107 = scmp.ne.s32.totalorder %s98, %s99
      %p108 = scmp.eq.s32.totalorder %s21, 0
      %p109 = por %p107, %p108
      %p110 = scmp.ne.s32.totalorder %s98, %s99
      %p111 = scmp.eq.s32.totalorder %s22, 3
      %p112 = por %p110, %p111
      %p114 = scmp.ne.s32.totalorder %s99, %s113
      %p115 = scmp.eq.s32.totalorder %s22, 0
      %p116 = por %p114, %p115
      %s118 = sadd.s32 %s117, 1
      %p121 = scmp.eq.s32.totalorder %s16, 3
      %p122 = scmp.ne.s32.totalorder %s117, %s119
      %p123 = scmp.eq.s32.totalorder %s16, 0
      %p124 = por %p122, %p123
      %p125 = scmp.ne.s32.totalorder %s117, %s119
      %p126 = scmp.eq.s32.totalorder %s21, 3
      %p127 = por %p125, %p126
      %p128 = scmp.ne.s32.totalorder %s119, %s120
      %p129 = scmp.eq.s32.totalorder %s21, 0
      %p130 = por %p128, %p129
      %p131 = scmp.ne.s32.totalorder %s119, %s120
      %p132 = scmp.eq.s32.totalorder %s22, 3
      %p133 = por %p131, %p132
      %p135 = scmp.ne.s32.totalorder %s120, %s134
      %p136 = scmp.eq.s32.totalorder %s22, 0
      %p137 = por %p135, %p136
      %s139 = sadd.s32 %s138, 1
      %p142 = scmp.eq.s32.totalorder %s16, 3
      %p143 = scmp.ne.s32.totalorder %s138, %s140
      %p144 = scmp.eq.s32.totalorder %s16, 0
      %p145 = por %p143, %p144
      %p146 = scmp.ne.s32.totalorder %s138, %s140
      %p147 = scmp.eq.s32.totalorder %s21, 3
      %p148 = por %p146, %p147
      %p149 = scmp.ne.s32.totalorder %s140, %s141
      %p150 = scmp.eq.s32.totalorder %s21, 0
      %p151 = por %p149, %p150
      %p152 = scmp.ne.s32.totalorder %s140, %s141
      %p153 = scmp.eq.s32.totalorder %s22, 3
      %p154 = por %p152, %p153
      %p156 = scmp.ne.s32.totalorder %s141, %s155
      %p157 = scmp.eq.s32.totalorder %s22, 0
      %p158 = por %p156, %p157
      %s160 = sadd.s32 %s159, 1
      %p163 = scmp.eq.s32.totalorder %s16, 3
      %p164 = scmp.ne.s32.totalorder %s159, %s161
      %p165 = scmp.eq.s32.totalorder %s16, 0
      %p166 = por %p164, %p165
      %p167 = scmp.ne.s32.totalorder %s159, %s161
      %p168 = scmp.eq.s32.totalorder %s21, 3
      %p169 = por %p167, %p168
      %p170 = scmp.ne.s32.totalorder %s161, %s162
      %p171 = scmp.eq.s32.totalorder %s21, 0
      %p172 = por %p170, %p171
      %p173 = scmp.ne.s32.totalorder %s161, %s162
      %p174 = scmp.eq.s32.totalorder %s22, 3
      %p175 = por %p173, %p174
      %p177 = scmp.ne.s32.totalorder %s162, %s176
      %p178 = scmp.eq.s32.totalorder %s22, 0
      %p179 = por %p177, %p178
      %s180 = ssub.s32 %s23, %s35
      %s181 = ssub.s32 %s24, %s31
      %s182 = sor.u32 %s180, %s181
      %p183 = scmp.eq.s32.totalorder %s182, 0
      %s185 = sadd.s32 %s184, 1
      %s186 = scalar_select %p183, %s184, %s185
      %p189 = pneg %p183
      %p190 = scmp.eq.s32.totalorder %s16, 3
      %p191 = por %p189, %p190
      %p192 = scmp.ne.s32.totalorder %s184, %s187
      %p193 = scmp.eq.s32.totalorder %s16, 0
      %p194 = por %p192, %p193
      %p195 = scmp.ne.s32.totalorder %s184, %s187
      %p196 = scmp.eq.s32.totalorder %s21, 3
      %p197 = por %p195, %p196
      %p198 = scmp.ne.s32.totalorder %s187, %s188
      %p199 = scmp.eq.s32.totalorder %s21, 0
      %p200 = por %p198, %p199
      %p201 = scmp.ne.s32.totalorder %s187, %s188
      %p202 = scmp.eq.s32.totalorder %s22, 3
      %p203 = por %p201, %p202
      %p205 = scmp.ne.s32.totalorder %s188, %s204
      %p206 = scmp.eq.s32.totalorder %s22, 0
      %p207 = por %p205, %p206
      %p208 = scmp.le.s32.totalorder 1, %s16
      %p209 = scmp.lt.s32.totalorder %s16, 5
      %p210 = pnand %p208, %p209
      %p211 = pneg %p210
      // Predicated region
      $region9: #{tpu_custom_call.1} parent=5 // pred_check
        _
      $region10: #{tpu_custom_call.1} parent=5 // pred_check_branch
        %213 = sbr.rel (%p210) target = $region12
      $region11: #{tpu_custom_call.1} parent=5 // pred_region
        %s214 = ssub.s32 %s16, 1
        // Predicated region
        $region13: #{tpu_custom_call.1} parent=11 // pred_check
          %p215 = pneg %p109
        $region14: #{tpu_custom_call.1} parent=11 // pred_check_branch
          %217 = sbr.rel (%p215) target = $region16
        $region15: #{tpu_custom_call.1} parent=11 // pred_region
          %s219 = ssub.s32 128, 128
          %220 = vsyncadd [#allocation3], %s219
          %s221 = sshll.u32 [#allocation2], 4
          %s222 = int_to_ptr.vmem [resolvable:$true] %s221
          %227 = dma.hbm_to_vmem [thread:$0]  %s2, 128, %s222, [#allocation3], 64, 64, 4
        $region16: #{tpu_custom_call.1} parent=11 // pred_fallthru
          _
        // Predicated region
        $region17: #{tpu_custom_call.1} parent=11 // pred_check
          %p228 = pneg %p130
        $region18: #{tpu_custom_call.1} parent=11 // pred_check_branch
          %230 = sbr.rel (%p228) target = $region20
        $region19: #{tpu_custom_call.1} parent=11 // pred_region
          _
        $region20: #{tpu_custom_call.1} parent=11 // pred_fallthru
          _
        // Predicated region
        $region21: #{tpu_custom_call.1} parent=11 // pred_check
          %p231 = pneg %p151
        $region22: #{tpu_custom_call.1} parent=11 // pred_check_branch
          %233 = sbr.rel (%p231) target = $region24
        $region23: #{tpu_custom_call.1} parent=11 // pred_region
          _
        $region24: #{tpu_custom_call.1} parent=11 // pred_fallthru
          _
        // Predicated region
        $region25: #{tpu_custom_call.1} parent=11 // pred_check
          %p234 = pneg %p172
        $region26: #{tpu_custom_call.1} parent=11 // pred_check_branch
          %236 = sbr.rel (%p234) target = $region28
        $region27: #{tpu_custom_call.1} parent=11 // pred_region
          _
        $region28: #{tpu_custom_call.1} parent=11 // pred_fallthru
          _
      $region12: #{tpu_custom_call.1} parent=5 // pred_fallthru
        _
      %p237 = scmp.lt.s32.totalorder %s16, 4
      // Predicated region
      $region29: #{tpu_custom_call.1} parent=5 // pred_check
        %p238 = pneg %p237
      $region30: #{tpu_custom_call.1} parent=5 // pred_check_branch
        %240 = sbr.rel (%p238) target = $region32
      $region31: #{tpu_custom_call.1} parent=5 // pred_region
        // Predicated region
        $region33: #{tpu_custom_call.1} parent=31 // pred_check
          %p241 = pneg %p50
        $region34: #{tpu_custom_call.1} parent=31 // pred_check_branch
          %243 = sbr.rel (%p241) target = $region36
        $region35: #{tpu_custom_call.1} parent=31 // pred_region
          %s244 = smul.u32 2, %s24
          %p245 = scmp.lt.s32.totalorder %s23, 1
          %s246 = scalar_select %p245, %s23, 1
          %p247 = scmp.lt.s32.totalorder %s244, 5
          %s248 = scalar_select %p247, %s244, 5
          %s249 = smul.addr %s246, 6
          %s250 = sadd.s32 %s248, %s249
          %s251 = smul.addr %s250, 4
          %s252 = scalar_lea.vmem %s0, %s251
          %s253 = smul.u32 2, %s24
        $region36: #{tpu_custom_call.1} parent=31 // pred_fallthru
          _
        // Predicated region
        $region37: #{tpu_custom_call.1} parent=31 // pred_check
          %p254 = pneg %p82
        $region38: #{tpu_custom_call.1} parent=31 // pred_check_branch
          %256 = sbr.rel (%p254) target = $region40
        $region39: #{tpu_custom_call.1} parent=31 // pred_region
          %s257 = sadd.s32 %s24, 1
          %s258 = smul.u32 %s257, 2
          %p259 = scmp.lt.s32.totalorder %s23, 1
          %s260 = scalar_select %p259, %s23, 1
          %p261 = scmp.lt.s32.totalorder %s258, 5
          %s262 = scalar_select %p261, %s258, 5
          %s263 = smul.addr %s260, 6
          %s264 = sadd.s32 %s262, %s263
          %s265 = smul.addr %s264, 4
          %s266 = scalar_lea.vmem %s1, %s265
          %s267 = sadd.s32 %s24, 1
          %s268 = smul.u32 %s267, 2
        $region40: #{tpu_custom_call.1} parent=31 // pred_fallthru
          _
      $region32: #{tpu_custom_call.1} parent=5 // pred_fallthru
        _
      %p269 = scmp.le.s32.totalorder 1, %s16
      %p270 = scmp.lt.s32.totalorder %s16, 5
      %p271 = pnand %p269, %p270
      %p272 = pneg %p271
      // Predicated region
      $region41: #{tpu_custom_call.1} parent=5 // pred_check
        _
      $region42: #{tpu_custom_call.1} parent=5 // pred_check_branch
        %274 = sbr.rel (%p271) target = $region44
      $region43: #{tpu_custom_call.1} parent=5 // pred_region
        %s275 = ssub.s32 %s16, 1
        // Predicated region
        $region45: #{tpu_custom_call.1} parent=43 // pred_check
          %p276 = pneg %p109
        $region46: #{tpu_custom_call.1} parent=43 // pred_check_branch
          %278 = sbr.rel (%p276) target = $region48
        $region47: #{tpu_custom_call.1} parent=43 // pred_region
          %279 = dma.done [#allocation3], 128
        $region48: #{tpu_custom_call.1} parent=43 // pred_fallthru
          _
        %s280 = smul.u32 2, %s26
        %p281 = scmp.lt.s32.totalorder %s25, 1
        %s282 = scalar_select %p281, %s25, 1
        %p283 = scmp.lt.s32.totalorder %s280, 5
        %s284 = scalar_select %p283, %s280, 5
        %s285 = smul.addr %s282, 6
        %s286 = sadd.s32 %s284, %s285
        %s287 = smul.addr %s286, 4
        %s288 = scalar_lea.vmem %s0, %s287
        %p289 = pneg %p56
        %p290 = pneg %p53
        %s291 = sadd.s32 %s26, 1
        %s292 = smul.u32 %s291, 2
        %p293 = scmp.lt.s32.totalorder %s25, 1
        %s294 = scalar_select %p293, %s25, 1
        %p295 = scmp.lt.s32.totalorder %s292, 5
        %s296 = scalar_select %p295, %s292, 5
        %s297 = smul.addr %s294, 6
        %s298 = sadd.s32 %s296, %s297
        %s299 = smul.addr %s298, 4
        %s300 = scalar_lea.vmem %s1, %s299
        %p301 = pneg %p88
        %p302 = pneg %p85
        %p303 = pneg %p109
        %p304 = pneg %p106
        %p305 = pneg %p130
        %p306 = pneg %p127
        %p307 = pneg %p151
        %p308 = pneg %p148
        %p309 = pneg %p172
        %p310 = pneg %p169
        %p311 = pneg %p200
        %p312 = pneg %p197
        %s313 = sand.u32 %s187, 1
        %s314 = scalar_lea.sflag [#allocation4], %s313
        %s315 = sand.u32 %s187, 1
        %s316 = smul.addr %s315, 16
        %s317 = scalar_lea.vmem [#allocation5], %s316
        %s318 = smul.u32 2, %s26
        %p319 = scmp.lt.s32.totalorder %s25, 1
        %s320 = scalar_select %p319, %s25, 1
        %p321 = scmp.lt.s32.totalorder %s318, 5
        %s322 = scalar_select %p321, %s318, 5
        %s323 = smul.addr %s320, 6
        %s324 = sadd.s32 %s322, %s323
        %s325 = smul.addr %s324, 4
        %s326 = scalar_lea.vmem %s0, %s325
        %s327 = smul.u32 2, %s26
        %s328 = sadd.s32 %s26, 1
        %s329 = smul.u32 %s328, 2
        %p330 = scmp.lt.s32.totalorder %s25, 1
        %s331 = scalar_select %p330, %s25, 1
        %p332 = scmp.lt.s32.totalorder %s329, 5
        %s333 = scalar_select %p332, %s329, 5
        %s334 = smul.addr %s331, 6
        %s335 = sadd.s32 %s333, %s334
        %s336 = smul.addr %s335, 4
        %s337 = scalar_lea.vmem %s1, %s336
        %s338 = sadd.s32 %s26, 1
        %s339 = smul.u32 %s338, 2
        %s340 = smul.u32 2, %s26
        %s342 = smul.u32 %s26, 256
        %v343 = vld [vmem:[%s326] sm:$0xff]
        %v344 = vld [vmem:[%s337] sm:$0xf]
        %v346 = vunpack.c.l.b16 %v343
        %v347 = vunpack.c.h.b16 %v343
        %v348 = vpack.c.b16 %v346, %v346
        %v349 = vpack.c.b16 %v347, %v347
        %v350 = vlaneseq
        %v351 = vand.u32 %v350, 127
        %v352 = vadd.s32 %v351, 128
        %v353 = vadd.s32 %v351, 256
        %v354 = vld [vmem:[%s5] sm:$0xff]
        %v355 = vld [vmem:[%s5 + $0x8] sm:$0xff]
        %v357 = vrot.slane %v348, 4
        %v358 = vrot.slane %v349, 4
        %v359 = vrot.slane %v344, 4
        %360 = vrot.lane.b32.xlu0 %v357, 127
        %v361 = vpop.permute.xlu0 %360
        %362 = vrot.lane.b32.xlu0 %v358, 127
        %v363 = vpop.permute.xlu0 %362
        %364 = vrot.lane.b32.xlu0 %v359, 127
        %v365 = vpop.permute.xlu0 %364
        %vm366 = vcmask 1039360
        %v367 = vsel %vm366, %v361, %v363
        %v368 = vsel %vm366, %v363, %v365
        %369 = vrot.lane.b32.xlu0 %v348, 126
        %v370 = vpop.permute.xlu0 %369
        %371 = vrot.lane.b32.xlu0 %v349, 126
        %v372 = vpop.permute.xlu0 %371
        %373 = vrot.lane.b32.xlu0 %v344, 126
        %v374 = vpop.permute.xlu0 %373
        %vm375 = vcmask 1031168
        %v376 = vsel %vm375, %v370, %v372
        %v377 = vsel %vm375, %v372, %v374
        %378 = vrot.lane.b32.xlu0 %v357, 125
        %v379 = vpop.permute.xlu0 %378
        %380 = vrot.lane.b32.xlu0 %v358, 125
        %v381 = vpop.permute.xlu0 %380
        %382 = vrot.lane.b32.xlu0 %v359, 125
        %v383 = vpop.permute.xlu0 %382
        %vm384 = vcmask 1022976
        %v385 = vsel %vm384, %v379, %v381
        %v386 = vsel %vm384, %v381, %v383
        %387 = vrot.lane.b32.xlu0 %v348, 124
        %v388 = vpop.permute.xlu0 %387
        %389 = vrot.lane.b32.xlu0 %v349, 124
        %v390 = vpop.permute.xlu0 %389
        %391 = vrot.lane.b32.xlu0 %v344, 124
        %v392 = vpop.permute.xlu0 %391
        %vm393 = vcmask 1014784
        %v394 = vsel %vm393, %v388, %v390
        %v395 = vsel %vm393, %v390, %v392
        %vm396 = vcmask 1043456
        %v399 = vsel %vm396, %v348, %v367
        %v403 = vsel %vm396, %v349, %v368
        %v407 = vsel %vm396, %v344, %v365
        %v411 = vsel %vm396, %v376, %v385
        %v415 = vsel %vm396, %v377, %v386
        %v419 = vsel %vm396, %v374, %v383
        %v421 = vld [vmem:[#allocation2] sm:$0xf]
        %v422 = vld [vmem:[#allocation2 + $0x4] sm:$0xf]
        %424 = vset.pattern.permute.xlu0 0
        %425 = vperm.xlu0 %424, %v354
        %v426 = vpop.permute.xlu0 %425
        %429 = vset.pattern.permute.xlu0 0
        %430 = vperm.xlu0 %429, %v355
        %v431 = vpop.permute.xlu0 %430
        %v435 = vunpack.c.l.b16 %v421
        %v436 = vunpack.c.l.b16 %v422
        %v437 = vpack.c.b16 %v436, %v435
        %vm438 = vcmask 326656
        %v440 = vsel %vm438, %v437, 0
        %v443 = vsel %vm396, %v394, 0
        %v446 = vsel %vm396, %v395, 0
        %v449 = vsel %vm396, %v392, 0
        %451 = vmatprep.subr.bf16.mxu0 %v403
        %452 = vmatpush1.bf16.msra.mxu0 %v399
        %453 = vmatprep.subr.bf16.mxu0 %v415
        %454 = vmatpush1.bf16.msra.mxu0 %v411
        %455 = vmatprep.subr.bf16.mxu0 %v446
        %456 = vmatpush1.bf16.msra.mxu0 %v443
        %457 = vmatprep.subr.bf16.mxu0 0
        %458 = vmatpush1.bf16.msra.mxu0 0
        %459 = vmatprep.subr.bf16.mxu0 0
        %460 = vmatpush1.bf16.msra.mxu0 0
        %461 = vmatprep.subr.bf16.mxu0 0
        %462 = vmatpush1.bf16.msra.mxu0 0
        %463 = vmatprep.subr.bf16.mxu0 0
        %464 = vmatpush1.bf16.msra.mxu0 0
        %465 = vmatprep.subr.bf16.mxu0 0
        %466 = vmatpush1.bf16.msra.mxu0 0
        %467 = vmatprep.subr.bf16.mxu0 0
        %468 = vmatpush1.bf16.msra.mxu0 0
        %469 = vmatprep.subr.bf16.mxu0 0
        %470 = vmatpush1.bf16.msra.mxu0 0
        %471 = vmatprep.subr.bf16.mxu0 0
        %472 = vmatpush1.bf16.msra.mxu0 0
        %473 = vmatprep.subr.bf16.mxu0 0
        %474 = vmatpush1.bf16.msra.mxu0 0
        %475 = vmatprep.subr.bf16.mxu0 0
        %476 = vmatpush1.bf16.msra.mxu0 0
        %477 = vmatprep.subr.bf16.mxu0 0
        %478 = vmatpush1.bf16.msra.mxu0 0
        %479 = vmatprep.subr.bf16.mxu0 0
        %480 = vmatpush1.bf16.msra.mxu0 0
        %481 = vmatprep.subr.bf16.mxu0 0
        %482 = vmatpush1.bf16.msra.mxu0 0
        %483 = vmatprep.mubr.bf16.mxu0 0
        %484 = vmatmul.mubr.bf16.gmra.mrb[0].mxu0 %v440
        %v485 = vpop.f32.mrb[0].mxu0
        %v486 = vadd.f32 %v426, %v485
        %v487 = vpop.f32.mrb[0].mxu0
        %v488 = vadd.f32 %v426, %v487
        %v489 = vpop.f32.mrb[0].mxu0
        %v490 = vadd.f32 %v431, %v489
        %v491 = vpop.f32.mrb[0].mxu0
        %v492 = vadd.f32 %v431, %v491
        %493 = vdwg.mxu0
        %494 = vmatprep.subr.bf16.mxu0 0
        %495 = vmatpush1.bf16.msra.mxu0 %v407
        %496 = vmatprep.subr.bf16.mxu0 0
        %497 = vmatpush1.bf16.msra.mxu0 %v419
        %498 = vmatprep.subr.bf16.mxu0 0
        %499 = vmatpush1.bf16.msra.mxu0 %v449
        %500 = vmatprep.subr.bf16.mxu0 0
        %501 = vmatpush1.bf16.msra.mxu0 0
        %502 = vmatprep.subr.bf16.mxu0 0
        %503 = vmatpush1.bf16.msra.mxu0 0
        %504 = vmatprep.subr.bf16.mxu0 0
        %505 = vmatpush1.bf16.msra.mxu0 0
        %506 = vmatprep.subr.bf16.mxu0 0
        %507 = vmatpush1.bf16.msra.mxu0 0
        %508 = vmatprep.subr.bf16.mxu0 0
        %509 = vmatpush1.bf16.msra.mxu0 0
        %510 = vmatprep.subr.bf16.mxu0 0
        %511 = vmatpush1.bf16.msra.mxu0 0
        %512 = vmatprep.subr.bf16.mxu0 0
        %513 = vmatpush1.bf16.msra.mxu0 0
        %514 = vmatprep.subr.bf16.mxu0 0
        %515 = vmatpush1.bf16.msra.mxu0 0
        %516 = vmatprep.subr.bf16.mxu0 0
        %517 = vmatpush1.bf16.msra.mxu0 0
        %518 = vmatprep.subr.bf16.mxu0 0
        %519 = vmatpush1.bf16.msra.mxu0 0
        %520 = vmatprep.subr.bf16.mxu0 0
        %521 = vmatpush1.bf16.msra.mxu0 0
        %522 = vmatprep.subr.bf16.mxu0 0
        %523 = vmatpush1.bf16.msra.mxu0 0
        %524 = vmatprep.subr.bf16.mxu0 0
        %525 = vmatpush1.bf16.msra.mxu0 0
        %526 = vmatprep.mubr.bf16.mxu0 0
        %527 = vmatmul.mubr.bf16.gmra.mrb[0].mxu0 %v440
        %v528 = vpop.f32.mrb[0].mxu0
        %v529 = vadd.f32 %v426, %v528
        %v530 = vpop.f32.mrb[0].mxu0
        %v531 = vpop.f32.mrb[0].mxu0
        %v532 = vadd.f32 %v431, %v531
        %v533 = vpop.f32.mrb[0].mxu0
        %534 = vdwg.mxu0
        %v535 = vtanh.pop %v486
        %v536 = vtanh.pop %v488
        %v537 = vtanh.pop %v529
        %v538 = vtanh.pop %v490
        %v539 = vtanh.pop %v492
        %v540 = vtanh.pop %v532
        %s541 = sadd.s32 %s342, 4294967292
        %v542 = vstv %s541
        %v543 = vadd.s32 %v542, %v351
        %v544 = vadd.s32 %v542, %v352
        %v545 = vadd.s32 %v542, %v353
        %vm546 = vcmp.ge.s32.totalorder %v543, 0
        %vm547 = vcmp.ge.s32.totalorder %v544, 0
        %vm548 = vcmp.ge.s32.totalorder %v545, 0
        %vm549 = vcmp.lt.s32.totalorder %v543, 320
        %vm550 = vcmp.lt.s32.totalorder %v544, 320
        %vm551 = vcmp.lt.s32.totalorder %v545, 320
        %vm552 = vmand %vm546, %vm549
        %vm553 = vmand %vm547, %vm550
        %vm554 = vmand %vm548, %vm551
        %v555 = vsel %vm552, 1, 0
        %v556 = vsel %vm553, 1, 0
        %v557 = vsel %vm554, 1, 0
        %vm558 = vcmp.eq.s32.totalorder %v555, 1
        %vm559 = vcmp.eq.s32.totalorder %v556, 1
        %vm560 = vcmp.eq.s32.totalorder %v557, 1
        %v561 = vsel %vm558, %v535, 0.0
        %v562 = vsel %vm559, %v536, 0.0
        %v563 = vsel %vm560, %v537, 0.0
        %v564 = vsel %vm558, %v538, 0.0
        %v565 = vsel %vm559, %v539, 0.0
        %v566 = vsel %vm560, %v540, 0.0
        %v567 = vpack.c.bf16 %v564, %v561
        %v568 = vpack.c.bf16 %v565, %v562
        %v569 = vpack.c.bf16 %v566, %v563
        %v570 = vld [vmem:[%s3] sm:$0xf]
        %v571 = vld [vmem:[%s3 + $0x4] sm:$0xf]
        %v572 = vld [vmem:[%s3 + $0x8] sm:$0xf]
        %v573 = vld [vmem:[%s3 + $0xc] sm:$0xf]
        %v576 = vunpack.c.l.b16 %v572
        %v577 = vunpack.c.l.b16 %v573
        %v578 = vpack.c.b16 %v577, %v576
        %582 = vrot.lane.b32.xlu0 %v567, 127
        %v583 = vpop.permute.xlu0 %582
        %584 = vrot.lane.b32.xlu0 %v568, 127
        %v585 = vpop.permute.xlu0 %584
        %586 = vrot.lane.b32.xlu0 %v569, 127
        %v587 = vpop.permute.xlu0 %586
        %v588 = vsel %vm366, %v583, %v585
        %v589 = vsel %vm366, %v585, %v587
        %vm593 = vcmask 130048
        %v595 = vsel %vm593, %v578, 0
        %597 = vmatprep.subr.bf16.mxu0 %v589
        %598 = vmatpush1.bf16.msra.mxu0 %v588
        %599 = vmatprep.subr.bf16.mxu0 0
        %600 = vmatpush1.bf16.msra.mxu0 0
        %601 = vmatprep.subr.bf16.mxu0 0
        %602 = vmatpush1.bf16.msra.mxu0 0
        %603 = vmatprep.subr.bf16.mxu0 0
        %604 = vmatpush1.bf16.msra.mxu0 0
        %605 = vmatprep.subr.bf16.mxu0 0
        %606 = vmatpush1.bf16.msra.mxu0 0
        %607 = vmatprep.subr.bf16.mxu0 0
        %608 = vmatpush1.bf16.msra.mxu0 0
        %609 = vmatprep.subr.bf16.mxu0 0
        %610 = vmatpush1.bf16.msra.mxu0 0
        %611 = vmatprep.subr.bf16.mxu0 0
        %612 = vmatpush1.bf16.msra.mxu0 0
        %613 = vmatprep.subr.bf16.mxu0 0
        %614 = vmatpush1.bf16.msra.mxu0 0
        %615 = vmatprep.subr.bf16.mxu0 0
        %616 = vmatpush1.bf16.msra.mxu0 0
        %617 = vmatprep.subr.bf16.mxu0 0
        %618 = vmatpush1.bf16.msra.mxu0 0
        %619 = vmatprep.subr.bf16.mxu0 0
        %620 = vmatpush1.bf16.msra.mxu0 0
        %621 = vmatprep.subr.bf16.mxu0 0
        %622 = vmatpush1.bf16.msra.mxu0 0
        %623 = vmatprep.subr.bf16.mxu0 0
        %624 = vmatpush1.bf16.msra.mxu0 0
        %625 = vmatprep.subr.bf16.mxu0 0
        %626 = vmatpush1.bf16.msra.mxu0 0
        %627 = vmatprep.subr.bf16.mxu0 0
        %628 = vmatpush1.bf16.msra.mxu0 0
        %629 = vmatprep.mubr.bf16.mxu0 0
        %630 = vmatmul.mubr.bf16.gmra.mrb[0].mxu0 %v595
        %v631 = vpop.f32.mrb[0].mxu0
        %v632 = vadd.f32 0.0, %v631
        %v633 = vpop.f32.mrb[0].mxu0
        %v634 = vadd.f32 0.0, %v633
        %v635 = vpop.f32.mrb[0].mxu0
        %v636 = vadd.f32 0.0, %v635
        %v637 = vpop.f32.mrb[0].mxu0
        %v638 = vadd.f32 0.0, %v637
        %639 = vdwg.mxu0
        %640 = vmatprep.subr.bf16.mxu0 0
        %641 = vmatpush1.bf16.msra.mxu0 %v587
        %642 = vmatprep.subr.bf16.mxu0 0
        %643 = vmatpush1.bf16.msra.mxu0 0
        %644 = vmatprep.subr.bf16.mxu0 0
        %645 = vmatpush1.bf16.msra.mxu0 0
        %646 = vmatprep.subr.bf16.mxu0 0
        %647 = vmatpush1.bf16.msra.mxu0 0
        %648 = vmatprep.subr.bf16.mxu0 0
        %649 = vmatpush1.bf16.msra.mxu0 0
        %650 = vmatprep.subr.bf16.mxu0 0
        %651 = vmatpush1.bf16.msra.mxu0 0
        %652 = vmatprep.subr.bf16.mxu0 0
        %653 = vmatpush1.bf16.msra.mxu0 0
        %654 = vmatprep.subr.bf16.mxu0 0
        %655 = vmatpush1.bf16.msra.mxu0 0
        %656 = vmatprep.subr.bf16.mxu0 0
        %657 = vmatpush1.bf16.msra.mxu0 0
        %658 = vmatprep.subr.bf16.mxu0 0
        %659 = vmatpush1.bf16.msra.mxu0 0
        %660 = vmatprep.subr.bf16.mxu0 0
        %661 = vmatpush1.bf16.msra.mxu0 0
        %662 = vmatprep.subr.bf16.mxu0 0
        %663 = vmatpush1.bf16.msra.mxu0 0
        %664 = vmatprep.subr.bf16.mxu0 0
        %665 = vmatpush1.bf16.msra.mxu0 0
        %666 = vmatprep.subr.bf16.mxu0 0
        %667 = vmatpush1.bf16.msra.mxu0 0
        %668 = vmatprep.subr.bf16.mxu0 0
        %669 = vmatpush1.bf16.msra.mxu0 0
        %670 = vmatprep.subr.bf16.mxu0 0
        %671 = vmatpush1.bf16.msra.mxu0 0
        %672 = vmatprep.mubr.bf16.mxu0 0
        %673 = vmatmul.mubr.bf16.gmra.mrb[0].mxu0 %v595
        %v674 = vpop.f32.mrb[0].mxu0
        %v675 = vadd.f32 0.0, %v674
        %v676 = vpop.f32.mrb[0].mxu0
        %v677 = vpop.f32.mrb[0].mxu0
        %v678 = vadd.f32 0.0, %v677
        %v679 = vpop.f32.mrb[0].mxu0
        %680 = vdwg.mxu0
        %v683 = vunpack.c.l.b16 %v570
        %v684 = vunpack.c.l.b16 %v571
        %v685 = vpack.c.b16 %v684, %v683
        %v687 = vsel %vm593, %v685, 0
        %689 = vmatprep.subr.bf16.mxu0 %v568
        %690 = vmatpush1.bf16.msra.mxu0 %v567
        %691 = vmatprep.subr.bf16.mxu0 0
        %692 = vmatpush1.bf16.msra.mxu0 0
        %693 = vmatprep.subr.bf16.mxu0 0
        %694 = vmatpush1.bf16.msra.mxu0 0
        %695 = vmatprep.subr.bf16.mxu0 0
        %696 = vmatpush1.bf16.msra.mxu0 0
        %697 = vmatprep.subr.bf16.mxu0 0
        %698 = vmatpush1.bf16.msra.mxu0 0
        %699 = vmatprep.subr.bf16.mxu0 0
        %700 = vmatpush1.bf16.msra.mxu0 0
        %701 = vmatprep.subr.bf16.mxu0 0
        %702 = vmatpush1.bf16.msra.mxu0 0
        %703 = vmatprep.subr.bf16.mxu0 0
        %704 = vmatpush1.bf16.msra.mxu0 0
        %705 = vmatprep.subr.bf16.mxu0 0
        %706 = vmatpush1.bf16.msra.mxu0 0
        %707 = vmatprep.subr.bf16.mxu0 0
        %708 = vmatpush1.bf16.msra.mxu0 0
        %709 = vmatprep.subr.bf16.mxu0 0
        %710 = vmatpush1.bf16.msra.mxu0 0
        %711 = vmatprep.subr.bf16.mxu0 0
        %712 = vmatpush1.bf16.msra.mxu0 0
        %713 = vmatprep.subr.bf16.mxu0 0
        %714 = vmatpush1.bf16.msra.mxu0 0
        %715 = vmatprep.subr.bf16.mxu0 0
        %716 = vmatpush1.bf16.msra.mxu0 0
        %717 = vmatprep.subr.bf16.mxu0 0
        %718 = vmatpush1.bf16.msra.mxu0 0
        %719 = vmatprep.subr.bf16.mxu0 0
        %720 = vmatpush1.bf16.msra.mxu0 0
        %721 = vmatprep.mubr.bf16.mxu0 0
        %722 = vmatmul.mubr.bf16.gmra.mrb[0].mxu0 %v687
        %v723 = vpop.f32.mrb[0].mxu0
        %v724 = vadd.f32 %v632, %v723
        %v725 = vpop.f32.mrb[0].mxu0
        %v726 = vadd.f32 %v634, %v725
        %v727 = vpop.f32.mrb[0].mxu0
        %v728 = vadd.f32 %v636, %v727
        %v729 = vpop.f32.mrb[0].mxu0
        %v730 = vadd.f32 %v638, %v729
        %731 = vdwg.mxu0
        %732 = vmatprep.subr.bf16.mxu0 0
        %733 = vmatpush1.bf16.msra.mxu0 %v569
        %734 = vmatprep.subr.bf16.mxu0 0
        %735 = vmatpush1.bf16.msra.mxu0 0
        %736 = vmatprep.subr.bf16.mxu0 0
        %737 = vmatpush1.bf16.msra.mxu0 0
        %738 = vmatprep.subr.bf16.mxu0 0
        %739 = vmatpush1.bf16.msra.mxu0 0
        %740 = vmatprep.subr.bf16.mxu0 0
        %741 = vmatpush1.bf16.msra.mxu0 0
        %742 = vmatprep.subr.bf16.mxu0 0
        %743 = vmatpush1.bf16.msra.mxu0 0
        %744 = vmatprep.subr.bf16.mxu0 0
        %745 = vmatpush1.bf16.msra.mxu0 0
        %746 = vmatprep.subr.bf16.mxu0 0
        %747 = vmatpush1.bf16.msra.mxu0 0
        %748 = vmatprep.subr.bf16.mxu0 0
        %749 = vmatpush1.bf16.msra.mxu0 0
        %750 = vmatprep.subr.bf16.mxu0 0
        %751 = vmatpush1.bf16.msra.mxu0 0
        %752 = vmatprep.subr.bf16.mxu0 0
        %753 = vmatpush1.bf16.msra.mxu0 0
        %754 = vmatprep.subr.bf16.mxu0 0
        %755 = vmatpush1.bf16.msra.mxu0 0
        %756 = vmatprep.subr.bf16.mxu0 0
        %757 = vmatpush1.bf16.msra.mxu0 0
        %758 = vmatprep.subr.bf16.mxu0 0
        %759 = vmatpush1.bf16.msra.mxu0 0
        %760 = vmatprep.subr.bf16.mxu0 0
        %761 = vmatpush1.bf16.msra.mxu0 0
        %762 = vmatprep.subr.bf16.mxu0 0
        %763 = vmatpush1.bf16.msra.mxu0 0
        %764 = vmatprep.mubr.bf16.mxu0 0
        %765 = vmatmul.mubr.bf16.gmra.mrb[0].mxu0 %v687
        %v766 = vpop.f32.mrb[0].mxu0
        %v767 = vadd.f32 %v675, %v766
        %v768 = vpop.f32.mrb[0].mxu0
        %v769 = vpop.f32.mrb[0].mxu0
        %v770 = vadd.f32 %v678, %v769
        %v771 = vpop.f32.mrb[0].mxu0
        %772 = vdwg.mxu0
        %v773 = vld [vmem:[%s3 + $0x10] sm:$0xf]
        %v774 = vld [vmem:[%s3 + $0x14] sm:$0xf]
        %v777 = vunpack.c.l.b16 %v773
        %v778 = vunpack.c.l.b16 %v774
        %v779 = vpack.c.b16 %v778, %v777
        %780 = vrot.lane.b32.xlu0 %v567, 126
        %v781 = vpop.permute.xlu0 %780
        %782 = vrot.lane.b32.xlu0 %v568, 126
        %v783 = vpop.permute.xlu0 %782
        %784 = vrot.lane.b32.xlu0 %v569, 126
        %v785 = vpop.permute.xlu0 %784
        %v786 = vsel %vm375, %v781, %v783
        %v787 = vsel %vm375, %v783, %v785
        %v792 = vsel %vm593, %v779, 0
        %794 = vmatprep.subr.bf16.mxu0 %v787
        %795 = vmatpush1.bf16.msra.mxu0 %v786
        %796 = vmatprep.subr.bf16.mxu0 0
        %797 = vmatpush1.bf16.msra.mxu0 0
        %798 = vmatprep.subr.bf16.mxu0 0
        %799 = vmatpush1.bf16.msra.mxu0 0
        %800 = vmatprep.subr.bf16.mxu0 0
        %801 = vmatpush1.bf16.msra.mxu0 0
        %802 = vmatprep.subr.bf16.mxu0 0
        %803 = vmatpush1.bf16.msra.mxu0 0
        %804 = vmatprep.subr.bf16.mxu0 0
        %805 = vmatpush1.bf16.msra.mxu0 0
        %806 = vmatprep.subr.bf16.mxu0 0
        %807 = vmatpush1.bf16.msra.mxu0 0
        %808 = vmatprep.subr.bf16.mxu0 0
        %809 = vmatpush1.bf16.msra.mxu0 0
        %810 = vmatprep.subr.bf16.mxu0 0
        %811 = vmatpush1.bf16.msra.mxu0 0
        %812 = vmatprep.subr.bf16.mxu0 0
        %813 = vmatpush1.bf16.msra.mxu0 0
        %814 = vmatprep.subr.bf16.mxu0 0
        %815 = vmatpush1.bf16.msra.mxu0 0
        %816 = vmatprep.subr.bf16.mxu0 0
        %817 = vmatpush1.bf16.msra.mxu0 0
        %818 = vmatprep.subr.bf16.mxu0 0
        %819 = vmatpush1.bf16.msra.mxu0 0
        %820 = vmatprep.subr.bf16.mxu0 0
        %821 = vmatpush1.bf16.msra.mxu0 0
        %822 = vmatprep.subr.bf16.mxu0 0
        %823 = vmatpush1.bf16.msra.mxu0 0
        %824 = vmatprep.subr.bf16.mxu0 0
        %825 = vmatpush1.bf16.msra.mxu0 0
        %826 = vmatprep.mubr.bf16.mxu0 0
        %827 = vmatmul.mubr.bf16.gmra.mrb[0].mxu0 %v792
        %v828 = vpop.f32.mrb[0].mxu0
        %v829 = vadd.f32 0.0, %v828
        %v830 = vpop.f32.mrb[0].mxu0
        %v831 = vadd.f32 0.0, %v830
        %v832 = vpop.f32.mrb[0].mxu0
        %v833 = vadd.f32 0.0, %v832
        %v834 = vpop.f32.mrb[0].mxu0
        %v835 = vadd.f32 0.0, %v834
        %836 = vdwg.mxu0
        %837 = vmatprep.subr.bf16.mxu0 0
        %838 = vmatpush1.bf16.msra.mxu0 %v785
        %839 = vmatprep.subr.bf16.mxu0 0
        %840 = vmatpush1.bf16.msra.mxu0 0
        %841 = vmatprep.subr.bf16.mxu0 0
        %842 = vmatpush1.bf16.msra.mxu0 0
        %843 = vmatprep.subr.bf16.mxu0 0
        %844 = vmatpush1.bf16.msra.mxu0 0
        %845 = vmatprep.subr.bf16.mxu0 0
        %846 = vmatpush1.bf16.msra.mxu0 0
        %847 = vmatprep.subr.bf16.mxu0 0
        %848 = vmatpush1.bf16.msra.mxu0 0
        %849 = vmatprep.subr.bf16.mxu0 0
        %850 = vmatpush1.bf16.msra.mxu0 0
        %851 = vmatprep.subr.bf16.mxu0 0
        %852 = vmatpush1.bf16.msra.mxu0 0
        %853 = vmatprep.subr.bf16.mxu0 0
        %854 = vmatpush1.bf16.msra.mxu0 0
        %855 = vmatprep.subr.bf16.mxu0 0
        %856 = vmatpush1.bf16.msra.mxu0 0
        %857 = vmatprep.subr.bf16.mxu0 0
        %858 = vmatpush1.bf16.msra.mxu0 0
        %859 = vmatprep.subr.bf16.mxu0 0
        %860 = vmatpush1.bf16.msra.mxu0 0
        %861 = vmatprep.subr.bf16.mxu0 0
        %862 = vmatpush1.bf16.msra.mxu0 0
        %863 = vmatprep.subr.bf16.mxu0 0
        %864 = vmatpush1.bf16.msra.mxu0 0
        %865 = vmatprep.subr.bf16.mxu0 0
        %866 = vmatpush1.bf16.msra.mxu0 0
        %867 = vmatprep.subr.bf16.mxu0 0
        %868 = vmatpush1.bf16.msra.mxu0 0
        %869 = vmatprep.mubr.bf16.mxu0 0
        %870 = vmatmul.mubr.bf16.gmra.mrb[0].mxu0 %v792
        %v871 = vpop.f32.mrb[0].mxu0
        %v872 = vadd.f32 0.0, %v871
        %v873 = vpop.f32.mrb[0].mxu0
        %v874 = vpop.f32.mrb[0].mxu0
        %v875 = vadd.f32 0.0, %v874
        %v876 = vpop.f32.mrb[0].mxu0
        %877 = vdwg.mxu0
        %v878 = vadd.f32 %v724, %v829
        %v879 = vadd.f32 %v726, %v831
        %v880 = vadd.f32 %v767, %v872
        %v881 = vadd.f32 %v728, %v833
        %v882 = vadd.f32 %v730, %v835
        %v883 = vadd.f32 %v770, %v875
        %v884 = vld [vmem:[%s3 + $0x18] sm:$0xf]
        %v885 = vld [vmem:[%s3 + $0x1c] sm:$0xf]
        %v888 = vunpack.c.l.b16 %v884
        %v889 = vunpack.c.l.b16 %v885
        %v890 = vpack.c.b16 %v889, %v888
        %891 = vrot.lane.b32.xlu0 %v567, 125
        %v892 = vpop.permute.xlu0 %891
        %893 = vrot.lane.b32.xlu0 %v568, 125
        %v894 = vpop.permute.xlu0 %893
        %895 = vrot.lane.b32.xlu0 %v569, 125
        %v896 = vpop.permute.xlu0 %895
        %v897 = vsel %vm384, %v892, %v894
        %v898 = vsel %vm384, %v894, %v896
        %v903 = vsel %vm593, %v890, 0
        %905 = vmatprep.subr.bf16.mxu0 %v898
        %906 = vmatpush1.bf16.msra.mxu0 %v897
        %907 = vmatprep.subr.bf16.mxu0 0
        %908 = vmatpush1.bf16.msra.mxu0 0
        %909 = vmatprep.subr.bf16.mxu0 0
        %910 = vmatpush1.bf16.msra.mxu0 0
        %911 = vmatprep.subr.bf16.mxu0 0
        %912 = vmatpush1.bf16.msra.mxu0 0
        %913 = vmatprep.subr.bf16.mxu0 0
        %914 = vmatpush1.bf16.msra.mxu0 0
        %915 = vmatprep.subr.bf16.mxu0 0
        %916 = vmatpush1.bf16.msra.mxu0 0
        %917 = vmatprep.subr.bf16.mxu0 0
        %918 = vmatpush1.bf16.msra.mxu0 0
        %919 = vmatprep.subr.bf16.mxu0 0
        %920 = vmatpush1.bf16.msra.mxu0 0
        %921 = vmatprep.subr.bf16.mxu0 0
        %922 = vmatpush1.bf16.msra.mxu0 0
        %923 = vmatprep.subr.bf16.mxu0 0
        %924 = vmatpush1.bf16.msra.mxu0 0
        %925 = vmatprep.subr.bf16.mxu0 0
        %926 = vmatpush1.bf16.msra.mxu0 0
        %927 = vmatprep.subr.bf16.mxu0 0
        %928 = vmatpush1.bf16.msra.mxu0 0
        %929 = vmatprep.subr.bf16.mxu0 0
        %930 = vmatpush1.bf16.msra.mxu0 0
        %931 = vmatprep.subr.bf16.mxu0 0
        %932 = vmatpush1.bf16.msra.mxu0 0
        %933 = vmatprep.subr.bf16.mxu0 0
        %934 = vmatpush1.bf16.msra.mxu0 0
        %935 = vmatprep.subr.bf16.mxu0 0
        %936 = vmatpush1.bf16.msra.mxu0 0
        %937 = vmatprep.mubr.bf16.mxu0 0
        %938 = vmatmul.mubr.bf16.gmra.mrb[0].mxu0 %v903
        %v939 = vpop.f32.mrb[0].mxu0
        %v940 = vadd.f32 0.0, %v939
        %v941 = vpop.f32.mrb[0].mxu0
        %v942 = vadd.f32 0.0, %v941
        %v943 = vpop.f32.mrb[0].mxu0
        %v944 = vadd.f32 0.0, %v943
        %v945 = vpop.f32.mrb[0].mxu0
        %v946 = vadd.f32 0.0, %v945
        %947 = vdwg.mxu0
        %948 = vmatprep.subr.bf16.mxu0 0
        %949 = vmatpush1.bf16.msra.mxu0 %v896
        %950 = vmatprep.subr.bf16.mxu0 0
        %951 = vmatpush1.bf16.msra.mxu0 0
        %952 = vmatprep.subr.bf16.mxu0 0
        %953 = vmatpush1.bf16.msra.mxu0 0
        %954 = vmatprep.subr.bf16.mxu0 0
        %955 = vmatpush1.bf16.msra.mxu0 0
        %956 = vmatprep.subr.bf16.mxu0 0
        %957 = vmatpush1.bf16.msra.mxu0 0
        %958 = vmatprep.subr.bf16.mxu0 0
        %959 = vmatpush1.bf16.msra.mxu0 0
        %960 = vmatprep.subr.bf16.mxu0 0
        %961 = vmatpush1.bf16.msra.mxu0 0
        %962 = vmatprep.subr.bf16.mxu0 0
        %963 = vmatpush1.bf16.msra.mxu0 0
        %964 = vmatprep.subr.bf16.mxu0 0
        %965 = vmatpush1.bf16.msra.mxu0 0
        %966 = vmatprep.subr.bf16.mxu0 0
        %967 = vmatpush1.bf16.msra.mxu0 0
        %968 = vmatprep.subr.bf16.mxu0 0
        %969 = vmatpush1.bf16.msra.mxu0 0
        %970 = vmatprep.subr.bf16.mxu0 0
        %971 = vmatpush1.bf16.msra.mxu0 0
        %972 = vmatprep.subr.bf16.mxu0 0
        %973 = vmatpush1.bf16.msra.mxu0 0
        %974 = vmatprep.subr.bf16.mxu0 0
        %975 = vmatpush1.bf16.msra.mxu0 0
        %976 = vmatprep.subr.bf16.mxu0 0
        %977 = vmatpush1.bf16.msra.mxu0 0
        %978 = vmatprep.subr.bf16.mxu0 0
        %979 = vmatpush1.bf16.msra.mxu0 0
        %980 = vmatprep.mubr.bf16.mxu0 0
        %981 = vmatmul.mubr.bf16.gmra.mrb[0].mxu0 %v903
        %v982 = vpop.f32.mrb[0].mxu0
        %v983 = vadd.f32 0.0, %v982
        %v984 = vpop.f32.mrb[0].mxu0
        %v985 = vpop.f32.mrb[0].mxu0
        %v986 = vadd.f32 0.0, %v985
        %v987 = vpop.f32.mrb[0].mxu0
        %988 = vdwg.mxu0
        %v989 = vadd.f32 %v878, %v940
        %v990 = vadd.f32 %v879, %v942
        %v991 = vadd.f32 %v880, %v983
        %v992 = vadd.f32 %v881, %v944
        %v993 = vadd.f32 %v882, %v946
        %v994 = vadd.f32 %v883, %v986
        %v995 = vld [vmem:[%s3 + $0x20] sm:$0xf]
        %v996 = vld [vmem:[%s3 + $0x24] sm:$0xf]
        %v999 = vunpack.c.l.b16 %v995
        %v1000 = vunpack.c.l.b16 %v996
        %v1001 = vpack.c.b16 %v1000, %v999
        %1002 = vrot.lane.b32.xlu0 %v567, 124
        %v1003 = vpop.permute.xlu0 %1002
        %1004 = vrot.lane.b32.xlu0 %v568, 124
        %v1005 = vpop.permute.xlu0 %1004
        %1006 = vrot.lane.b32.xlu0 %v569, 124
        %v1007 = vpop.permute.xlu0 %1006
        %v1008 = vsel %vm393, %v1003, %v1005
        %v1009 = vsel %vm393, %v1005, %v1007
        %v1014 = vsel %vm593, %v1001, 0
        %1016 = vmatprep.subr.bf16.mxu0 %v1009
        %1017 = vmatpush1.bf16.msra.mxu0 %v1008
        %1018 = vmatprep.subr.bf16.mxu0 0
        %1019 = vmatpush1.bf16.msra.mxu0 0
        %1020 = vmatprep.subr.bf16.mxu0 0
        %1021 = vmatpush1.bf16.msra.mxu0 0
        %1022 = vmatprep.subr.bf16.mxu0 0
        %1023 = vmatpush1.bf16.msra.mxu0 0
        %1024 = vmatprep.subr.bf16.mxu0 0
        %1025 = vmatpush1.bf16.msra.mxu0 0
        %1026 = vmatprep.subr.bf16.mxu0 0
        %1027 = vmatpush1.bf16.msra.mxu0 0
        %1028 = vmatprep.subr.bf16.mxu0 0
        %1029 = vmatpush1.bf16.msra.mxu0 0
        %1030 = vmatprep.subr.bf16.mxu0 0
        %1031 = vmatpush1.bf16.msra.mxu0 0
        %1032 = vmatprep.subr.bf16.mxu0 0
        %1033 = vmatpush1.bf16.msra.mxu0 0
        %1034 = vmatprep.subr.bf16.mxu0 0
        %1035 = vmatpush1.bf16.msra.mxu0 0
        %1036 = vmatprep.subr.bf16.mxu0 0
        %1037 = vmatpush1.bf16.msra.mxu0 0
        %1038 = vmatprep.subr.bf16.mxu0 0
        %1039 = vmatpush1.bf16.msra.mxu0 0
        %1040 = vmatprep.subr.bf16.mxu0 0
        %1041 = vmatpush1.bf16.msra.mxu0 0
        %1042 = vmatprep.subr.bf16.mxu0 0
        %1043 = vmatpush1.bf16.msra.mxu0 0
        %1044 = vmatprep.subr.bf16.mxu0 0
        %1045 = vmatpush1.bf16.msra.mxu0 0
        %1046 = vmatprep.subr.bf16.mxu0 0
        %1047 = vmatpush1.bf16.msra.mxu0 0
        %1048 = vmatprep.mubr.bf16.mxu0 0
        %1049 = vmatmul.mubr.bf16.gmra.mrb[0].mxu0 %v1014
        %v1050 = vpop.f32.mrb[0].mxu0
        %v1051 = vadd.f32 0.0, %v1050
        %v1052 = vpop.f32.mrb[0].mxu0
        %v1053 = vadd.f32 0.0, %v1052
        %v1054 = vpop.f32.mrb[0].mxu0
        %v1055 = vadd.f32 0.0, %v1054
        %v1056 = vpop.f32.mrb[0].mxu0
        %v1057 = vadd.f32 0.0, %v1056
        %1058 = vdwg.mxu0
        %1059 = vmatprep.subr.bf16.mxu0 0
        %1060 = vmatpush1.bf16.msra.mxu0 %v1007
        %1061 = vmatprep.subr.bf16.mxu0 0
        %1062 = vmatpush1.bf16.msra.mxu0 0
        %1063 = vmatprep.subr.bf16.mxu0 0
        %1064 = vmatpush1.bf16.msra.mxu0 0
        %1065 = vmatprep.subr.bf16.mxu0 0
        %1066 = vmatpush1.bf16.msra.mxu0 0
        %1067 = vmatprep.subr.bf16.mxu0 0
        %1068 = vmatpush1.bf16.msra.mxu0 0
        %1069 = vmatprep.subr.bf16.mxu0 0
        %1070 = vmatpush1.bf16.msra.mxu0 0
        %1071 = vmatprep.subr.bf16.mxu0 0
        %1072 = vmatpush1.bf16.msra.mxu0 0
        %1073 = vmatprep.subr.bf16.mxu0 0
        %1074 = vmatpush1.bf16.msra.mxu0 0
        %1075 = vmatprep.subr.bf16.mxu0 0
        %1076 = vmatpush1.bf16.msra.mxu0 0
        %1077 = vmatprep.subr.bf16.mxu0 0
        %1078 = vmatpush1.bf16.msra.mxu0 0
        %1079 = vmatprep.subr.bf16.mxu0 0
        %1080 = vmatpush1.bf16.msra.mxu0 0
        %1081 = vmatprep.subr.bf16.mxu0 0
        %1082 = vmatpush1.bf16.msra.mxu0 0
        %1083 = vmatprep.subr.bf16.mxu0 0
        %1084 = vmatpush1.bf16.msra.mxu0 0
        %1085 = vmatprep.subr.bf16.mxu0 0
        %1086 = vmatpush1.bf16.msra.mxu0 0
        %1087 = vmatprep.subr.bf16.mxu0 0
        %1088 = vmatpush1.bf16.msra.mxu0 0
        %1089 = vmatprep.subr.bf16.mxu0 0
        %1090 = vmatpush1.bf16.msra.mxu0 0
        %1091 = vmatprep.mubr.bf16.mxu0 0
        %1092 = vmatmul.mubr.bf16.gmra.mrb[0].mxu0 %v1014
        %v1093 = vpop.f32.mrb[0].mxu0
        %v1094 = vadd.f32 0.0, %v1093
        %v1095 = vpop.f32.mrb[0].mxu0
        %v1096 = vpop.f32.mrb[0].mxu0
        %v1097 = vadd.f32 0.0, %v1096
        %v1098 = vpop.f32.mrb[0].mxu0
        %1099 = vdwg.mxu0
        %v1100 = vadd.f32 %v989, %v1051
        %v1101 = vadd.f32 %v990, %v1053
        %v1102 = vadd.f32 %v991, %v1094
        %v1103 = vadd.f32 %v992, %v1055
        %v1104 = vadd.f32 %v993, %v1057
        %v1105 = vadd.f32 %v994, %v1097
        %1106 = vset.pattern.permute.xlu0 1
        %1107 = vperm.xlu0 %1106, %v354
        %v1108 = vpop.permute.xlu0 %1107
        %1110 = vset.pattern.permute.xlu0 1
        %1111 = vperm.xlu0 %1110, %v355
        %v1112 = vpop.permute.xlu0 %1111
        %v1114 = vadd.f32 %v1100, %v1108
        %v1115 = vadd.f32 %v1101, %v1108
        %v1116 = vadd.f32 %v1102, %v1108
        %v1117 = vadd.f32 %v1103, %v1112
        %v1118 = vadd.f32 %v1104, %v1112
        %v1119 = vadd.f32 %v1105, %v1112
        %v1120 = vtanh.pop %v1114
        %v1121 = vtanh.pop %v1115
        %v1122 = vtanh.pop %v1116
        %v1123 = vtanh.pop %v1117
        %v1124 = vtanh.pop %v1118
        %v1125 = vtanh.pop %v1119
        %s1126 = sadd.s32 %s342, 4294967294
        %v1127 = vstv %s1126
        %v1128 = vadd.s32 %v1127, %v351
        %v1129 = vadd.s32 %v1127, %v352
        %v1130 = vadd.s32 %v1127, %v353
        %vm1131 = vcmp.ge.s32.totalorder %v1128, 0
        %vm1132 = vcmp.ge.s32.totalorder %v1129, 0
        %vm1133 = vcmp.ge.s32.totalorder %v1130, 0
        %vm1134 = vcmp.lt.s32.totalorder %v1128, 320
        %vm1135 = vcmp.lt.s32.totalorder %v1129, 320
        %vm1136 = vcmp.lt.s32.totalorder %v1130, 320
        %vm1137 = vmand %vm1131, %vm1134
        %vm1138 = vmand %vm1132, %vm1135
        %vm1139 = vmand %vm1133, %vm1136
        %v1140 = vsel %vm1137, 1, 0
        %v1141 = vsel %vm1138, 1, 0
        %v1142 = vsel %vm1139, 1, 0
        %vm1143 = vcmp.eq.s32.totalorder %v1140, 1
        %vm1144 = vcmp.eq.s32.totalorder %v1141, 1
        %vm1145 = vcmp.eq.s32.totalorder %v1142, 1
        %v1146 = vsel %vm1143, %v1120, 0.0
        %v1147 = vsel %vm1144, %v1121, 0.0
        %v1148 = vsel %vm1145, %v1122, 0.0
        %v1149 = vsel %vm1143, %v1123, 0.0
        %v1150 = vsel %vm1144, %v1124, 0.0
        %v1151 = vsel %vm1145, %v1125, 0.0
        %v1152 = vpack.c.bf16 %v1149, %v1146
        %v1153 = vpack.c.bf16 %v1150, %v1147
        %v1154 = vpack.c.bf16 %v1151, %v1148
        %v1155 = vld [vmem:[%s4] sm:$0xf]
        %v1156 = vld [vmem:[%s4 + $0x4] sm:$0xf]
        %1160 = vrot.lane.b32.xlu0 %v1152, 127
        %v1161 = vpop.permute.xlu0 %1160
        %1162 = vrot.lane.b32.xlu0 %v1153, 127
        %v1163 = vpop.permute.xlu0 %1162
        %1164 = vrot.lane.b32.xlu0 %v1154, 127
        %v1165 = vpop.permute.xlu0 %1164
        %v1166 = vsel %vm366, %v1161, %v1163
        %v1167 = vsel %vm366, %v1163, %v1165
        %v1171 = vsel %vm593, %v1156, 0
        %1173 = vmatprep.subr.bf16.mxu0 %v1167
        %1174 = vmatpush1.bf16.msra.mxu0 %v1166
        %1175 = vmatprep.subr.bf16.mxu0 0
        %1176 = vmatpush1.bf16.msra.mxu0 0
        %1177 = vmatprep.subr.bf16.mxu0 0
        %1178 = vmatpush1.bf16.msra.mxu0 0
        %1179 = vmatprep.subr.bf16.mxu0 0
        %1180 = vmatpush1.bf16.msra.mxu0 0
        %1181 = vmatprep.subr.bf16.mxu0 0
        %1182 = vmatpush1.bf16.msra.mxu0 0
        %1183 = vmatprep.subr.bf16.mxu0 0
        %1184 = vmatpush1.bf16.msra.mxu0 0
        %1185 = vmatprep.subr.bf16.mxu0 0
        %1186 = vmatpush1.bf16.msra.mxu0 0
        %1187 = vmatprep.subr.bf16.mxu0 0
        %1188 = vmatpush1.bf16.msra.mxu0 0
        %1189 = vmatprep.subr.bf16.mxu0 0
        %1190 = vmatpush1.bf16.msra.mxu0 0
        %1191 = vmatprep.subr.bf16.mxu0 0
        %1192 = vmatpush1.bf16.msra.mxu0 0
        %1193 = vmatprep.subr.bf16.mxu0 0
        %1194 = vmatpush1.bf16.msra.mxu0 0
        %1195 = vmatprep.subr.bf16.mxu0 0
        %1196 = vmatpush1.bf16.msra.mxu0 0
        %1197 = vmatprep.subr.bf16.mxu0 0
        %1198 = vmatpush1.bf16.msra.mxu0 0
        %1199 = vmatprep.subr.bf16.mxu0 0
        %1200 = vmatpush1.bf16.msra.mxu0 0
        %1201 = vmatprep.subr.bf16.mxu0 0
        %1202 = vmatpush1.bf16.msra.mxu0 0
        %1203 = vmatprep.subr.bf16.mxu0 0
        %1204 = vmatpush1.bf16.msra.mxu0 0
        %1205 = vmatprep.mubr.bf16.mxu0 0
        %1206 = vmatmul.mubr.bf16.gmra.mrb[0].mxu0 %v1171
        %v1207 = vpop.f32.mrb[0].mxu0
        %v1208 = vadd.f32 0.0, %v1207
        %v1209 = vpop.f32.mrb[0].mxu0
        %v1210 = vadd.f32 0.0, %v1209
        %v1211 = vpop.f32.mrb[0].mxu0
        %v1212 = vpop.f32.mrb[0].mxu0
        %1213 = vdwg.mxu0
        %v1215 = vsel %vm593, %v1155, 0
        %1217 = vmatprep.subr.bf16.mxu0 %v1153
        %1218 = vmatpush1.bf16.msra.mxu0 %v1152
        %1219 = vmatprep.subr.bf16.mxu0 0
        %1220 = vmatpush1.bf16.msra.mxu0 0
        %1221 = vmatprep.subr.bf16.mxu0 0
        %1222 = vmatpush1.bf16.msra.mxu0 0
        %1223 = vmatprep.subr.bf16.mxu0 0
        %1224 = vmatpush1.bf16.msra.mxu0 0
        %1225 = vmatprep.subr.bf16.mxu0 0
        %1226 = vmatpush1.bf16.msra.mxu0 0
        %1227 = vmatprep.subr.bf16.mxu0 0
        %1228 = vmatpush1.bf16.msra.mxu0 0
        %1229 = vmatprep.subr.bf16.mxu0 0
        %1230 = vmatpush1.bf16.msra.mxu0 0
        %1231 = vmatprep.subr.bf16.mxu0 0
        %1232 = vmatpush1.bf16.msra.mxu0 0
        %1233 = vmatprep.subr.bf16.mxu0 0
        %1234 = vmatpush1.bf16.msra.mxu0 0
        %1235 = vmatprep.subr.bf16.mxu0 0
        %1236 = vmatpush1.bf16.msra.mxu0 0
        %1237 = vmatprep.subr.bf16.mxu0 0
        %1238 = vmatpush1.bf16.msra.mxu0 0
        %1239 = vmatprep.subr.bf16.mxu0 0
        %1240 = vmatpush1.bf16.msra.mxu0 0
        %1241 = vmatprep.subr.bf16.mxu0 0
        %1242 = vmatpush1.bf16.msra.mxu0 0
        %1243 = vmatprep.subr.bf16.mxu0 0
        %1244 = vmatpush1.bf16.msra.mxu0 0
        %1245 = vmatprep.subr.bf16.mxu0 0
        %1246 = vmatpush1.bf16.msra.mxu0 0
        %1247 = vmatprep.subr.bf16.mxu0 0
        %1248 = vmatpush1.bf16.msra.mxu0 0
        %1249 = vmatprep.mubr.bf16.mxu0 0
        %1250 = vmatmul.mubr.bf16.gmra.mrb[0].mxu0 %v1215
        %v1251 = vpop.f32.mrb[0].mxu0
        %v1252 = vadd.f32 %v1208, %v1251
        %v1253 = vpop.f32.mrb[0].mxu0
        %v1254 = vadd.f32 %v1210, %v1253
        %v1255 = vpop.f32.mrb[0].mxu0
        %v1256 = vpop.f32.mrb[0].mxu0
        %1257 = vdwg.mxu0
        %v1258 = vld [vmem:[%s4 + $0x8] sm:$0xf]
        %1259 = vrot.lane.b32.xlu0 %v1152, 126
        %v1260 = vpop.permute.xlu0 %1259
        %1261 = vrot.lane.b32.xlu0 %v1153, 126
        %v1262 = vpop.permute.xlu0 %1261
        %1263 = vrot.lane.b32.xlu0 %v1154, 126
        %v1264 = vpop.permute.xlu0 %1263
        %v1265 = vsel %vm375, %v1260, %v1262
        %v1266 = vsel %vm375, %v1262, %v1264
        %v1270 = vsel %vm593, %v1258, 0
        %1272 = vmatprep.subr.bf16.mxu0 %v1266
        %1273 = vmatpush1.bf16.msra.mxu0 %v1265
        %1274 = vmatprep.subr.bf16.mxu0 0
        %1275 = vmatpush1.bf16.msra.mxu0 0
        %1276 = vmatprep.subr.bf16.mxu0 0
        %1277 = vmatpush1.bf16.msra.mxu0 0
        %1278 = vmatprep.subr.bf16.mxu0 0
        %1279 = vmatpush1.bf16.msra.mxu0 0
        %1280 = vmatprep.subr.bf16.mxu0 0
        %1281 = vmatpush1.bf16.msra.mxu0 0
        %1282 = vmatprep.subr.bf16.mxu0 0
        %1283 = vmatpush1.bf16.msra.mxu0 0
        %1284 = vmatprep.subr.bf16.mxu0 0
        %1285 = vmatpush1.bf16.msra.mxu0 0
        %1286 = vmatprep.subr.bf16.mxu0 0
        %1287 = vmatpush1.bf16.msra.mxu0 0
        %1288 = vmatprep.subr.bf16.mxu0 0
        %1289 = vmatpush1.bf16.msra.mxu0 0
        %1290 = vmatprep.subr.bf16.mxu0 0
        %1291 = vmatpush1.bf16.msra.mxu0 0
        %1292 = vmatprep.subr.bf16.mxu0 0
        %1293 = vmatpush1.bf16.msra.mxu0 0
        %1294 = vmatprep.subr.bf16.mxu0 0
        %1295 = vmatpush1.bf16.msra.mxu0 0
        %1296 = vmatprep.subr.bf16.mxu0 0
        %1297 = vmatpush1.bf16.msra.mxu0 0
        %1298 = vmatprep.subr.bf16.mxu0 0
        %1299 = vmatpush1.bf16.msra.mxu0 0
        %1300 = vmatprep.subr.bf16.mxu0 0
        %1301 = vmatpush1.bf16.msra.mxu0 0
        %1302 = vmatprep.subr.bf16.mxu0 0
        %1303 = vmatpush1.bf16.msra.mxu0 0
        %1304 = vmatprep.mubr.bf16.mxu0 0
        %1305 = vmatmul.mubr.bf16.gmra.mrb[0].mxu0 %v1270
        %v1306 = vpop.f32.mrb[0].mxu0
        %v1307 = vadd.f32 0.0, %v1306
        %v1308 = vpop.f32.mrb[0].mxu0
        %v1309 = vadd.f32 0.0, %v1308
        %v1310 = vpop.f32.mrb[0].mxu0
        %v1311 = vpop.f32.mrb[0].mxu0
        %1312 = vdwg.mxu0
        %v1313 = vadd.f32 %v1252, %v1307
        %v1314 = vadd.f32 %v1254, %v1309
        %v1315 = vld [vmem:[%s4 + $0xc] sm:$0xf]
        %1316 = vrot.lane.b32.xlu0 %v1152, 125
        %v1317 = vpop.permute.xlu0 %1316
        %1318 = vrot.lane.b32.xlu0 %v1153, 125
        %v1319 = vpop.permute.xlu0 %1318
        %1320 = vrot.lane.b32.xlu0 %v1154, 125
        %v1321 = vpop.permute.xlu0 %1320
        %v1322 = vsel %vm384, %v1317, %v1319
        %v1323 = vsel %vm384, %v1319, %v1321
        %v1327 = vsel %vm593, %v1315, 0
        %1329 = vmatprep.subr.bf16.mxu0 %v1323
        %1330 = vmatpush1.bf16.msra.mxu0 %v1322
        %1331 = vmatprep.subr.bf16.mxu0 0
        %1332 = vmatpush1.bf16.msra.mxu0 0
        %1333 = vmatprep.subr.bf16.mxu0 0
        %1334 = vmatpush1.bf16.msra.mxu0 0
        %1335 = vmatprep.subr.bf16.mxu0 0
        %1336 = vmatpush1.bf16.msra.mxu0 0
        %1337 = vmatprep.subr.bf16.mxu0 0
        %1338 = vmatpush1.bf16.msra.mxu0 0
        %1339 = vmatprep.subr.bf16.mxu0 0
        %1340 = vmatpush1.bf16.msra.mxu0 0
        %1341 = vmatprep.subr.bf16.mxu0 0
        %1342 = vmatpush1.bf16.msra.mxu0 0
        %1343 = vmatprep.subr.bf16.mxu0 0
        %1344 = vmatpush1.bf16.msra.mxu0 0
        %1345 = vmatprep.subr.bf16.mxu0 0
        %1346 = vmatpush1.bf16.msra.mxu0 0
        %1347 = vmatprep.subr.bf16.mxu0 0
        %1348 = vmatpush1.bf16.msra.mxu0 0
        %1349 = vmatprep.subr.bf16.mxu0 0
        %1350 = vmatpush1.bf16.msra.mxu0 0
        %1351 = vmatprep.subr.bf16.mxu0 0
        %1352 = vmatpush1.bf16.msra.mxu0 0
        %1353 = vmatprep.subr.bf16.mxu0 0
        %1354 = vmatpush1.bf16.msra.mxu0 0
        %1355 = vmatprep.subr.bf16.mxu0 0
        %1356 = vmatpush1.bf16.msra.mxu0 0
        %1357 = vmatprep.subr.bf16.mxu0 0
        %1358 = vmatpush1.bf16.msra.mxu0 0
        %1359 = vmatprep.subr.bf16.mxu0 0
        %1360 = vmatpush1.bf16.msra.mxu0 0
        %1361 = vmatprep.mubr.bf16.mxu0 0
        %1362 = vmatmul.mubr.bf16.gmra.mrb[0].mxu0 %v1327
        %v1363 = vpop.f32.mrb[0].mxu0
        %v1364 = vadd.f32 0.0, %v1363
        %v1365 = vpop.f32.mrb[0].mxu0
        %v1366 = vadd.f32 0.0, %v1365
        %v1367 = vpop.f32.mrb[0].mxu0
        %v1368 = vpop.f32.mrb[0].mxu0
        %1369 = vdwg.mxu0
        %v1370 = vadd.f32 %v1313, %v1364
        %v1371 = vadd.f32 %v1314, %v1366
        %v1372 = vld [vmem:[%s4 + $0x10] sm:$0xf]
        %1373 = vrot.lane.b32.xlu0 %v1152, 124
        %v1374 = vpop.permute.xlu0 %1373
        %1375 = vrot.lane.b32.xlu0 %v1153, 124
        %v1376 = vpop.permute.xlu0 %1375
        %1377 = vrot.lane.b32.xlu0 %v1154, 124
        %v1378 = vpop.permute.xlu0 %1377
        %v1379 = vsel %vm393, %v1374, %v1376
        %v1380 = vsel %vm393, %v1376, %v1378
        %v1384 = vsel %vm593, %v1372, 0
        %1386 = vmatprep.subr.bf16.mxu0 %v1380
        %1387 = vmatpush1.bf16.msra.mxu0 %v1379
        %1388 = vmatprep.subr.bf16.mxu0 0
        %1389 = vmatpush1.bf16.msra.mxu0 0
        %1390 = vmatprep.subr.bf16.mxu0 0
        %1391 = vmatpush1.bf16.msra.mxu0 0
        %1392 = vmatprep.subr.bf16.mxu0 0
        %1393 = vmatpush1.bf16.msra.mxu0 0
        %1394 = vmatprep.subr.bf16.mxu0 0
        %1395 = vmatpush1.bf16.msra.mxu0 0
        %1396 = vmatprep.subr.bf16.mxu0 0
        %1397 = vmatpush1.bf16.msra.mxu0 0
        %1398 = vmatprep.subr.bf16.mxu0 0
        %1399 = vmatpush1.bf16.msra.mxu0 0
        %1400 = vmatprep.subr.bf16.mxu0 0
        %1401 = vmatpush1.bf16.msra.mxu0 0
        %1402 = vmatprep.subr.bf16.mxu0 0
        %1403 = vmatpush1.bf16.msra.mxu0 0
        %1404 = vmatprep.subr.bf16.mxu0 0
        %1405 = vmatpush1.bf16.msra.mxu0 0
        %1406 = vmatprep.subr.bf16.mxu0 0
        %1407 = vmatpush1.bf16.msra.mxu0 0
        %1408 = vmatprep.subr.bf16.mxu0 0
        %1409 = vmatpush1.bf16.msra.mxu0 0
        %1410 = vmatprep.subr.bf16.mxu0 0
        %1411 = vmatpush1.bf16.msra.mxu0 0
        %1412 = vmatprep.subr.bf16.mxu0 0
        %1413 = vmatpush1.bf16.msra.mxu0 0
        %1414 = vmatprep.subr.bf16.mxu0 0
        %1415 = vmatpush1.bf16.msra.mxu0 0
        %1416 = vmatprep.subr.bf16.mxu0 0
        %1417 = vmatpush1.bf16.msra.mxu0 0
        %1418 = vmatprep.mubr.bf16.mxu0 0
        %1419 = vmatmul.mubr.bf16.gmra.mrb[0].mxu0 %v1384
        %v1420 = vpop.f32.mrb[0].mxu0
        %v1421 = vadd.f32 0.0, %v1420
        %v1422 = vpop.f32.mrb[0].mxu0
        %v1423 = vadd.f32 0.0, %v1422
        %v1424 = vpop.f32.mrb[0].mxu0
        %v1425 = vpop.f32.mrb[0].mxu0
        %1426 = vdwg.mxu0
        %v1427 = vadd.f32 %v1370, %v1421
        %v1428 = vadd.f32 %v1371, %v1423
        %1429 = vset.pattern.permute.xlu0 2
        %1430 = vperm.xlu0 %1429, %v354
        %v1431 = vpop.permute.xlu0 %1430
        %v1433 = vadd.f32 %v1427, %v1431
        %v1434 = vadd.f32 %v1428, %v1431
        %1435 = vst [vmem:[%s317] sm:$0xff] %v1433
        %1436 = vst [vmem:[%s317 + $0x8] sm:$0xff] %v1434
        %s1437 = sand.u32 %s187, 1
        %s1438 = scalar_lea.sflag [#allocation4], %s1437
        %s1439 = sand.u32 %s187, 1
        %s1440 = smul.addr %s1439, 16
        %s1441 = scalar_lea.vmem [#allocation5], %s1440
        // Predicated region
        $region49: #{tpu_custom_call.1} parent=43 // pred_check
          %p1442 = pneg %p197
        $region50: #{tpu_custom_call.1} parent=43 // pred_check_branch
          %1444 = sbr.rel (%p1442) target = $region52
        $region51: #{tpu_custom_call.1} parent=43 // pred_region
          %s1445 = smul.u32 2, %s26
          %s1447 = ssub.s32 256, 256
          %1448 = vsyncadd %s1438, %s1447
          %s1449 = smul.addr %s25, 4
          %s1450 = sadd.s32 %s1445, %s1449
          %s1451 = smul.addr %s1450, 128
          %s1452 = scalar_lea.hbm %s6, %s1451
          %s1454 = sshll.u32 %s1441, 4
          %s1455 = int_to_ptr.vmem [resolvable:$true] %s1454
          %1457 = dma.vmem_to_hbm [thread:$0]  %s1455, 256, %s1452, %s1438
        $region52: #{tpu_custom_call.1} parent=43 // pred_fallthru
          _
      $region44: #{tpu_custom_call.1} parent=5 // pred_fallthru
        _
      %p1458 = scmp.le.s32.totalorder 2, %s16
      // Predicated region
      $region53: #{tpu_custom_call.1} parent=5 // pred_check
        %p1459 = pneg %p1458
      $region54: #{tpu_custom_call.1} parent=5 // pred_check_branch
        %1461 = sbr.rel (%p1459) target = $region56
      $region55: #{tpu_custom_call.1} parent=5 // pred_region
        %s1462 = ssub.s32 %s16, 2
        // Predicated region
        $region57: #{tpu_custom_call.1} parent=55 // pred_check
          %p1463 = pneg %p203
        $region58: #{tpu_custom_call.1} parent=55 // pred_check_branch
          %1465 = sbr.rel (%p1463) target = $region60
        $region59: #{tpu_custom_call.1} parent=55 // pred_region
          %s1466 = sand.u32 %s188, 1
          %s1467 = scalar_lea.sflag [#allocation4], %s1466
          %s1468 = sand.u32 %s188, 1
          %s1469 = smul.addr %s1468, 16
          %s1470 = scalar_lea.vmem [#allocation5], %s1469
          %1471 = dma.done %s1467, 256
        $region60: #{tpu_custom_call.1} parent=55 // pred_fallthru
          _
      $region56: #{tpu_custom_call.1} parent=5 // pred_fallthru
        _
    $region6: #{tpu_custom_call.1} parent=1 // loop_footer
      %s20 = sadd.s32 1, %s16
    $region7: #{tpu_custom_call.1} parent=1 // loop_footer_branch
      %15 = sbr.rel target = $region3
    $region8: #{tpu_custom_call.1} parent=1 // loop_exit
      _
    %1472 = vsyncpa [#allocation3], 1
    %s1473 = scalar_lea.sflag [#allocation3], 1
    %1474 = vsyncpa %s1473, 1
    %1475 = vsyncpa [#allocation4], 1
    %s1476 = scalar_lea.sflag [#allocation4], 1
    %1477 = vsyncpa %s1476, 1

// kernel: tpu_custom_call.1
$region0: #{tpu_custom_call.1}
  #allocation0 [shape = 'u32[]', space=smem, size = 0x4, offset = 0x4, fixed_abs, tag = 'smem constant byte address 0x4 - core index']
  #allocation1 [shape = 'u32[144,128]{1,0:T(1,128)}', space=vmem, size = 0x12000, scoped, tag = 'internal scratch']
  %s0 = inlined_call_operand.vmem [shape: bf16[2,8,768], index: 0, kind: input, shape index: {}]
  %s1 = inlined_call_operand.vmem [shape: bf16[2,8,768], index: 1, kind: input, shape index: {}]
  %s2 = inlined_call_operand.hbm [shape: bf16[16,40], index: 2, kind: input, shape index: {}]
  %s3 = inlined_call_operand.vmem [shape: bf16[80,16], index: 3, kind: input, shape index: {}]
  %s4 = inlined_call_operand.vmem [shape: bf16[40,16], index: 4, kind: input, shape index: {}]
  %s5 = inlined_call_operand.vmem [shape: f32[16,3], index: 5, kind: input, shape index: {}]
  %s6 = inlined_call_operand.hbm [shape: f32[2,8,512], index: 6, kind: output, shape index: {}]
  %s7 = sld [smem:[#allocation0]]
  $region61: #{tpu_custom_call.1} parent=0
    _
  %s9 = ssub.s32 1, %s7
  %s10 = scalar_select 0, %s9, %s7
  $region1: #{tpu_custom_call.1} parent=0
    #allocation2 [shape = 'u8[4096]{0}', space=vmem, size = 0x1000, scoped, tag = 'input window, operand 2, single buffered']
    #allocation3 [shape = 's32[2]{0}', space=sflag, size = 0x8, scoped, tag = 'scoped memory for tpu_custom_call.1']
    #allocation4 [shape = 's32[2]{0}', space=sflag, size = 0x8, scoped, tag = 'scoped memory for tpu_custom_call.1']
    #allocation5 [shape = 'u8[16384]{0}', space=vmem, size = 0x4000, scoped, tag = 'output window, operand 0']
    %11 = vsyncpa [#allocation3], 0
    %12 = vsyncpa [#allocation4], 0
    %s13 = scalar_lea.sflag [#allocation4], 1
    %14 = vsyncpa %s13, 0
    loop: start=0, step=1, limit=6
    $region2: #{tpu_custom_call.1} parent=1 // loop_pre_header
      _
    $region3: #{tpu_custom_call.1} parent=1 // loop_header
      %s16 = sphi 0, %s20
      %p17 = scmp.ge.s32.totalorder %s16, 6
      %s23 = sphi 0, %s35
      %s24 = sphi 0, %s31
      %s25 = sphi 0, %s23
      %s26 = sphi 0, %s24
      %s27 = sphi 0, %s25
      %s28 = sphi 0, %s26
      %s40 = sphi 0, %s42
      %s43 = sphi 0, %s40
      %s44 = sphi 0, %s43
      %s60 = sphi 0, %s44
      %s72 = sphi 0, %s74
      %s75 = sphi 0, %s72
      %s76 = sphi 0, %s75
      %s92 = sphi 0, %s76
      %s96 = sphi 0, %s96
      %s98 = sphi 0, %s96
      %s99 = sphi 0, %s98
      %s113 = sphi 0, %s99
      %s117 = sphi 0, %s117
      %s119 = sphi 0, %s117
      %s120 = sphi 0, %s119
      %s134 = sphi 0, %s120
      %s138 = sphi 0, %s138
      %s140 = sphi 0, %s138
      %s141 = sphi 0, %s140
      %s155 = sphi 0, %s141
      %s159 = sphi 0, %s159
      %s161 = sphi 0, %s159
      %s162 = sphi 0, %s161
      %s176 = sphi 0, %s162
      %s184 = sphi 0, %s186
      %s187 = sphi 0, %s184
      %s188 = sphi 0, %s187
      %s204 = sphi 0, %s188
    $region4: #{tpu_custom_call.1} parent=1 // loop_header_branch
      %19 = sbr.rel (%p17) target = $region8
    $region5: #{tpu_custom_call.1} parent=1 // loop_body
      %s21 = ssub.s32 %s16, 1
      %s22 = ssub.s32 %s16, 2
      %s29 = sadd.s32 1, %s24
      %p30 = scmp.ge.s32.totalorder %s29, 2
      %s31 = scalar_select %p30, 0, %s29
      %s32 = sadd.s32 1, %s23
      %s33 = scalar_select %p30, %s32, %s23
      %p34 = scmp.ge.s32.totalorder %s33, 2
      %s35 = scalar_select %p34, 0, %s33
      %s36 = ssub.s32 %s23, %s35
      %s37 = ssub.s32 %s24, %s31
      %s38 = sor.u32 %s36, %s37
      %p39 = scmp.eq.s32.totalorder %s38, 0
      %s41 = sadd.s32 %s40, 1
      %s42 = scalar_select %p39, %s40, %s41
      %p45 = pneg %p39
      %p46 = scmp.eq.s32.totalorder %s16, 3
      %p47 = por %p45, %p46
      %p48 = scmp.ne.s32.totalorder %s40, %s43
      %p49 = scmp.eq.s32.totalorder %s16, 0
      %p50 = por %p48, %p49
      %p51 = scmp.ne.s32.totalorder %s40, %s43
      %p52 = scmp.eq.s32.totalorder %s21, 3
      %p53 = por %p51, %p52
      %p54 = scmp.ne.s32.totalorder %s43, %s44
      %p55 = scmp.eq.s32.totalorder %s21, 0
      %p56 = por %p54, %p55
      %p57 = scmp.ne.s32.totalorder %s43, %s44
      %p58 = scmp.eq.s32.totalorder %s22, 3
      %p59 = por %p57, %p58
      %p61 = scmp.ne.s32.totalorder %s44, %s60
      %p62 = scmp.eq.s32.totalorder %s22, 0
      %p63 = por %p61, %p62
      %s64 = sadd.s32 %s24, 1
      %s65 = smul.u32 %s64, 2
      %s66 = sadd.s32 %s31, 1
      %s67 = smul.u32 %s66, 2
      %s68 = ssub.s32 %s23, %s35
      %s69 = ssub.s32 %s65, %s67
      %s70 = sor.u32 %s68, %s69
      %p71 = scmp.eq.s32.totalorder %s70, 0
      %s73 = sadd.s32 %s72, 1
      %s74 = scalar_select %p71, %s72, %s73
      %p77 = pneg %p71
      %p78 = scmp.eq.s32.totalorder %s16, 3
      %p79 = por %p77, %p78
      %p80 = scmp.ne.s32.totalorder %s72, %s75
      %p81 = scmp.eq.s32.totalorder %s16, 0
      %p82 = por %p80, %p81
      %p83 = scmp.ne.s32.totalorder %s72, %s75
      %p84 = scmp.eq.s32.totalorder %s21, 3
      %p85 = por %p83, %p84
      %p86 = scmp.ne.s32.totalorder %s75, %s76
      %p87 = scmp.eq.s32.totalorder %s21, 0
      %p88 = por %p86, %p87
      %p89 = scmp.ne.s32.totalorder %s75, %s76
      %p90 = scmp.eq.s32.totalorder %s22, 3
      %p91 = por %p89, %p90
      %p93 = scmp.ne.s32.totalorder %s76, %s92
      %p94 = scmp.eq.s32.totalorder %s22, 0
      %p95 = por %p93, %p94
      %s97 = sadd.s32 %s96, 1
      %p100 = scmp.eq.s32.totalorder %s16, 3
      %p101 = scmp.ne.s32.totalorder %s96, %s98
      %p102 = scmp.eq.s32.totalorder %s16, 0
      %p103 = por %p101, %p102
      %p104 = scmp.ne.s32.totalorder %s96, %s98
      %p105 = scmp.eq.s32.totalorder %s21, 3
      %p106 = por %p104, %p105
      %p107 = scmp.ne.s32.totalorder %s98, %s99
      %p108 = scmp.eq.s32.totalorder %s21, 0
      %p109 = por %p107, %p108
      %p110 = scmp.ne.s32.totalorder %s98, %s99
      %p111 = scmp.eq.s32.totalorder %s22, 3
      %p112 = por %p110, %p111
      %p114 = scmp.ne.s32.totalorder %s99, %s113
      %p115 = scmp.eq.s32.totalorder %s22, 0
      %p116 = por %p114, %p115
      %s118 = sadd.s32 %s117, 1
      %p121 = scmp.eq.s32.totalorder %s16, 3
      %p122 = scmp.ne.s32.totalorder %s117, %s119
      %p123 = scmp.eq.s32.totalorder %s16, 0
      %p124 = por %p122, %p123
      %p125 = scmp.ne.s32.totalorder %s117, %s119
      %p126 = scmp.eq.s32.totalorder %s21, 3
      %p127 = por %p125, %p126
      %p128 = scmp.ne.s32.totalorder %s119, %s120
      %p129 = scmp.eq.s32.totalorder %s21, 0
      %p130 = por %p128, %p129
      %p131 = scmp.ne.s32.totalorder %s119, %s120
      %p132 = scmp.eq.s32.totalorder %s22, 3
      %p133 = por %p131, %p132
      %p135 = scmp.ne.s32.totalorder %s120, %s134
      %p136 = scmp.eq.s32.totalorder %s22, 0
      %p137 = por %p135, %p136
      %s139 = sadd.s32 %s138, 1
      %p142 = scmp.eq.s32.totalorder %s16, 3
      %p143 = scmp.ne.s32.totalorder %s138, %s140
      %p144 = scmp.eq.s32.totalorder %s16, 0
      %p145 = por %p143, %p144
      %p146 = scmp.ne.s32.totalorder %s138, %s140
      %p147 = scmp.eq.s32.totalorder %s21, 3
      %p148 = por %p146, %p147
      %p149 = scmp.ne.s32.totalorder %s140, %s141
      %p150 = scmp.eq.s32.totalorder %s21, 0
      %p151 = por %p149, %p150
      %p152 = scmp.ne.s32.totalorder %s140, %s141
      %p153 = scmp.eq.s32.totalorder %s22, 3
      %p154 = por %p152, %p153
      %p156 = scmp.ne.s32.totalorder %s141, %s155
      %p157 = scmp.eq.s32.totalorder %s22, 0
      %p158 = por %p156, %p157
      %s160 = sadd.s32 %s159, 1
      %p163 = scmp.eq.s32.totalorder %s16, 3
      %p164 = scmp.ne.s32.totalorder %s159, %s161
      %p165 = scmp.eq.s32.totalorder %s16, 0
      %p166 = por %p164, %p165
      %p167 = scmp.ne.s32.totalorder %s159, %s161
      %p168 = scmp.eq.s32.totalorder %s21, 3
      %p169 = por %p167, %p168
      %p170 = scmp.ne.s32.totalorder %s161, %s162
      %p171 = scmp.eq.s32.totalorder %s21, 0
      %p172 = por %p170, %p171
      %p173 = scmp.ne.s32.totalorder %s161, %s162
      %p174 = scmp.eq.s32.totalorder %s22, 3
      %p175 = por %p173, %p174
      %p177 = scmp.ne.s32.totalorder %s162, %s176
      %p178 = scmp.eq.s32.totalorder %s22, 0
      %p179 = por %p177, %p178
      %s180 = ssub.s32 %s23, %s35
      %s181 = ssub.s32 %s24, %s31
      %s182 = sor.u32 %s180, %s181
      %p183 = scmp.eq.s32.totalorder %s182, 0
      %s185 = sadd.s32 %s184, 1
      %s186 = scalar_select %p183, %s184, %s185
      %p189 = pneg %p183
      %p190 = scmp.eq.s32.totalorder %s16, 3
      %p191 = por %p189, %p190
      %p192 = scmp.ne.s32.totalorder %s184, %s187
      %p193 = scmp.eq.s32.totalorder %s16, 0
      %p194 = por %p192, %p193
      %p195 = scmp.ne.s32.totalorder %s184, %s187
      %p196 = scmp.eq.s32.totalorder %s21, 3
      %p197 = por %p195, %p196
      %p198 = scmp.ne.s32.totalorder %s187, %s188
      %p199 = scmp.eq.s32.totalorder %s21, 0
      %p200 = por %p198, %p199
      %p201 = scmp.ne.s32.totalorder %s187, %s188
      %p202 = scmp.eq.s32.totalorder %s22, 3
      %p203 = por %p201, %p202
      %p205 = scmp.ne.s32.totalorder %s188, %s204
      %p206 = scmp.eq.s32.totalorder %s22, 0
      %p207 = por %p205, %p206
      %p208 = scmp.le.s32.totalorder 1, %s16
      %p209 = scmp.lt.s32.totalorder %s16, 5
      %p210 = pnand %p208, %p209
      %p211 = pneg %p210
      // Predicated region
      $region9: #{tpu_custom_call.1} parent=5 // pred_check
        _
      $region10: #{tpu_custom_call.1} parent=5 // pred_check_branch
        %213 = sbr.rel (%p210) target = $region12
      $region11: #{tpu_custom_call.1} parent=5 // pred_region
        %s214 = ssub.s32 %s16, 1
        // Predicated region
        $region13: #{tpu_custom_call.1} parent=11 // pred_check
          %p215 = pneg %p109
        $region14: #{tpu_custom_call.1} parent=11 // pred_check_branch
          %217 = sbr.rel (%p215) target = $region16
        $region15: #{tpu_custom_call.1} parent=11 // pred_region
          %s219 = ssub.s32 128, 128
          %220 = vsyncadd [#allocation3], %s219
          %s221 = sshll.u32 [#allocation2], 4
          %s222 = int_to_ptr.vmem [resolvable:$true] %s221
          %227 = dma.hbm_to_vmem [thread:$0]  %s2, 128, %s222, [#allocation3], 64, 64, 4
        $region16: #{tpu_custom_call.1} parent=11 // pred_fallthru
          _
        // Predicated region
        $region17: #{tpu_custom_call.1} parent=11 // pred_check
          %p228 = pneg %p130
        $region18: #{tpu_custom_call.1} parent=11 // pred_check_branch
          %230 = sbr.rel (%p228) target = $region20
        $region19: #{tpu_custom_call.1} parent=11 // pred_region
          _
        $region20: #{tpu_custom_call.1} parent=11 // pred_fallthru
          _
        // Predicated region
        $region21: #{tpu_custom_call.1} parent=11 // pred_check
          %p231 = pneg %p151
        $region22: #{tpu_custom_call.1} parent=11 // pred_check_branch
          %233 = sbr.rel (%p231) target = $region24
        $region23: #{tpu_custom_call.1} parent=11 // pred_region
          _
        $region24: #{tpu_custom_call.1} parent=11 // pred_fallthru
          _
        // Predicated region
        $region25: #{tpu_custom_call.1} parent=11 // pred_check
          %p234 = pneg %p172
        $region26: #{tpu_custom_call.1} parent=11 // pred_check_branch
          %236 = sbr.rel (%p234) target = $region28
        $region27: #{tpu_custom_call.1} parent=11 // pred_region
          _
        $region28: #{tpu_custom_call.1} parent=11 // pred_fallthru
          _
      $region12: #{tpu_custom_call.1} parent=5 // pred_fallthru
        _
      %p237 = scmp.lt.s32.totalorder %s16, 4
      // Predicated region
      $region29: #{tpu_custom_call.1} parent=5 // pred_check
        %p238 = pneg %p237
      $region30: #{tpu_custom_call.1} parent=5 // pred_check_branch
        %240 = sbr.rel (%p238) target = $region32
      $region31: #{tpu_custom_call.1} parent=5 // pred_region
        // Predicated region
        $region33: #{tpu_custom_call.1} parent=31 // pred_check
          %p241 = pneg %p50
        $region34: #{tpu_custom_call.1} parent=31 // pred_check_branch
          %243 = sbr.rel (%p241) target = $region36
        $region35: #{tpu_custom_call.1} parent=31 // pred_region
          %s244 = smul.u32 2, %s24
          %p245 = scmp.lt.s32.totalorder %s23, 1
          %s246 = scalar_select %p245, %s23, 1
          %p247 = scmp.lt.s32.totalorder %s244, 5
          %s248 = scalar_select %p247, %s244, 5
          %s249 = smul.addr %s246, 6
          %s250 = sadd.s32 %s248, %s249
          %s251 = smul.addr %s250, 4
          %s252 = scalar_lea.vmem %s0, %s251
          %s253 = smul.u32 2, %s24
        $region36: #{tpu_custom_call.1} parent=31 // pred_fallthru
          _
        // Predicated region
        $region37: #{tpu_custom_call.1} parent=31 // pred_check
          %p254 = pneg %p82
        $region38: #{tpu_custom_call.1} parent=31 // pred_check_branch
          %256 = sbr.rel (%p254) target = $region40
        $region39: #{tpu_custom_call.1} parent=31 // pred_region
          %s257 = sadd.s32 %s24, 1
          %s258 = smul.u32 %s257, 2
          %p259 = scmp.lt.s32.totalorder %s23, 1
          %s260 = scalar_select %p259, %s23, 1
          %p261 = scmp.lt.s32.totalorder %s258, 5
          %s262 = scalar_select %p261, %s258, 5
          %s263 = smul.addr %s260, 6
          %s264 = sadd.s32 %s262, %s263
          %s265 = smul.addr %s264, 4
          %s266 = scalar_lea.vmem %s1, %s265
          %s267 = sadd.s32 %s24, 1
          %s268 = smul.u32 %s267, 2
        $region40: #{tpu_custom_call.1} parent=31 // pred_fallthru
          _
      $region32: #{tpu_custom_call.1} parent=5 // pred_fallthru
        _
      %p269 = scmp.le.s32.totalorder 1, %s16
      %p270 = scmp.lt.s32.totalorder %s16, 5
      %p271 = pnand %p269, %p270
      %p272 = pneg %p271
      // Predicated region
      $region41: #{tpu_custom_call.1} parent=5 // pred_check
        _
      $region42: #{tpu_custom_call.1} parent=5 // pred_check_branch
        %274 = sbr.rel (%p271) target = $region44
      $region43: #{tpu_custom_call.1} parent=5 // pred_region
        %s275 = ssub.s32 %s16, 1
        // Predicated region
        $region45: #{tpu_custom_call.1} parent=43 // pred_check
          %p276 = pneg %p109
        $region46: #{tpu_custom_call.1} parent=43 // pred_check_branch
          %278 = sbr.rel (%p276) target = $region48
        $region47: #{tpu_custom_call.1} parent=43 // pred_region
          %279 = dma.done [#allocation3], 128
        $region48: #{tpu_custom_call.1} parent=43 // pred_fallthru
          _
        %s280 = smul.u32 2, %s26
        %p281 = scmp.lt.s32.totalorder %s25, 1
        %s282 = scalar_select %p281, %s25, 1
        %p283 = scmp.lt.s32.totalorder %s280, 5
        %s284 = scalar_select %p283, %s280, 5
        %s285 = smul.addr %s282, 6
        %s286 = sadd.s32 %s284, %s285
        %s287 = smul.addr %s286, 4
        %s288 = scalar_lea.vmem %s0, %s287
        %p289 = pneg %p56
        %p290 = pneg %p53
        %s291 = sadd.s32 %s26, 1
        %s292 = smul.u32 %s291, 2
        %p293 = scmp.lt.s32.totalorder %s25, 1
        %s294 = scalar_select %p293, %s25, 1
        %p295 = scmp.lt.s32.totalorder %s292, 5
        %s296 = scalar_select %p295, %s292, 5
        %s297 = smul.addr %s294, 6
        %s298 = sadd.s32 %s296, %s297
        %s299 = smul.addr %s298, 4
        %s300 = scalar_lea.vmem %s1, %s299
        %p301 = pneg %p88
        %p302 = pneg %p85
        %p303 = pneg %p109
        %p304 = pneg %p106
        %p305 = pneg %p130
        %p306 = pneg %p127
        %p307 = pneg %p151
        %p308 = pneg %p148
        %p309 = pneg %p172
        %p310 = pneg %p169
        %p311 = pneg %p200
        %p312 = pneg %p197
        %s313 = sand.u32 %s187, 1
        %s314 = scalar_lea.sflag [#allocation4], %s313
        %s315 = sand.u32 %s187, 1
        %s316 = smul.addr %s315, 16
        %s317 = scalar_lea.vmem [#allocation5], %s316
        %s318 = smul.u32 2, %s26
        %p319 = scmp.lt.s32.totalorder %s25, 1
        %s320 = scalar_select %p319, %s25, 1
        %p321 = scmp.lt.s32.totalorder %s318, 5
        %s322 = scalar_select %p321, %s318, 5
        %s323 = smul.addr %s320, 6
        %s324 = sadd.s32 %s322, %s323
        %s325 = smul.addr %s324, 4
        %s326 = scalar_lea.vmem %s0, %s325
        %s327 = smul.u32 2, %s26
        %s328 = sadd.s32 %s26, 1
        %s329 = smul.u32 %s328, 2
        %p330 = scmp.lt.s32.totalorder %s25, 1
        %s331 = scalar_select %p330, %s25, 1
        %p332 = scmp.lt.s32.totalorder %s329, 5
        %s333 = scalar_select %p332, %s329, 5
        %s334 = smul.addr %s331, 6
        %s335 = sadd.s32 %s333, %s334
        %s336 = smul.addr %s335, 4
        %s337 = scalar_lea.vmem %s1, %s336
        %s338 = sadd.s32 %s26, 1
        %s339 = smul.u32 %s338, 2
        %s340 = smul.u32 2, %s26
        %s342 = smul.u32 %s26, 256
        %v343 = vld [vmem:[%s326] sm:$0xff]
        %v344 = vld [vmem:[%s337] sm:$0xf]
        %v346 = vunpack.c.l.b16 %v343
        %v347 = vunpack.c.h.b16 %v343
        %v348 = vpack.c.b16 %v346, %v346
        %v349 = vpack.c.b16 %v347, %v347
        %v350 = vlaneseq
        %v351 = vand.u32 %v350, 127
        %v352 = vadd.s32 %v351, 128
        %v353 = vadd.s32 %v351, 256
        %v354 = vld [vmem:[%s5] sm:$0xff]
        %v355 = vld [vmem:[%s5 + $0x8] sm:$0xff]
        %v357 = vrot.slane %v348, 4
        %v358 = vrot.slane %v349, 4
        %v359 = vrot.slane %v344, 4
        %360 = vrot.lane.b32.xlu0 %v357, 127
        %v361 = vpop.permute.xlu0 %360
        %362 = vrot.lane.b32.xlu0 %v358, 127
        %v363 = vpop.permute.xlu0 %362
        %364 = vrot.lane.b32.xlu0 %v359, 127
        %v365 = vpop.permute.xlu0 %364
        %vm366 = vcmask 1039360
        %v367 = vsel %vm366, %v361, %v363
        %v368 = vsel %vm366, %v363, %v365
        %369 = vrot.lane.b32.xlu0 %v348, 126
        %v370 = vpop.permute.xlu0 %369
        %371 = vrot.lane.b32.xlu0 %v349, 126
        %v372 = vpop.permute.xlu0 %371
        %373 = vrot.lane.b32.xlu0 %v344, 126
        %v374 = vpop.permute.xlu0 %373
        %vm375 = vcmask 1031168
        %v376 = vsel %vm375, %v370, %v372
        %v377 = vsel %vm375, %v372, %v374
        %378 = vrot.lane.b32.xlu0 %v357, 125
        %v379 = vpop.permute.xlu0 %378
        %380 = vrot.lane.b32.xlu0 %v358, 125
        %v381 = vpop.permute.xlu0 %380
        %382 = vrot.lane.b32.xlu0 %v359, 125
        %v383 = vpop.permute.xlu0 %382
        %vm384 = vcmask 1022976
        %v385 = vsel %vm384, %v379, %v381
        %v386 = vsel %vm384, %v381, %v383
        %387 = vrot.lane.b32.xlu0 %v348, 124
        %v388 = vpop.permute.xlu0 %387
        %389 = vrot.lane.b32.xlu0 %v349, 124
        %v390 = vpop.permute.xlu0 %389
        %391 = vrot.lane.b32.xlu0 %v344, 124
        %v392 = vpop.permute.xlu0 %391
        %vm393 = vcmask 1014784
        %v394 = vsel %vm393, %v388, %v390
        %v395 = vsel %vm393, %v390, %v392
        %vm396 = vcmask 1043456
        %v399 = vsel %vm396, %v348, %v367
        %v403 = vsel %vm396, %v349, %v368
        %v407 = vsel %vm396, %v344, %v365
        %v411 = vsel %vm396, %v376, %v385
        %v415 = vsel %vm396, %v377, %v386
        %v419 = vsel %vm396, %v374, %v383
        %v421 = vld [vmem:[#allocation2] sm:$0xf]
        %v422 = vld [vmem:[#allocation2 + $0x4] sm:$0xf]
        %424 = vset.pattern.permute.xlu0 0
        %425 = vperm.xlu0 %424, %v354
        %v426 = vpop.permute.xlu0 %425
        %429 = vset.pattern.permute.xlu0 0
        %430 = vperm.xlu0 %429, %v355
        %v431 = vpop.permute.xlu0 %430
        %v435 = vunpack.c.l.b16 %v421
        %v436 = vunpack.c.l.b16 %v422
        %v437 = vpack.c.b16 %v436, %v435
        %vm438 = vcmask 326656
        %v440 = vsel %vm438, %v437, 0
        %v443 = vsel %vm396, %v394, 0
        %v446 = vsel %vm396, %v395, 0
        %v449 = vsel %vm396, %v392, 0
        %451 = vmatprep.subr.bf16.mxu0 %v403
        %452 = vmatpush1.bf16.msra.mxu0 %v399
        %453 = vmatprep.subr.bf16.mxu0 %v415
        %454 = vmatpush1.bf16.msra.mxu0 %v411
        %455 = vmatprep.subr.bf16.mxu0 %v446
        %456 = vmatpush1.bf16.msra.mxu0 %v443
        %457 = vmatprep.subr.bf16.mxu0 0
        %458 = vmatpush1.bf16.msra.mxu0 0
        %459 = vmatprep.subr.bf16.mxu0 0
        %460 = vmatpush1.bf16.msra.mxu0 0
        %461 = vmatprep.subr.bf16.mxu0 0
        %462 = vmatpush1.bf16.msra.mxu0 0
        %463 = vmatprep.subr.bf16.mxu0 0
        %464 = vmatpush1.bf16.msra.mxu0 0
        %465 = vmatprep.subr.bf16.mxu0 0
        %466 = vmatpush1.bf16.msra.mxu0 0
        %467 = vmatprep.subr.bf16.mxu0 0
        %468 = vmatpush1.bf16.msra.mxu0 0
        %469 = vmatprep.subr.bf16.mxu0 0
        %470 = vmatpush1.bf16.msra.mxu0 0
        %471 = vmatprep.subr.bf16.mxu0 0
        %472 = vmatpush1.bf16.msra.mxu0 0
        %473 = vmatprep.subr.bf16.mxu0 0
        %474 = vmatpush1.bf16.msra.mxu0 0
        %475 = vmatprep.subr.bf16.mxu0 0
        %476 = vmatpush1.bf16.msra.mxu0 0
        %477 = vmatprep.subr.bf16.mxu0 0
        %478 = vmatpush1.bf16.msra.mxu0 0
        %479 = vmatprep.subr.bf16.mxu0 0
        %480 = vmatpush1.bf16.msra.mxu0 0
        %481 = vmatprep.subr.bf16.mxu0 0
        %482 = vmatpush1.bf16.msra.mxu0 0
        %483 = vmatprep.mubr.bf16.mxu0 0
        %484 = vmatmul.mubr.bf16.gmra.mrb[0].mxu0 %v440
        %v485 = vpop.f32.mrb[0].mxu0
        %v486 = vadd.f32 %v426, %v485
        %v487 = vpop.f32.mrb[0].mxu0
        %v488 = vadd.f32 %v426, %v487
        %v489 = vpop.f32.mrb[0].mxu0
        %v490 = vadd.f32 %v431, %v489
        %v491 = vpop.f32.mrb[0].mxu0
        %v492 = vadd.f32 %v431, %v491
        %493 = vdwg.mxu0
        %494 = vmatprep.subr.bf16.mxu0 0
        %495 = vmatpush1.bf16.msra.mxu0 %v407
        %496 = vmatprep.subr.bf16.mxu0 0
        %497 = vmatpush1.bf16.msra.mxu0 %v419
        %498 = vmatprep.subr.bf16.mxu0 0
        %499 = vmatpush1.bf16.msra.mxu0 %v449
        %500 = vmatprep.subr.bf16.mxu0 0
        %501 = vmatpush1.bf16.msra.mxu0 0
        %502 = vmatprep.subr.bf16.mxu0 0
        %503 = vmatpush1.bf16.msra.mxu0 0
        %504 = vmatprep.subr.bf16.mxu0 0
        %505 = vmatpush1.bf16.msra.mxu0 0
        %506 = vmatprep.subr.bf16.mxu0 0
        %507 = vmatpush1.bf16.msra.mxu0 0
        %508 = vmatprep.subr.bf16.mxu0 0
        %509 = vmatpush1.bf16.msra.mxu0 0
        %510 = vmatprep.subr.bf16.mxu0 0
        %511 = vmatpush1.bf16.msra.mxu0 0
        %512 = vmatprep.subr.bf16.mxu0 0
        %513 = vmatpush1.bf16.msra.mxu0 0
        %514 = vmatprep.subr.bf16.mxu0 0
        %515 = vmatpush1.bf16.msra.mxu0 0
        %516 = vmatprep.subr.bf16.mxu0 0
        %517 = vmatpush1.bf16.msra.mxu0 0
        %518 = vmatprep.subr.bf16.mxu0 0
        %519 = vmatpush1.bf16.msra.mxu0 0
        %520 = vmatprep.subr.bf16.mxu0 0
        %521 = vmatpush1.bf16.msra.mxu0 0
        %522 = vmatprep.subr.bf16.mxu0 0
        %523 = vmatpush1.bf16.msra.mxu0 0
        %524 = vmatprep.subr.bf16.mxu0 0
        %525 = vmatpush1.bf16.msra.mxu0 0
        %526 = vmatprep.mubr.bf16.mxu0 0
        %527 = vmatmul.mubr.bf16.gmra.mrb[0].mxu0 %v440
        %v528 = vpop.f32.mrb[0].mxu0
        %v529 = vadd.f32 %v426, %v528
        %v530 = vpop.f32.mrb[0].mxu0
        %v531 = vpop.f32.mrb[0].mxu0
        %v532 = vadd.f32 %v431, %v531
        %v533 = vpop.f32.mrb[0].mxu0
        %534 = vdwg.mxu0
        %v535 = vtanh.pop %v486
        %v536 = vtanh.pop %v488
        %v537 = vtanh.pop %v529
        %v538 = vtanh.pop %v490
        %v539 = vtanh.pop %v492
        %v540 = vtanh.pop %v532
        %s541 = sadd.s32 %s342, 4294967292
        %v542 = vstv %s541
        %v543 = vadd.s32 %v542, %v351
        %v544 = vadd.s32 %v542, %v352
        %v545 = vadd.s32 %v542, %v353
        %vm546 = vcmp.ge.s32.totalorder %v543, 0
        %vm547 = vcmp.ge.s32.totalorder %v544, 0
        %vm548 = vcmp.ge.s32.totalorder %v545, 0
        %vm549 = vcmp.lt.s32.totalorder %v543, 320
        %vm550 = vcmp.lt.s32.totalorder %v544, 320
        %vm551 = vcmp.lt.s32.totalorder %v545, 320
        %vm552 = vmand %vm546, %vm549
        %vm553 = vmand %vm547, %vm550
        %vm554 = vmand %vm548, %vm551
        %v555 = vsel %vm552, 1, 0
        %v556 = vsel %vm553, 1, 0
        %v557 = vsel %vm554, 1, 0
        %vm558 = vcmp.eq.s32.totalorder %v555, 1
        %vm559 = vcmp.eq.s32.totalorder %v556, 1
        %vm560 = vcmp.eq.s32.totalorder %v557, 1
        %v561 = vsel %vm558, %v535, 0.0
        %v562 = vsel %vm559, %v536, 0.0
        %v563 = vsel %vm560, %v537, 0.0
        %v564 = vsel %vm558, %v538, 0.0
        %v565 = vsel %vm559, %v539, 0.0
        %v566 = vsel %vm560, %v540, 0.0
        %v567 = vpack.c.bf16 %v564, %v561
        %v568 = vpack.c.bf16 %v565, %v562
        %v569 = vpack.c.bf16 %v566, %v563
        %v570 = vld [vmem:[%s3] sm:$0xf]
        %v571 = vld [vmem:[%s3 + $0x4] sm:$0xf]
        %v572 = vld [vmem:[%s3 + $0x8] sm:$0xf]
        %v573 = vld [vmem:[%s3 + $0xc] sm:$0xf]
        %v576 = vunpack.c.l.b16 %v572
        %v577 = vunpack.c.l.b16 %v573
        %v578 = vpack.c.b16 %v577, %v576
        %582 = vrot.lane.b32.xlu0 %v567, 127
        %v583 = vpop.permute.xlu0 %582
        %584 = vrot.lane.b32.xlu0 %v568, 127
        %v585 = vpop.permute.xlu0 %584
        %586 = vrot.lane.b32.xlu0 %v569, 127
        %v587 = vpop.permute.xlu0 %586
        %v588 = vsel %vm366, %v583, %v585
        %v589 = vsel %vm366, %v585, %v587
        %vm593 = vcmask 130048
        %v595 = vsel %vm593, %v578, 0
        %597 = vmatprep.subr.bf16.mxu0 %v589
        %598 = vmatpush1.bf16.msra.mxu0 %v588
        %599 = vmatprep.subr.bf16.mxu0 0
        %600 = vmatpush1.bf16.msra.mxu0 0
        %601 = vmatprep.subr.bf16.mxu0 0
        %602 = vmatpush1.bf16.msra.mxu0 0
        %603 = vmatprep.subr.bf16.mxu0 0
        %604 = vmatpush1.bf16.msra.mxu0 0
        %605 = vmatprep.subr.bf16.mxu0 0
        %606 = vmatpush1.bf16.msra.mxu0 0
        %607 = vmatprep.subr.bf16.mxu0 0
        %608 = vmatpush1.bf16.msra.mxu0 0
        %609 = vmatprep.subr.bf16.mxu0 0
        %610 = vmatpush1.bf16.msra.mxu0 0
        %611 = vmatprep.subr.bf16.mxu0 0
        %612 = vmatpush1.bf16.msra.mxu0 0
        %613 = vmatprep.subr.bf16.mxu0 0
        %614 = vmatpush1.bf16.msra.mxu0 0
        %615 = vmatprep.subr.bf16.mxu0 0
        %616 = vmatpush1.bf16.msra.mxu0 0
        %617 = vmatprep.subr.bf16.mxu0 0
        %618 = vmatpush1.bf16.msra.mxu0 0
        %619 = vmatprep.subr.bf16.mxu0 0
        %620 = vmatpush1.bf16.msra.mxu0 0
        %621 = vmatprep.subr.bf16.mxu0 0
        %622 = vmatpush1.bf16.msra.mxu0 0
        %623 = vmatprep.subr.bf16.mxu0 0
        %624 = vmatpush1.bf16.msra.mxu0 0
        %625 = vmatprep.subr.bf16.mxu0 0
        %626 = vmatpush1.bf16.msra.mxu0 0
        %627 = vmatprep.subr.bf16.mxu0 0
        %628 = vmatpush1.bf16.msra.mxu0 0
        %629 = vmatprep.mubr.bf16.mxu0 0
        %630 = vmatmul.mubr.bf16.gmra.mrb[0].mxu0 %v595
        %v631 = vpop.f32.mrb[0].mxu0
        %v632 = vadd.f32 0.0, %v631
        %v633 = vpop.f32.mrb[0].mxu0
        %v634 = vadd.f32 0.0, %v633
        %v635 = vpop.f32.mrb[0].mxu0
        %v636 = vadd.f32 0.0, %v635
        %v637 = vpop.f32.mrb[0].mxu0
        %v638 = vadd.f32 0.0, %v637
        %639 = vdwg.mxu0
        %640 = vmatprep.subr.bf16.mxu0 0
        %641 = vmatpush1.bf16.msra.mxu0 %v587
        %642 = vmatprep.subr.bf16.mxu0 0
        %643 = vmatpush1.bf16.msra.mxu0 0
        %644 = vmatprep.subr.bf16.mxu0 0
        %645 = vmatpush1.bf16.msra.mxu0 0
        %646 = vmatprep.subr.bf16.mxu0 0
        %647 = vmatpush1.bf16.msra.mxu0 0
        %648 = vmatprep.subr.bf16.mxu0 0
        %649 = vmatpush1.bf16.msra.mxu0 0
        %650 = vmatprep.subr.bf16.mxu0 0
        %651 = vmatpush1.bf16.msra.mxu0 0
        %652 = vmatprep.subr.bf16.mxu0 0
        %653 = vmatpush1.bf16.msra.mxu0 0
        %654 = vmatprep.subr.bf16.mxu0 0
        %655 = vmatpush1.bf16.msra.mxu0 0
        %656 = vmatprep.subr.bf16.mxu0 0
        %657 = vmatpush1.bf16.msra.mxu0 0
        %658 = vmatprep.subr.bf16.mxu0 0
        %659 = vmatpush1.bf16.msra.mxu0 0
        %660 = vmatprep.subr.bf16.mxu0 0
        %661 = vmatpush1.bf16.msra.mxu0 0
        %662 = vmatprep.subr.bf16.mxu0 0
        %663 = vmatpush1.bf16.msra.mxu0 0
        %664 = vmatprep.subr.bf16.mxu0 0
        %665 = vmatpush1.bf16.msra.mxu0 0
        %666 = vmatprep.subr.bf16.mxu0 0
        %667 = vmatpush1.bf16.msra.mxu0 0
        %668 = vmatprep.subr.bf16.mxu0 0
        %669 = vmatpush1.bf16.msra.mxu0 0
        %670 = vmatprep.subr.bf16.mxu0 0
        %671 = vmatpush1.bf16.msra.mxu0 0
        %672 = vmatprep.mubr.bf16.mxu0 0
        %673 = vmatmul.mubr.bf16.gmra.mrb[0].mxu0 %v595
        %v674 = vpop.f32.mrb[0].mxu0
        %v675 = vadd.f32 0.0, %v674
        %v676 = vpop.f32.mrb[0].mxu0
        %v677 = vpop.f32.mrb[0].mxu0
        %v678 = vadd.f32 0.0, %v677
        %v679 = vpop.f32.mrb[0].mxu0
        %680 = vdwg.mxu0
        %v683 = vunpack.c.l.b16 %v570
        %v684 = vunpack.c.l.b16 %v571
        %v685 = vpack.c.b16 %v684, %v683
        %v687 = vsel %vm593, %v685, 0
        %689 = vmatprep.subr.bf16.mxu0 %v568
        %690 = vmatpush1.bf16.msra.mxu0 %v567
        %691 = vmatprep.subr.bf16.mxu0 0
        %692 = vmatpush1.bf16.msra.mxu0 0
        %693 = vmatprep.subr.bf16.mxu0 0
        %694 = vmatpush1.bf16.msra.mxu0 0
        %695 = vmatprep.subr.bf16.mxu0 0
        %696 = vmatpush1.bf16.msra.mxu0 0
        %697 = vmatprep.subr.bf16.mxu0 0
        %698 = vmatpush1.bf16.msra.mxu0 0
        %699 = vmatprep.subr.bf16.mxu0 0
        %700 = vmatpush1.bf16.msra.mxu0 0
        %701 = vmatprep.subr.bf16.mxu0 0
        %702 = vmatpush1.bf16.msra.mxu0 0
        %703 = vmatprep.subr.bf16.mxu0 0
        %704 = vmatpush1.bf16.msra.mxu0 0
        %705 = vmatprep.subr.bf16.mxu0 0
        %706 = vmatpush1.bf16.msra.mxu0 0
        %707 = vmatprep.subr.bf16.mxu0 0
        %708 = vmatpush1.bf16.msra.mxu0 0
        %709 = vmatprep.subr.bf16.mxu0 0
        %710 = vmatpush1.bf16.msra.mxu0 0
        %711 = vmatprep.subr.bf16.mxu0 0
        %712 = vmatpush1.bf16.msra.mxu0 0
        %713 = vmatprep.subr.bf16.mxu0 0
        %714 = vmatpush1.bf16.msra.mxu0 0
        %715 = vmatprep.subr.bf16.mxu0 0
        %716 = vmatpush1.bf16.msra.mxu0 0
        %717 = vmatprep.subr.bf16.mxu0 0
        %718 = vmatpush1.bf16.msra.mxu0 0
        %719 = vmatprep.subr.bf16.mxu0 0
        %720 = vmatpush1.bf16.msra.mxu0 0
        %721 = vmatprep.mubr.bf16.mxu0 0
        %722 = vmatmul.mubr.bf16.gmra.mrb[0].mxu0 %v687
        %v723 = vpop.f32.mrb[0].mxu0
        %v724 = vadd.f32 %v632, %v723
        %v725 = vpop.f32.mrb[0].mxu0
        %v726 = vadd.f32 %v634, %v725
        %v727 = vpop.f32.mrb[0].mxu0
        %v728 = vadd.f32 %v636, %v727
        %v729 = vpop.f32.mrb[0].mxu0
        %v730 = vadd.f32 %v638, %v729
        %731 = vdwg.mxu0
        %732 = vmatprep.subr.bf16.mxu0 0
        %733 = vmatpush1.bf16.msra.mxu0 %v569
        %734 = vmatprep.subr.bf16.mxu0 0
        %735 = vmatpush1.bf16.msra.mxu0 0
        %736 = vmatprep.subr.bf16.mxu0 0
        %737 = vmatpush1.bf16.msra.mxu0 0
        %738 = vmatprep.subr.bf16.mxu0 0
        %739 = vmatpush1.bf16.msra.mxu0 0
        %740 = vmatprep.subr.bf16.mxu0 0
        %741 = vmatpush1.bf16.msra.mxu0 0
        %742 = vmatprep.subr.bf16.mxu0 0
        %743 = vmatpush1.bf16.msra.mxu0 0
        %744 = vmatprep.subr.bf16.mxu0 0
        %745 = vmatpush1.bf16.msra.mxu0 0
        %746 = vmatprep.subr.bf16.mxu0 0
        %747 = vmatpush1.bf16.msra.mxu0 0
        %748 = vmatprep.subr.bf16.mxu0 0
        %749 = vmatpush1.bf16.msra.mxu0 0
        %750 = vmatprep.subr.bf16.mxu0 0
        %751 = vmatpush1.bf16.msra.mxu0 0
        %752 = vmatprep.subr.bf16.mxu0 0
        %753 = vmatpush1.bf16.msra.mxu0 0
        %754 = vmatprep.subr.bf16.mxu0 0
        %755 = vmatpush1.bf16.msra.mxu0 0
        %756 = vmatprep.subr.bf16.mxu0 0
        %757 = vmatpush1.bf16.msra.mxu0 0
        %758 = vmatprep.subr.bf16.mxu0 0
        %759 = vmatpush1.bf16.msra.mxu0 0
        %760 = vmatprep.subr.bf16.mxu0 0
        %761 = vmatpush1.bf16.msra.mxu0 0
        %762 = vmatprep.subr.bf16.mxu0 0
        %763 = vmatpush1.bf16.msra.mxu0 0
        %764 = vmatprep.mubr.bf16.mxu0 0
        %765 = vmatmul.mubr.bf16.gmra.mrb[0].mxu0 %v687
        %v766 = vpop.f32.mrb[0].mxu0
        %v767 = vadd.f32 %v675, %v766
        %v768 = vpop.f32.mrb[0].mxu0
        %v769 = vpop.f32.mrb[0].mxu0
        %v770 = vadd.f32 %v678, %v769
        %v771 = vpop.f32.mrb[0].mxu0
        %772 = vdwg.mxu0
        %v773 = vld [vmem:[%s3 + $0x10] sm:$0xf]
        %v774 = vld [vmem:[%s3 + $0x14] sm:$0xf]
        %v777 = vunpack.c.l.b16 %v773
        %v778 = vunpack.c.l.b16 %v774
        %v779 = vpack.c.b16 %v778, %v777
        %780 = vrot.lane.b32.xlu0 %v567, 126
        %v781 = vpop.permute.xlu0 %780
        %782 = vrot.lane.b32.xlu0 %v568, 126
        %v783 = vpop.permute.xlu0 %782
        %784 = vrot.lane.b32.xlu0 %v569, 126
        %v785 = vpop.permute.xlu0 %784
        %v786 = vsel %vm375, %v781, %v783
        %v787 = vsel %vm375, %v783, %v785
        %v792 = vsel %vm593, %v779, 0
        %794 = vmatprep.subr.bf16.mxu0 %v787
        %795 = vmatpush1.bf16.msra.mxu0 %v786
        %796 = vmatprep.subr.bf16.mxu0 0
        %797 = vmatpush1.bf16.msra.mxu0 0
        %798 = vmatprep.subr.bf16.mxu0 0
        %799 = vmatpush1.bf16.msra.mxu0 0
        %800 = vmatprep.subr.bf16.mxu0 0
        %801 = vmatpush1.bf16.msra.mxu0 0
        %802 = vmatprep.subr.bf16.mxu0 0
        %803 = vmatpush1.bf16.msra.mxu0 0
        %804 = vmatprep.subr.bf16.mxu0 0
        %805 = vmatpush1.bf16.msra.mxu0 0
        %806 = vmatprep.subr.bf16.mxu0 0
        %807 = vmatpush1.bf16.msra.mxu0 0
        %808 = vmatprep.subr.bf16.mxu0 0
        %809 = vmatpush1.bf16.msra.mxu0 0
        %810 = vmatprep.subr.bf16.mxu0 0
        %811 = vmatpush1.bf16.msra.mxu0 0
        %812 = vmatprep.subr.bf16.mxu0 0
        %813 = vmatpush1.bf16.msra.mxu0 0
        %814 = vmatprep.subr.bf16.mxu0 0
        %815 = vmatpush1.bf16.msra.mxu0 0
        %816 = vmatprep.subr.bf16.mxu0 0
        %817 = vmatpush1.bf16.msra.mxu0 0
        %818 = vmatprep.subr.bf16.mxu0 0
        %819 = vmatpush1.bf16.msra.mxu0 0
        %820 = vmatprep.subr.bf16.mxu0 0
        %821 = vmatpush1.bf16.msra.mxu0 0
        %822 = vmatprep.subr.bf16.mxu0 0
        %823 = vmatpush1.bf16.msra.mxu0 0
        %824 = vmatprep.subr.bf16.mxu0 0
        %825 = vmatpush1.bf16.msra.mxu0 0
        %826 = vmatprep.mubr.bf16.mxu0 0
        %827 = vmatmul.mubr.bf16.gmra.mrb[0].mxu0 %v792
        %v828 = vpop.f32.mrb[0].mxu0
        %v829 = vadd.f32 0.0, %v828
        %v830 = vpop.f32.mrb[0].mxu0
        %v831 = vadd.f32 0.0, %v830
        %v832 = vpop.f32.mrb[0].mxu0
        %v833 = vadd.f32 0.0, %v832
        %v834 = vpop.f32.mrb[0].mxu0
        %v835 = vadd.f32 0.0, %v834
        %836 = vdwg.mxu0
        %837 = vmatprep.subr.bf16.mxu0 0
        %838 = vmatpush1.bf16.msra.mxu0 %v785
        %839 = vmatprep.subr.bf16.mxu0 0
        %840 = vmatpush1.bf16.msra.mxu0 0
        %841 = vmatprep.subr.bf16.mxu0 0
        %842 = vmatpush1.bf16.msra.mxu0 0
        %843 = vmatprep.subr.bf16.mxu0 0
        %844 = vmatpush1.bf16.msra.mxu0 0
        %845 = vmatprep.subr.bf16.mxu0 0
        %846 = vmatpush1.bf16.msra.mxu0 0
        %847 = vmatprep.subr.bf16.mxu0 0
        %848 = vmatpush1.bf16.msra.mxu0 0
        %849 = vmatprep.subr.bf16.mxu0 0
        %850 = vmatpush1.bf16.msra.mxu0 0
        %851 = vmatprep.subr.bf16.mxu0 0
        %852 = vmatpush1.bf16.msra.mxu0 0
        %853 = vmatprep.subr.bf16.mxu0 0
        %854 = vmatpush1.bf16.msra.mxu0 0
        %855 = vmatprep.subr.bf16.mxu0 0
        %856 = vmatpush1.bf16.msra.mxu0 0
        %857 = vmatprep.subr.bf16.mxu0 0
        %858 = vmatpush1.bf16.msra.mxu0 0
        %859 = vmatprep.subr.bf16.mxu0 0
        %860 = vmatpush1.bf16.msra.mxu0 0
        %861 = vmatprep.subr.bf16.mxu0 0
        %862 = vmatpush1.bf16.msra.mxu0 0
        %863 = vmatprep.subr.bf16.mxu0 0
        %864 = vmatpush1.bf16.msra.mxu0 0
        %865 = vmatprep.subr.bf16.mxu0 0
        %866 = vmatpush1.bf16.msra.mxu0 0
        %867 = vmatprep.subr.bf16.mxu0 0
        %868 = vmatpush1.bf16.msra.mxu0 0
        %869 = vmatprep.mubr.bf16.mxu0 0
        %870 = vmatmul.mubr.bf16.gmra.mrb[0].mxu0 %v792
        %v871 = vpop.f32.mrb[0].mxu0
        %v872 = vadd.f32 0.0, %v871
        %v873 = vpop.f32.mrb[0].mxu0
        %v874 = vpop.f32.mrb[0].mxu0
        %v875 = vadd.f32 0.0, %v874
        %v876 = vpop.f32.mrb[0].mxu0
        %877 = vdwg.mxu0
        %v878 = vadd.f32 %v724, %v829
        %v879 = vadd.f32 %v726, %v831
        %v880 = vadd.f32 %v767, %v872
        %v881 = vadd.f32 %v728, %v833
        %v882 = vadd.f32 %v730, %v835
        %v883 = vadd.f32 %v770, %v875
        %v884 = vld [vmem:[%s3 + $0x18] sm:$0xf]
        %v885 = vld [vmem:[%s3 + $0x1c] sm:$0xf]
        %v888 = vunpack.c.l.b16 %v884
        %v889 = vunpack.c.l.b16 %v885
        %v890 = vpack.c.b16 %v889, %v888
        %891 = vrot.lane.b32.xlu0 %v567, 125
        %v892 = vpop.permute.xlu0 %891
        %893 = vrot.lane.b32.xlu0 %v568, 125
        %v894 = vpop.permute.xlu0 %893
        %895 = vrot.lane.b32.xlu0 %v569, 125
        %v896 = vpop.permute.xlu0 %895
        %v897 = vsel %vm384, %v892, %v894
        %v898 = vsel %vm384, %v894, %v896
        %v903 = vsel %vm593, %v890, 0
        %905 = vmatprep.subr.bf16.mxu0 %v898
        %906 = vmatpush1.bf16.msra.mxu0 %v897
        %907 = vmatprep.subr.bf16.mxu0 0
        %908 = vmatpush1.bf16.msra.mxu0 0
        %909 = vmatprep.subr.bf16.mxu0 0
        %910 = vmatpush1.bf16.msra.mxu0 0
        %911 = vmatprep.subr.bf16.mxu0 0
        %912 = vmatpush1.bf16.msra.mxu0 0
        %913 = vmatprep.subr.bf16.mxu0 0
        %914 = vmatpush1.bf16.msra.mxu0 0
        %915 = vmatprep.subr.bf16.mxu0 0
        %916 = vmatpush1.bf16.msra.mxu0 0
        %917 = vmatprep.subr.bf16.mxu0 0
        %918 = vmatpush1.bf16.msra.mxu0 0
        %919 = vmatprep.subr.bf16.mxu0 0
        %920 = vmatpush1.bf16.msra.mxu0 0
        %921 = vmatprep.subr.bf16.mxu0 0
        %922 = vmatpush1.bf16.msra.mxu0 0
        %923 = vmatprep.subr.bf16.mxu0 0
        %924 = vmatpush1.bf16.msra.mxu0 0
        %925 = vmatprep.subr.bf16.mxu0 0
        %926 = vmatpush1.bf16.msra.mxu0 0
        %927 = vmatprep.subr.bf16.mxu0 0
        %928 = vmatpush1.bf16.msra.mxu0 0
        %929 = vmatprep.subr.bf16.mxu0 0
        %930 = vmatpush1.bf16.msra.mxu0 0
        %931 = vmatprep.subr.bf16.mxu0 0
        %932 = vmatpush1.bf16.msra.mxu0 0
        %933 = vmatprep.subr.bf16.mxu0 0
        %934 = vmatpush1.bf16.msra.mxu0 0
        %935 = vmatprep.subr.bf16.mxu0 0
        %936 = vmatpush1.bf16.msra.mxu0 0
        %937 = vmatprep.mubr.bf16.mxu0 0
        %938 = vmatmul.mubr.bf16.gmra.mrb[0].mxu0 %v903
        %v939 = vpop.f32.mrb[0].mxu0
        %v940 = vadd.f32 0.0, %v939
        %v941 = vpop.f32.mrb[0].mxu0
        %v942 = vadd.f32 0.0, %v941
        %v943 = vpop.f32.mrb[0].mxu0
        %v944 = vadd.f32 0.0, %v943
        %v945 = vpop.f32.mrb[0].mxu0
        %v946 = vadd.f32 0.0, %v945
        %947 = vdwg.mxu0
        %948 = vmatprep.subr.bf16.mxu0 0
        %949 = vmatpush1.bf16.msra.mxu0 %v896
        %950 = vmatprep.subr.bf16.mxu0 0
        %951 = vmatpush1.bf16.msra.mxu0 0
        %952 = vmatprep.subr.bf16.mxu0 0
        %953 = vmatpush1.bf16.msra.mxu0 0
        %954 = vmatprep.subr.bf16.mxu0 0
        %955 = vmatpush1.bf16.msra.mxu0 0
        %956 = vmatprep.subr.bf16.mxu0 0
        %957 = vmatpush1.bf16.msra.mxu0 0
        %958 = vmatprep.subr.bf16.mxu0 0
        %959 = vmatpush1.bf16.msra.mxu0 0
        %960 = vmatprep.subr.bf16.mxu0 0
        %961 = vmatpush1.bf16.msra.mxu0 0
        %962 = vmatprep.subr.bf16.mxu0 0
        %963 = vmatpush1.bf16.msra.mxu0 0
        %964 = vmatprep.subr.bf16.mxu0 0
        %965 = vmatpush1.bf16.msra.mxu0 0
        %966 = vmatprep.subr.bf16.mxu0 0
        %967 = vmatpush1.bf16.msra.mxu0 0
        %968 = vmatprep.subr.bf16.mxu0 0
        %969 = vmatpush1.bf16.msra.mxu0 0
        %970 = vmatprep.subr.bf16.mxu0 0
        %971 = vmatpush1.bf16.msra.mxu0 0
        %972 = vmatprep.subr.bf16.mxu0 0
        %973 = vmatpush1.bf16.msra.mxu0 0
        %974 = vmatprep.subr.bf16.mxu0 0
        %975 = vmatpush1.bf16.msra.mxu0 0
        %976 = vmatprep.subr.bf16.mxu0 0
        %977 = vmatpush1.bf16.msra.mxu0 0
        %978 = vmatprep.subr.bf16.mxu0 0
        %979 = vmatpush1.bf16.msra.mxu0 0
        %980 = vmatprep.mubr.bf16.mxu0 0
        %981 = vmatmul.mubr.bf16.gmra.mrb[0].mxu0 %v903
        %v982 = vpop.f32.mrb[0].mxu0
        %v983 = vadd.f32 0.0, %v982
        %v984 = vpop.f32.mrb[0].mxu0
        %v985 = vpop.f32.mrb[0].mxu0
        %v986 = vadd.f32 0.0, %v985
        %v987 = vpop.f32.mrb[0].mxu0
        %988 = vdwg.mxu0
        %v989 = vadd.f32 %v878, %v940
        %v990 = vadd.f32 %v879, %v942
        %v991 = vadd.f32 %v880, %v983
        %v992 = vadd.f32 %v881, %v944
        %v993 = vadd.f32 %v882, %v946
        %v994 = vadd.f32 %v883, %v986
        %v995 = vld [vmem:[%s3 + $0x20] sm:$0xf]
        %v996 = vld [vmem:[%s3 + $0x24] sm:$0xf]
        %v999 = vunpack.c.l.b16 %v995
        %v1000 = vunpack.c.l.b16 %v996
        %v1001 = vpack.c.b16 %v1000, %v999
        %1002 = vrot.lane.b32.xlu0 %v567, 124
        %v1003 = vpop.permute.xlu0 %1002
        %1004 = vrot.lane.b32.xlu0 %v568, 124
        %v1005 = vpop.permute.xlu0 %1004
        %1006 = vrot.lane.b32.xlu0 %v569, 124
        %v1007 = vpop.permute.xlu0 %1006
        %v1008 = vsel %vm393, %v1003, %v1005
        %v1009 = vsel %vm393, %v1005, %v1007
        %v1014 = vsel %vm593, %v1001, 0
        %1016 = vmatprep.subr.bf16.mxu0 %v1009
        %1017 = vmatpush1.bf16.msra.mxu0 %v1008
        %1018 = vmatprep.subr.bf16.mxu0 0
        %1019 = vmatpush1.bf16.msra.mxu0 0
        %1020 = vmatprep.subr.bf16.mxu0 0
        %1021 = vmatpush1.bf16.msra.mxu0 0
        %1022 = vmatprep.subr.bf16.mxu0 0
        %1023 = vmatpush1.bf16.msra.mxu0 0
        %1024 = vmatprep.subr.bf16.mxu0 0
        %1025 = vmatpush1.bf16.msra.mxu0 0
        %1026 = vmatprep.subr.bf16.mxu0 0
        %1027 = vmatpush1.bf16.msra.mxu0 0
        %1028 = vmatprep.subr.bf16.mxu0 0
        %1029 = vmatpush1.bf16.msra.mxu0 0
        %1030 = vmatprep.subr.bf16.mxu0 0
        %1031 = vmatpush1.bf16.msra.mxu0 0
        %1032 = vmatprep.subr.bf16.mxu0 0
        %1033 = vmatpush1.bf16.msra.mxu0 0
        %1034 = vmatprep.subr.bf16.mxu0 0
        %1035 = vmatpush1.bf16.msra.mxu0 0
        %1036 = vmatprep.subr.bf16.mxu0 0
        %1037 = vmatpush1.bf16.msra.mxu0 0
        %1038 = vmatprep.subr.bf16.mxu0 0
        %1039 = vmatpush1.bf16.msra.mxu0 0
        %1040 = vmatprep.subr.bf16.mxu0 0
        %1041 = vmatpush1.bf16.msra.mxu0 0
        %1042 = vmatprep.subr.bf16.mxu0 0
        %1043 = vmatpush1.bf16.msra.mxu0 0
        %1044 = vmatprep.subr.bf16.mxu0 0
        %1045 = vmatpush1.bf16.msra.mxu0 0
        %1046 = vmatprep.subr.bf16.mxu0 0
        %1047 = vmatpush1.bf16.msra.mxu0 0
        %1048 = vmatprep.mubr.bf16.mxu0 0
        %1049 = vmatmul.mubr.bf16.gmra.mrb[0].mxu0 %v1014
        %v1050 = vpop.f32.mrb[0].mxu0
        %v1051 = vadd.f32 0.0, %v1050
        %v1052 = vpop.f32.mrb[0].mxu0
        %v1053 = vadd.f32 0.0, %v1052
        %v1054 = vpop.f32.mrb[0].mxu0
        %v1055 = vadd.f32 0.0, %v1054
        %v1056 = vpop.f32.mrb[0].mxu0
        %v1057 = vadd.f32 0.0, %v1056
        %1058 = vdwg.mxu0
        %1059 = vmatprep.subr.bf16.mxu0 0
        %1060 = vmatpush1.bf16.msra.mxu0 %v1007
        %1061 = vmatprep.subr.bf16.mxu0 0
        %1062 = vmatpush1.bf16.msra.mxu0 0
        %1063 = vmatprep.subr.bf16.mxu0 0
        %1064 = vmatpush1.bf16.msra.mxu0 0
        %1065 = vmatprep.subr.bf16.mxu0 0
        %1066 = vmatpush1.bf16.msra.mxu0 0
        %1067 = vmatprep.subr.bf16.mxu0 0
        %1068 = vmatpush1.bf16.msra.mxu0 0
        %1069 = vmatprep.subr.bf16.mxu0 0
        %1070 = vmatpush1.bf16.msra.mxu0 0
        %1071 = vmatprep.subr.bf16.mxu0 0
        %1072 = vmatpush1.bf16.msra.mxu0 0
        %1073 = vmatprep.subr.bf16.mxu0 0
        %1074 = vmatpush1.bf16.msra.mxu0 0
        %1075 = vmatprep.subr.bf16.mxu0 0
        %1076 = vmatpush1.bf16.msra.mxu0 0
        %1077 = vmatprep.subr.bf16.mxu0 0
        %1078 = vmatpush1.bf16.msra.mxu0 0
        %1079 = vmatprep.subr.bf16.mxu0 0
        %1080 = vmatpush1.bf16.msra.mxu0 0
        %1081 = vmatprep.subr.bf16.mxu0 0
        %1082 = vmatpush1.bf16.msra.mxu0 0
        %1083 = vmatprep.subr.bf16.mxu0 0
        %1084 = vmatpush1.bf16.msra.mxu0 0
        %1085 = vmatprep.subr.bf16.mxu0 0
        %1086 = vmatpush1.bf16.msra.mxu0 0
        %1087 = vmatprep.subr.bf16.mxu0 0
        %1088 = vmatpush1.bf16.msra.mxu0 0
        %1089 = vmatprep.subr.bf16.mxu0 0
        %1090 = vmatpush1.bf16.msra.mxu0 0
        %1091 = vmatprep.mubr.bf16.mxu0 0
        %1092 = vmatmul.mubr.bf16.gmra.mrb[0].mxu0 %v1014
        %v1093 = vpop.f32.mrb[0].mxu0
        %v1094 = vadd.f32 0.0, %v1093
        %v1095 = vpop.f32.mrb[0].mxu0
        %v1096 = vpop.f32.mrb[0].mxu0
        %v1097 = vadd.f32 0.0, %v1096
        %v1098 = vpop.f32.mrb[0].mxu0
        %1099 = vdwg.mxu0
        %v1100 = vadd.f32 %v989, %v1051
        %v1101 = vadd.f32 %v990, %v1053
        %v1102 = vadd.f32 %v991, %v1094
        %v1103 = vadd.f32 %v992, %v1055
        %v1104 = vadd.f32 %v993, %v1057
        %v1105 = vadd.f32 %v994, %v1097
        %1106 = vset.pattern.permute.xlu0 1
        %1107 = vperm.xlu0 %1106, %v354
        %v1108 = vpop.permute.xlu0 %1107
        %1110 = vset.pattern.permute.xlu0 1
        %1111 = vperm.xlu0 %1110, %v355
        %v1112 = vpop.permute.xlu0 %1111
        %v1114 = vadd.f32 %v1100, %v1108
        %v1115 = vadd.f32 %v1101, %v1108
        %v1116 = vadd.f32 %v1102, %v1108
        %v1117 = vadd.f32 %v1103, %v1112
        %v1118 = vadd.f32 %v1104, %v1112
        %v1119 = vadd.f32 %v1105, %v1112
        %v1120 = vtanh.pop %v1114
        %v1121 = vtanh.pop %v1115
        %v1122 = vtanh.pop %v1116
        %v1123 = vtanh.pop %v1117
        %v1124 = vtanh.pop %v1118
        %v1125 = vtanh.pop %v1119
        %s1126 = sadd.s32 %s342, 4294967294
        %v1127 = vstv %s1126
        %v1128 = vadd.s32 %v1127, %v351
        %v1129 = vadd.s32 %v1127, %v352
        %v1130 = vadd.s32 %v1127, %v353
        %vm1131 = vcmp.ge.s32.totalorder %v1128, 0
        %vm1132 = vcmp.ge.s32.totalorder %v1129, 0
        %vm1133 = vcmp.ge.s32.totalorder %v1130, 0
        %vm1134 = vcmp.lt.s32.totalorder %v1128, 320
        %vm1135 = vcmp.lt.s32.totalorder %v1129, 320
        %vm1136 = vcmp.lt.s32.totalorder %v1130, 320
        %vm1137 = vmand %vm1131, %vm1134
        %vm1138 = vmand %vm1132, %vm1135
        %vm1139 = vmand %vm1133, %vm1136
        %v1140 = vsel %vm1137, 1, 0
        %v1141 = vsel %vm1138, 1, 0
        %v1142 = vsel %vm1139, 1, 0
        %vm1143 = vcmp.eq.s32.totalorder %v1140, 1
        %vm1144 = vcmp.eq.s32.totalorder %v1141, 1
        %vm1145 = vcmp.eq.s32.totalorder %v1142, 1
        %v1146 = vsel %vm1143, %v1120, 0.0
        %v1147 = vsel %vm1144, %v1121, 0.0
        %v1148 = vsel %vm1145, %v1122, 0.0
        %v1149 = vsel %vm1143, %v1123, 0.0
        %v1150 = vsel %vm1144, %v1124, 0.0
        %v1151 = vsel %vm1145, %v1125, 0.0
        %v1152 = vpack.c.bf16 %v1149, %v1146
        %v1153 = vpack.c.bf16 %v1150, %v1147
        %v1154 = vpack.c.bf16 %v1151, %v1148
        %v1155 = vld [vmem:[%s4] sm:$0xf]
        %v1156 = vld [vmem:[%s4 + $0x4] sm:$0xf]
        %1160 = vrot.lane.b32.xlu0 %v1152, 127
        %v1161 = vpop.permute.xlu0 %1160
        %1162 = vrot.lane.b32.xlu0 %v1153, 127
        %v1163 = vpop.permute.xlu0 %1162
        %1164 = vrot.lane.b32.xlu0 %v1154, 127
        %v1165 = vpop.permute.xlu0 %1164
        %v1166 = vsel %vm366, %v1161, %v1163
        %v1167 = vsel %vm366, %v1163, %v1165
        %v1171 = vsel %vm593, %v1156, 0
        %1173 = vmatprep.subr.bf16.mxu0 %v1167
        %1174 = vmatpush1.bf16.msra.mxu0 %v1166
        %1175 = vmatprep.subr.bf16.mxu0 0
        %1176 = vmatpush1.bf16.msra.mxu0 0
        %1177 = vmatprep.subr.bf16.mxu0 0
        %1178 = vmatpush1.bf16.msra.mxu0 0
        %1179 = vmatprep.subr.bf16.mxu0 0
        %1180 = vmatpush1.bf16.msra.mxu0 0
        %1181 = vmatprep.subr.bf16.mxu0 0
        %1182 = vmatpush1.bf16.msra.mxu0 0
        %1183 = vmatprep.subr.bf16.mxu0 0
        %1184 = vmatpush1.bf16.msra.mxu0 0
        %1185 = vmatprep.subr.bf16.mxu0 0
        %1186 = vmatpush1.bf16.msra.mxu0 0
        %1187 = vmatprep.subr.bf16.mxu0 0
        %1188 = vmatpush1.bf16.msra.mxu0 0
        %1189 = vmatprep.subr.bf16.mxu0 0
        %1190 = vmatpush1.bf16.msra.mxu0 0
        %1191 = vmatprep.subr.bf16.mxu0 0
        %1192 = vmatpush1.bf16.msra.mxu0 0
        %1193 = vmatprep.subr.bf16.mxu0 0
        %1194 = vmatpush1.bf16.msra.mxu0 0
        %1195 = vmatprep.subr.bf16.mxu0 0
        %1196 = vmatpush1.bf16.msra.mxu0 0
        %1197 = vmatprep.subr.bf16.mxu0 0
        %1198 = vmatpush1.bf16.msra.mxu0 0
        %1199 = vmatprep.subr.bf16.mxu0 0
        %1200 = vmatpush1.bf16.msra.mxu0 0
        %1201 = vmatprep.subr.bf16.mxu0 0
        %1202 = vmatpush1.bf16.msra.mxu0 0
        %1203 = vmatprep.subr.bf16.mxu0 0
        %1204 = vmatpush1.bf16.msra.mxu0 0
        %1205 = vmatprep.mubr.bf16.mxu0 0
        %1206 = vmatmul.mubr.bf16.gmra.mrb[0].mxu0 %v1171
        %v1207 = vpop.f32.mrb[0].mxu0
        %v1208 = vadd.f32 0.0, %v1207
        %v1209 = vpop.f32.mrb[0].mxu0
        %v1210 = vadd.f32 0.0, %v1209
        %v1211 = vpop.f32.mrb[0].mxu0
        %v1212 = vpop.f32.mrb[0].mxu0
        %1213 = vdwg.mxu0
        %v1215 = vsel %vm593, %v1155, 0
        %1217 = vmatprep.subr.bf16.mxu0 %v1153
        %1218 = vmatpush1.bf16.msra.mxu0 %v1152
        %1219 = vmatprep.subr.bf16.mxu0 0
        %1220 = vmatpush1.bf16.msra.mxu0 0
        %1221 = vmatprep.subr.bf16.mxu0 0
        %1222 = vmatpush1.bf16.msra.mxu0 0
        %1223 = vmatprep.subr.bf16.mxu0 0
        %1224 = vmatpush1.bf16.msra.mxu0 0
        %1225 = vmatprep.subr.bf16.mxu0 0
        %1226 = vmatpush1.bf16.msra.mxu0 0
        %1227 = vmatprep.subr.bf16.mxu0 0
        %1228 = vmatpush1.bf16.msra.mxu0 0
        %1229 = vmatprep.subr.bf16.mxu0 0
        %1230 = vmatpush1.bf16.msra.mxu0 0
        %1231 = vmatprep.subr.bf16.mxu0 0
        %1232 = vmatpush1.bf16.msra.mxu0 0
        %1233 = vmatprep.subr.bf16.mxu0 0
        %1234 = vmatpush1.bf16.msra.mxu0 0
        %1235 = vmatprep.subr.bf16.mxu0 0
        %1236 = vmatpush1.bf16.msra.mxu0 0
        %1237 = vmatprep.subr.bf16.mxu0 0
        %1238 = vmatpush1.bf16.msra.mxu0 0
        %1239 = vmatprep.subr.bf16.mxu0 0
        %1240 = vmatpush1.bf16.msra.mxu0 0
        %1241 = vmatprep.subr.bf16.mxu0 0
        %1242 = vmatpush1.bf16.msra.mxu0 0
        %1243 = vmatprep.subr.bf16.mxu0 0
        %1244 = vmatpush1.bf16.msra.mxu0 0
        %1245 = vmatprep.subr.bf16.mxu0 0
        %1246 = vmatpush1.bf16.msra.mxu0 0
        %1247 = vmatprep.subr.bf16.mxu0 0
        %1248 = vmatpush1.bf16.msra.mxu0 0
        %1249 = vmatprep.mubr.bf16.mxu0 0
        %1250 = vmatmul.mubr.bf16.gmra.mrb[0].mxu0 %v1215
        %v1251 = vpop.f32.mrb[0].mxu0
        %v1252 = vadd.f32 %v1208, %v1251
        %v1253 = vpop.f32.mrb[0].mxu0
        %v1254 = vadd.f32 %v1210, %v1253
        %v1255 = vpop.f32.mrb[0].mxu0
        %v1256 = vpop.f32.mrb[0].mxu0
        %1257 = vdwg.mxu0
        %v1258 = vld [vmem:[%s4 + $0x8] sm:$0xf]
        %1259 = vrot.lane.b32.xlu0 %v1152, 126
        %v1260 = vpop.permute.xlu0 %1259
        %1261 = vrot.lane.b32.xlu0 %v1153, 126
        %v1262 = vpop.permute.xlu0 %1261
        %1263 = vrot.lane.b32.xlu0 %v1154, 126
        %v1264 = vpop.permute.xlu0 %1263
        %v1265 = vsel %vm375, %v1260, %v1262
        %v1266 = vsel %vm375, %v1262, %v1264
        %v1270 = vsel %vm593, %v1258, 0
        %1272 = vmatprep.subr.bf16.mxu0 %v1266
        %1273 = vmatpush1.bf16.msra.mxu0 %v1265
        %1274 = vmatprep.subr.bf16.mxu0 0
        %1275 = vmatpush1.bf16.msra.mxu0 0
        %1276 = vmatprep.subr.bf16.mxu0 0
        %1277 = vmatpush1.bf16.msra.mxu0 0
        %1278 = vmatprep.subr.bf16.mxu0 0
        %1279 = vmatpush1.bf16.msra.mxu0 0
        %1280 = vmatprep.subr.bf16.mxu0 0
        %1281 = vmatpush1.bf16.msra.mxu0 0
        %1282 = vmatprep.subr.bf16.mxu0 0
        %1283 = vmatpush1.bf16.msra.mxu0 0
        %1284 = vmatprep.subr.bf16.mxu0 0
        %1285 = vmatpush1.bf16.msra.mxu0 0
        %1286 = vmatprep.subr.bf16.mxu0 0
        %1287 = vmatpush1.bf16.msra.mxu0 0
        %1288 = vmatprep.subr.bf16.mxu0 0
        %1289 = vmatpush1.bf16.msra.mxu0 0
        %1290 = vmatprep.subr.bf16.mxu0 0
        %1291 = vmatpush1.bf16.msra.mxu0 0
        %1292 = vmatprep.subr.bf16.mxu0 0
        %1293 = vmatpush1.bf16.msra.mxu0 0
        %1294 = vmatprep.subr.bf16.mxu0 0
        %1295 = vmatpush1.bf16.msra.mxu0 0
        %1296 = vmatprep.subr.bf16.mxu0 0
        %1297 = vmatpush1.bf16.msra.mxu0 0
        %1298 = vmatprep.subr.bf16.mxu0 0
        %1299 = vmatpush1.bf16.msra.mxu0 0
        %1300 = vmatprep.subr.bf16.mxu0 0
        %1301 = vmatpush1.bf16.msra.mxu0 0
        %1302 = vmatprep.subr.bf16.mxu0 0
        %1303 = vmatpush1.bf16.msra.mxu0 0
        %1304 = vmatprep.mubr.bf16.mxu0 0
        %1305 = vmatmul.mubr.bf16.gmra.mrb[0].mxu0 %v1270
        %v1306 = vpop.f32.mrb[0].mxu0
        %v1307 = vadd.f32 0.0, %v1306
        %v1308 = vpop.f32.mrb[0].mxu0
        %v1309 = vadd.f32 0.0, %v1308
        %v1310 = vpop.f32.mrb[0].mxu0
        %v1311 = vpop.f32.mrb[0].mxu0
        %1312 = vdwg.mxu0
        %v1313 = vadd.f32 %v1252, %v1307
        %v1314 = vadd.f32 %v1254, %v1309
        %v1315 = vld [vmem:[%s4 + $0xc] sm:$0xf]
        %1316 = vrot.lane.b32.xlu0 %v1152, 125
        %v1317 = vpop.permute.xlu0 %1316
        %1318 = vrot.lane.b32.xlu0 %v1153, 125
        %v1319 = vpop.permute.xlu0 %1318
        %1320 = vrot.lane.b32.xlu0 %v1154, 125
        %v1321 = vpop.permute.xlu0 %1320
        %v1322 = vsel %vm384, %v1317, %v1319
        %v1323 = vsel %vm384, %v1319, %v1321
        %v1327 = vsel %vm593, %v1315, 0
        %1329 = vmatprep.subr.bf16.mxu0 %v1323
        %1330 = vmatpush1.bf16.msra.mxu0 %v1322
        %1331 = vmatprep.subr.bf16.mxu0 0
        %1332 = vmatpush1.bf16.msra.mxu0 0
        %1333 = vmatprep.subr.bf16.mxu0 0
        %1334 = vmatpush1.bf16.msra.mxu0 0
        %1335 = vmatprep.subr.bf16.mxu0 0
        %1336 = vmatpush1.bf16.msra.mxu0 0
        %1337 = vmatprep.subr.bf16.mxu0 0
        %1338 = vmatpush1.bf16.msra.mxu0 0
        %1339 = vmatprep.subr.bf16.mxu0 0
        %1340 = vmatpush1.bf16.msra.mxu0 0
        %1341 = vmatprep.subr.bf16.mxu0 0
        %1342 = vmatpush1.bf16.msra.mxu0 0
        %1343 = vmatprep.subr.bf16.mxu0 0
        %1344 = vmatpush1.bf16.msra.mxu0 0
        %1345 = vmatprep.subr.bf16.mxu0 0
        %1346 = vmatpush1.bf16.msra.mxu0 0
        %1347 = vmatprep.subr.bf16.mxu0 0
        %1348 = vmatpush1.bf16.msra.mxu0 0
        %1349 = vmatprep.subr.bf16.mxu0 0
        %1350 = vmatpush1.bf16.msra.mxu0 0
        %1351 = vmatprep.subr.bf16.mxu0 0
        %1352 = vmatpush1.bf16.msra.mxu0 0
        %1353 = vmatprep.subr.bf16.mxu0 0
        %1354 = vmatpush1.bf16.msra.mxu0 0
        %1355 = vmatprep.subr.bf16.mxu0 0
        %1356 = vmatpush1.bf16.msra.mxu0 0
        %1357 = vmatprep.subr.bf16.mxu0 0
        %1358 = vmatpush1.bf16.msra.mxu0 0
        %1359 = vmatprep.subr.bf16.mxu0 0
        %1360 = vmatpush1.bf16.msra.mxu0 0
        %1361 = vmatprep.mubr.bf16.mxu0 0
        %1362 = vmatmul.mubr.bf16.gmra.mrb[0].mxu0 %v1327
        %v1363 = vpop.f32.mrb[0].mxu0
        %v1364 = vadd.f32 0.0, %v1363
        %v1365 = vpop.f32.mrb[0].mxu0
        %v1366 = vadd.f32 0.0, %v1365
        %v1367 = vpop.f32.mrb[0].mxu0
        %v1368 = vpop.f32.mrb[0].mxu0
        %1369 = vdwg.mxu0
        %v1370 = vadd.f32 %v1313, %v1364
        %v1371 = vadd.f32 %v1314, %v1366
        %v1372 = vld [vmem:[%s4 + $0x10] sm:$0xf]
        %1373 = vrot.lane.b32.xlu0 %v1152, 124
        %v1374 = vpop.permute.xlu0 %1373
        %1375 = vrot.lane.b32.xlu0 %v1153, 124
        %v1376 = vpop.permute.xlu0 %1375
        %1377 = vrot.lane.b32.xlu0 %v1154, 124
        %v1378 = vpop.permute.xlu0 %1377
        %v1379 = vsel %vm393, %v1374, %v1376
        %v1380 = vsel %vm393, %v1376, %v1378
        %v1384 = vsel %vm593, %v1372, 0
        %1386 = vmatprep.subr.bf16.mxu0 %v1380
        %1387 = vmatpush1.bf16.msra.mxu0 %v1379
        %1388 = vmatprep.subr.bf16.mxu0 0
        %1389 = vmatpush1.bf16.msra.mxu0 0
        %1390 = vmatprep.subr.bf16.mxu0 0
        %1391 = vmatpush1.bf16.msra.mxu0 0
        %1392 = vmatprep.subr.bf16.mxu0 0
        %1393 = vmatpush1.bf16.msra.mxu0 0
        %1394 = vmatprep.subr.bf16.mxu0 0
        %1395 = vmatpush1.bf16.msra.mxu0 0
        %1396 = vmatprep.subr.bf16.mxu0 0
        %1397 = vmatpush1.bf16.msra.mxu0 0
        %1398 = vmatprep.subr.bf16.mxu0 0
        %1399 = vmatpush1.bf16.msra.mxu0 0
        %1400 = vmatprep.subr.bf16.mxu0 0
        %1401 = vmatpush1.bf16.msra.mxu0 0
        %1402 = vmatprep.subr.bf16.mxu0 0
        %1403 = vmatpush1.bf16.msra.mxu0 0
        %1404 = vmatprep.subr.bf16.mxu0 0
        %1405 = vmatpush1.bf16.msra.mxu0 0
        %1406 = vmatprep.subr.bf16.mxu0 0
        %1407 = vmatpush1.bf16.msra.mxu0 0
        %1408 = vmatprep.subr.bf16.mxu0 0
        %1409 = vmatpush1.bf16.msra.mxu0 0
        %1410 = vmatprep.subr.bf16.mxu0 0
        %1411 = vmatpush1.bf16.msra.mxu0 0
        %1412 = vmatprep.subr.bf16.mxu0 0
        %1413 = vmatpush1.bf16.msra.mxu0 0
        %1414 = vmatprep.subr.bf16.mxu0 0
        %1415 = vmatpush1.bf16.msra.mxu0 0
        %1416 = vmatprep.subr.bf16.mxu0 0
        %1417 = vmatpush1.bf16.msra.mxu0 0
        %1418 = vmatprep.mubr.bf16.mxu0 0
        %1419 = vmatmul.mubr.bf16.gmra.mrb[0].mxu0 %v1384
        %v1420 = vpop.f32.mrb[0].mxu0
        %v1421 = vadd.f32 0.0, %v1420
        %v1422 = vpop.f32.mrb[0].mxu0
        %v1423 = vadd.f32 0.0, %v1422
        %v1424 = vpop.f32.mrb[0].mxu0
        %v1425 = vpop.f32.mrb[0].mxu0
        %1426 = vdwg.mxu0
        %v1427 = vadd.f32 %v1370, %v1421
        %v1428 = vadd.f32 %v1371, %v1423
        %1429 = vset.pattern.permute.xlu0 2
        %1430 = vperm.xlu0 %1429, %v354
        %v1431 = vpop.permute.xlu0 %1430
        %v1433 = vadd.f32 %v1427, %v1431
        %v1434 = vadd.f32 %v1428, %v1431
        %1435 = vst [vmem:[%s317] sm:$0xff] %v1433
        %1436 = vst [vmem:[%s317 + $0x8] sm:$0xff] %v1434
        %s1437 = sand.u32 %s187, 1
        %s1438 = scalar_lea.sflag [#allocation4], %s1437
        %s1439 = sand.u32 %s187, 1
        %s1440 = smul.addr %s1439, 16
        %s1441 = scalar_lea.vmem [#allocation5], %s1440
        // Predicated region
        $region49: #{tpu_custom_call.1} parent=43 // pred_check
          %p1442 = pneg %p197
        $region50: #{tpu_custom_call.1} parent=43 // pred_check_branch
          %1444 = sbr.rel (%p1442) target = $region52
        $region51: #{tpu_custom_call.1} parent=43 // pred_region
          %s1445 = smul.u32 2, %s26
          %s1447 = ssub.s32 256, 256
          %1448 = vsyncadd %s1438, %s1447
          %s1449 = smul.addr %s25, 4
          %s1450 = sadd.s32 %s1445, %s1449
          %s1451 = smul.addr %s1450, 128
          %s1452 = scalar_lea.hbm %s6, %s1451
          %s1454 = sshll.u32 %s1441, 4
          %s1455 = int_to_ptr.vmem [resolvable:$true] %s1454
          %1457 = dma.vmem_to_hbm [thread:$0]  %s1455, 256, %s1452, %s1438
        $region52: #{tpu_custom_call.1} parent=43 // pred_fallthru
          _
      $region44: #{tpu_custom_call.1} parent=5 // pred_fallthru
        _
      %p1458 = scmp.le.s32.totalorder 2, %s16
      // Predicated region
      $region53: #{tpu_custom_call.1} parent=5 // pred_check
        %p1459 = pneg %p1458
      $region54: #{tpu_custom_call.1} parent=5 // pred_check_branch
        %1461 = sbr.rel (%p1459) target = $region56
      $region55: #{tpu_custom_call.1} parent=5 // pred_region
        %s1462 = ssub.s32 %s16, 2
        // Predicated region
        $region57: #{tpu_custom_call.1} parent=55 // pred_check
          %p1463 = pneg %p203
        $region58: #{tpu_custom_call.1} parent=55 // pred_check_branch
          %1465 = sbr.rel (%p1463) target = $region60
        $region59: #{tpu_custom_call.1} parent=55 // pred_region
          %s1466 = sand.u32 %s188, 1
          %s1467 = scalar_lea.sflag [#allocation4], %s1466
          %s1468 = sand.u32 %s188, 1
          %s1469 = smul.addr %s1468, 16
          %s1470 = scalar_lea.vmem [#allocation5], %s1469
          %1471 = dma.done %s1467, 256
        $region60: #{tpu_custom_call.1} parent=55 // pred_fallthru
          _
      $region56: #{tpu_custom_call.1} parent=5 // pred_fallthru
        _
    $region6: #{tpu_custom_call.1} parent=1 // loop_footer
      %s20 = sadd.s32 1, %s16
    $region7: #{tpu_custom_call.1} parent=1 // loop_footer_branch
      %15 = sbr.rel target = $region3
    $region8: #{tpu_custom_call.1} parent=1 // loop_exit
      _
    %1472 = vsyncpa [#allocation3], 1
    %s1473 = scalar_lea.sflag [#allocation3], 1
    %1474 = vsyncpa %s1473, 1
    %1475 = vsyncpa [#allocation4], 1
    %s1476 = scalar_lea.sflag [#allocation4], 1
    %1477 = vsyncpa %s1476, 1

</llo_original>
